<compile_context>
chip_gen: v7x
topology: tpu7x:2x2x1
jax: 0.10.0
libtpu: 0.0.40
codegen_flags: <defaults>
</compile_context>

<pallas_src>
import functools
import math

import jax
import jax.numpy as jnp
import numpy as np
from jax.experimental import pallas as pl
from jax.experimental.pallas import tpu as pltpu

BN_EPS = 1e-5
BN_SCALE = 1.0 / math.sqrt(1.0 + BN_EPS)

# Rows (= output pixels) per grid step for the 1x1 conv kernel.
TILE_M = 256


def _pick_tile(m, target=TILE_M):
    """Largest power-of-two tile <= target that divides m (or m itself if small)."""
    if m <= target:
        return m
    t = 1
    while t * 2 <= target:
        t *= 2
    while t > 1 and m % t:
        t //= 2
    return t


# ----------------------------- Pallas kernels ------------------------------

def _conv1x1_kernel(x_ref, w_ref, b_ref, o_ref):
    # (TILE_M, Cin) @ (Cin, Cout): bf16 operands, f32 accumulation on the MXU.
    acc = jnp.dot(x_ref[...], w_ref[...], preferred_element_type=jnp.float32)
    acc = jnp.maximum(acc + b_ref[...], 0.0)        # bias (+ folded BN) + ReLU, f32
    o_ref[...] = acc.astype(o_ref.dtype)            # bf16 intermediate


def _tail_kernel(*refs, stride, has_down):
    """conv2(3x3)+BN+ReLU -> conv3(1x1)+BN+ReLU -> (+downsample) -> add+ReLU.

    h1_ref holds the whole padded (and, for stride=2, space-to-depth folded)
    conv1 output for one sample; it stays VMEM-resident across the row-tile
    grid axis.  The 3x3 patches are built from 9 contiguous slices of it.
    """
    if has_down:
        (h1_ref, sc_ref, w2_ref, b2_ref, w3_ref, b3_ref,
         wd_ref, bd_ref, o_ref) = refs
    else:
        (h1_ref, sc_ref, w2_ref, b2_ref, w3_ref, b3_ref, o_ref) = refs
        wd_ref = bd_ref = None

    th, wo, cout = o_ref.shape
    c4 = w3_ref.shape[0]
    csc = sc_ref.shape[-1]

    # One output row maps to one row of the (folded) padded h1 slab.
    r0 = pl.multiple_of(pl.program_id(1) * th, th)

    # Assemble the (th*wo, 9*c4) im2col patch entirely in VMEM.
    taps = []
    for di in range(3):
        for dj in range(3):
            ro = di // stride
            co = dj // stride
            ch0 = ((di % stride) * stride + (dj % stride)) * c4
            taps.append(h1_ref[pl.ds(r0 + ro, th), pl.ds(co, wo), pl.ds(ch0, c4)])
    patch = jnp.concatenate(taps, axis=-1).reshape(th * wo, 9 * c4)

    # conv2 (single K = 9*C4 matmul) + BN + ReLU
    h2 = jnp.dot(patch, w2_ref[...], preferred_element_type=jnp.float32)
    h2 = jnp.maximum(h2 + b2_ref[...], 0.0)

    # conv3 (1x1) + BN + ReLU
    y = jnp.dot(h2.astype(jnp.bfloat16), w3_ref[...],
                preferred_element_type=jnp.float32)
    y = jnp.maximum(y + b3_ref[...], 0.0)

    # shortcut: identity (f32) or fused 1x1 strided downsample + BN (no ReLU)
    sc = sc_ref[...].reshape(th * wo, csc)
    if has_down:
        sc = jnp.dot(sc.astype(jnp.bfloat16), wd_ref[...],
                     preferred_element_type=jnp.float32) + bd_ref[...]

    # residual add + ReLU fused into the same epilogue (f32)
    o_ref[...] = jnp.maximum(y + sc, 0.0).reshape(th, wo, cout)


# ------------------------------ kernel wrappers ------------------------------

def conv1x1(x2d, w_bf16, b):
    m, k = x2d.shape
    n = w_bf16.shape[1]
    tm = _pick_tile(m)
    return pl.pallas_call(
        _conv1x1_kernel,
        out_shape=jax.ShapeDtypeStruct((m, n), jnp.bfloat16),
        grid=(m // tm,),
        in_specs=[
            pl.BlockSpec((tm, k), lambda i: (i, 0)),   # activation tile (M-tiled)
            pl.BlockSpec((k, n), lambda i: (0, 0)),    # weight: VMEM-resident
            pl.BlockSpec((1, n), lambda i: (0, 0)),    # bias: VMEM-resident
        ],
        out_specs=pl.BlockSpec((tm, n), lambda i: (i, 0)),
        compiler_params=pltpu.CompilerParams(dimension_semantics=("parallel",)),
    )(x2d, w_bf16, b.reshape(1, n))


def bottleneck_tail(h1f, sc, w2, b2, w3, b3, wd=None, bd=None, *, stride):
    n, hf, wf, cf = h1f.shape
    _, ho, wo, csc = sc.shape
    c4 = w3.shape[0]
    cout = w3.shape[1]
    th = _pick_tile(ho, max(1, 256 // wo))     # ~256 output pixels per matmul
    has_down = wd is not None
    kern = functools.partial(_tail_kernel, stride=stride, has_down=has_down)

    in_specs = [
        # padded (folded) conv1 output: whole image resident per sample
        pl.BlockSpec((None, hf, wf, cf), lambda i, j: (i, 0, 0, 0)),
        # shortcut pixels: row-tiled, f32 (matches PyTorch residual numerics)
        pl.BlockSpec((None, th, wo, csc), lambda i, j: (i, j, 0, 0)),
        pl.BlockSpec((9 * c4, c4), lambda i, j: (0, 0)),    # w2: resident
        pl.BlockSpec((1, c4), lambda i, j: (0, 0)),         # b2: resident
        pl.BlockSpec((c4, cout), lambda i, j: (0, 0)),      # w3: resident
        pl.BlockSpec((1, cout), lambda i, j: (0, 0)),       # b3: resident
    ]
    args = [h1f, sc, w2, b2.reshape(1, c4), w3, b3.reshape(1, cout)]
    if has_down:
        in_specs += [pl.BlockSpec((csc, cout), lambda i, j: (0, 0)),
                     pl.BlockSpec((1, cout), lambda i, j: (0, 0))]
        args += [wd, bd.reshape(1, cout)]

    return pl.pallas_call(
        kern,
        out_shape=jax.ShapeDtypeStruct((n, ho, wo, cout), jnp.float32),
        grid=(n, ho // th),
        in_specs=in_specs,
        out_specs=pl.BlockSpec((None, th, wo, cout), lambda i, j: (i, j, 0, 0)),
        compiler_params=pltpu.CompilerParams(
            dimension_semantics=("parallel", "arbitrary")),
    )(*args)


# ------------------------------ JAX glue ------------------------------------

def _fold_stride2(h1p):
    """Space-to-depth fold of the padded conv1 output so the stride-2 conv2
    taps become contiguous slices inside the kernel (no strided VMEM loads)."""
    n, hp, wp, c = h1p.shape
    ph, pw = hp % 2, wp % 2
    if ph or pw:
        h1p = jnp.pad(h1p, ((0, 0), (0, ph), (0, pw), (0, 0)))
        hp += ph
        wp += pw
    h1f = h1p.reshape(n, hp // 2, 2, wp // 2, 2, c)
    h1f = jnp.transpose(h1f, (0, 1, 3, 2, 4, 5))
    return h1f.reshape(n, hp // 2, wp // 2, 4 * c)


def bottleneck_forward(x, p, stride):
    """BottleneckBlock forward.  x: (N, H, W, Cin) f32 -> (N, Ho, Wo, planes) f32."""
    assert stride in (1, 2)
    n, h, w, cin = x.shape
    c4 = p['w1'].shape[1]

    # conv1 (1x1) + BN + ReLU  -- one fused Pallas matmul over all pixels (bf16 out)
    xb = x.astype(jnp.bfloat16)
    h1 = conv1x1(xb.reshape(n * h * w, cin), p['w1'], p['b1'])
    h1 = h1.reshape(n, h, w, c4)

    # Zero-pad for conv2 (padding happens after conv1, exactly as in PyTorch);
    # for stride=2, fold into phases so the kernel only needs contiguous slices.
    h1p = jnp.pad(h1, ((0, 0), (1, 1), (1, 1), (0, 0)))
    if stride == 1:
        h1f = h1p
        sc = x                                   # identity shortcut (Cin == planes)
    else:
        h1f = _fold_stride2(h1p)
        sc = x[:, ::stride, ::stride, :]         # pixels read by the 1x1 strided downsample

    return bottleneck_tail(h1f, sc, p['w2'], p['b2'], p['w3'], p['b3'],
                           p.get('wd'), p.get('bd'), stride=stride)


# -------------------------- deterministic params ----------------------------

def _pack_conv(w_hwio, b):
    """Fold eval-mode BN scale into w and b; pack w as (KH*KW*Cin, Cout) bf16."""
    kh, kw, cin, cout = w_hwio.shape
    w2d = (w_hwio * BN_SCALE).reshape(kh * kw * cin, cout).astype(jnp.bfloat16)
    return w2d, (b * BN_SCALE).astype(jnp.float32)


def make_bottleneck_params(key, in_planes, planes, stride):
    c4 = planes // 4
    keys = jax.random.split(key, 4)

    def conv_init(k, kh, kw, cin, cout):
        kw_, kb_ = jax.random.split(k)
        fan_in = cin * kh * kw
        w = jax.random.normal(kw_, (kh, kw, cin, cout), jnp.float32) * np.sqrt(2.0 / fan_in)
        bound = 1.0 / np.sqrt(fan_in)
        b = jax.random.uniform(kb_, (cout,), jnp.float32, -bound, bound)
        return w, b

    p = {}
    p['w1'], p['b1'] = _pack_conv(*conv_init(keys[0], 1, 1, in_planes, c4))
    p['w2'], p['b2'] = _pack_conv(*conv_init(keys[1], 3, 3, c4, c4))
    p['w3'], p['b3'] = _pack_conv(*conv_init(keys[2], 1, 1, c4, planes))
    if stride != 1:
        p['wd'], p['bd'] = _pack_conv(*conv_init(keys[3], 1, 1, in_planes, planes))
    return p


# ------------------------------ reference path -------------------------------
# Independent lax.conv implementation using the same folded bf16 weights and
# f32 accumulation, so it checks layout / stride / fusion logic of the kernels.

def _conv_ref(x, w2d, b, kh, kw, stride, pad):
    cin = w2d.shape[0] // (kh * kw)
    cout = w2d.shape[1]
    w = w2d.reshape(kh, kw, cin, cout)
    y = jax.lax.conv_general_dilated(
        x.astype(jnp.bfloat16), w, (stride, stride), [(pad, pad), (pad, pad)],
        dimension_numbers=('NHWC', 'HWIO', 'NHWC'),
        preferred_element_type=jnp.float32)
    return y + b


def bottleneck_ref(x, p, stride):
    y = jnp.maximum(_conv_ref(x, p['w1'], p['b1'], 1, 1, 1, 0), 0.0)
    y = jnp.maximum(_conv_ref(y, p['w2'], p['b2'], 3, 3, stride, 1), 0.0)
    y = jnp.maximum(_conv_ref(y, p['w3'], p['b3'], 1, 1, 1, 0), 0.0)
    sc = x if stride == 1 else _conv_ref(x, p['wd'], p['bd'], 1, 1, stride, 0)
    return jnp.maximum(sc + y, 0.0)


# ---------------------------------- main -------------------------------------

if __name__ == "__main__":
    key = jax.random.PRNGKey(0)
    k1, k2, kx = jax.random.split(key, 3)

    # Two blocks matching RAFT SmallEncoder usage: a stride-1 identity block and
    # a stride-2 block exercising the fused downsample path.
    p_s1 = make_bottleneck_params(k1, in_planes=32, planes=32, stride=1)
    p_s2 = make_bottleneck_params(k2, in_planes=32, planes=64, stride=2)

    # PyTorch-convention input (NCHW), small shapes: batch=2, 32 channels, 16x16
    x_nchw = jax.random.normal(kx, (2, 32, 16, 16), jnp.float32)
    x = jnp.transpose(x_nchw, (0, 2, 3, 1))          # -> NHWC

    fwd1 = jax.jit(lambda v: bottleneck_forward(v, p_s1, 1))
    fwd2 = jax.jit(lambda v: bottleneck_forward(v, p_s2, 2))

    y1 = fwd1(x)                                     # (2, 16, 16, 32)
    y2 = fwd2(y1)                                    # (2,  8,  8, 64)
    jax.block_until_ready(y2)

    # correctness vs. the independent reference (same bf16/f32 numerics)
    r1 = bottleneck_ref(x, p_s1, 1)
    r2 = bottleneck_ref(y1, p_s2, 2)
    np.testing.assert_allclose(np.asarray(y1), np.asarray(r1), rtol=1e-2, atol=1e-2)
    np.testing.assert_allclose(np.asarray(y2), np.asarray(r2), rtol=1e-2, atol=1e-2)

    out_nchw = jnp.transpose(y2, (0, 3, 1, 2))       # back to PyTorch NCHW
    assert y1.shape == (2, 16, 16, 32)
    assert out_nchw.shape == (2, 64, 8, 8)
    print("KERNEL_OK")
</pallas_src>

<mosaic_0001>
module attributes {stable_mosaic.version = 11 : i64} {
  func.func @_conv1x1_kernel(%arg0: i32, %arg1: memref<256x32xbf16, #tpu.memory_space<vmem>>, %arg2: memref<32x8xbf16, #tpu.memory_space<vmem>>, %arg3: memref<1x8xf32, #tpu.memory_space<vmem>>, %arg4: memref<256x8xbf16, #tpu.memory_space<vmem>>) attributes {dimension_semantics = [#tpu.dimension_semantics<parallel>], iteration_bounds = array<i64: 2>, scalar_prefetch = 0 : i64, scratch_operands = 0 : i64, tpu.core_type = #tpu.core_type<tc>, window_params = [{transform_indices = @transform_0, window_bounds = array<i64: 256, 32>}, {pipeline_mode = #tpu.pipeline_mode<synchronous>, transform_indices = @transform_1, window_bounds = array<i64: 32, 8>}, {pipeline_mode = #tpu.pipeline_mode<synchronous>, transform_indices = @transform_2, window_bounds = array<i64: 1, 8>}, {transform_indices = @transform_3, window_bounds = array<i64: 256, 8>}]} {
    %c0 = arith.constant 0 : index
    %c0_0 = arith.constant 0 : index
    %0 = vector.load %arg1[%c0, %c0_0] : memref<256x32xbf16, #tpu.memory_space<vmem>>, vector<256x32xbf16>
    %c0_1 = arith.constant 0 : index
    %c0_2 = arith.constant 0 : index
    %1 = vector.load %arg2[%c0_1, %c0_2] : memref<32x8xbf16, #tpu.memory_space<vmem>>, vector<32x8xbf16>
    %cst = arith.constant dense<0.000000e+00> : vector<256x8xf32>
    %2 = tpu.matmul %0, %1, %cst {dimension_numbers = #tpu.dot_dimension_numbers<[1], [0], [0], [1], [0, 0, 1, 1], [], []>} : vector<256x32xbf16>, vector<32x8xbf16>, vector<256x8xf32> -> vector<256x8xf32>
    %c0_3 = arith.constant 0 : index
    %c0_4 = arith.constant 0 : index
    %3 = vector.load %arg3[%c0_3, %c0_4] : memref<1x8xf32, #tpu.memory_space<vmem>>, vector<1x8xf32>
    %4 = vector.broadcast %3 : vector<1x8xf32> to vector<256x8xf32>
    %5 = arith.addf %2, %4 : vector<256x8xf32>
    %cst_5 = arith.constant 0.000000e+00 : f32
    %6 = vector.broadcast %cst_5 : f32 to vector<256x8xf32>
    %7 = arith.maximumf %5, %6 : vector<256x8xf32>
    %8 = arith.truncf %7 : vector<256x8xf32> to vector<256x8xbf16>
    %c0_6 = arith.constant 0 : index
    %c0_7 = arith.constant 0 : index
    %9 = vector.load %arg4[%c0_6, %c0_7] : memref<256x8xbf16, #tpu.memory_space<vmem>>, vector<256x8xbf16>
    tpu.vector_store %arg4[%c0_6, %c0_7], %8 {strides = array<i32>} : memref<256x8xbf16, #tpu.memory_space<vmem>>, vector<256x8xbf16>,
    return
  }
  func.func @transform_0(%arg0: i32) -> (i32, i32) {
    %c0_i32 = arith.constant 0 : i32
    %c0_i32_0 = arith.constant 0 : i32
    return %arg0, %c0_i32 : i32, i32
  }
  func.func @transform_1(%arg0: i32) -> (i32, i32) {
    %c0_i32 = arith.constant 0 : i32
    %c0_i32_0 = arith.constant 0 : i32
    %c0_i32_1 = arith.constant 0 : i32
    return %c0_i32, %c0_i32_0 : i32, i32
  }
  func.func @transform_2(%arg0: i32) -> (i32, i32) {
    %c0_i32 = arith.constant 0 : i32
    %c0_i32_0 = arith.constant 0 : i32
    %c0_i32_1 = arith.constant 0 : i32
    return %c0_i32, %c0_i32_0 : i32, i32
  }
  func.func @transform_3(%arg0: i32) -> (i32, i32) {
    %c0_i32 = arith.constant 0 : i32
    %c0_i32_0 = arith.constant 0 : i32
    return %arg0, %c0_i32 : i32, i32
  }
}

module attributes {stable_mosaic.version = 11 : i64} {
  func.func @_tail_kernel(%arg0: i32, %arg1: i32, %arg2: memref<1x18x18x8xbf16, #tpu.memory_space<vmem>>, %arg3: memref<1x16x16x32xf32, #tpu.memory_space<vmem>>, %arg4: memref<72x8xbf16, #tpu.memory_space<vmem>>, %arg5: memref<1x8xf32, #tpu.memory_space<vmem>>, %arg6: memref<8x32xbf16, #tpu.memory_space<vmem>>, %arg7: memref<1x32xf32, #tpu.memory_space<vmem>>, %arg8: memref<1x16x16x32xf32, #tpu.memory_space<vmem>>) attributes {dimension_semantics = [#tpu.dimension_semantics<parallel>, #tpu.dimension_semantics<arbitrary>], iteration_bounds = array<i64: 2, 1>, scalar_prefetch = 0 : i64, scratch_operands = 0 : i64, tpu.core_type = #tpu.core_type<tc>, window_params = [{transform_indices = @transform_0, window_bounds = array<i64: 1, 18, 18, 8>}, {transform_indices = @transform_1, window_bounds = array<i64: 1, 16, 16, 32>}, {pipeline_mode = #tpu.pipeline_mode<synchronous>, transform_indices = @transform_2, window_bounds = array<i64: 72, 8>}, {pipeline_mode = #tpu.pipeline_mode<synchronous>, transform_indices = @transform_3, window_bounds = array<i64: 1, 8>}, {pipeline_mode = #tpu.pipeline_mode<synchronous>, transform_indices = @transform_4, window_bounds = array<i64: 8, 32>}, {pipeline_mode = #tpu.pipeline_mode<synchronous>, transform_indices = @transform_5, window_bounds = array<i64: 1, 32>}, {transform_indices = @transform_6, window_bounds = array<i64: 1, 16, 16, 32>}]} {
    %c16_i32 = arith.constant 16 : i32
    %0 = arith.muli %arg1, %c16_i32 : i32
    %1 = tpu.assume_multiple %0, 16 : i32
    %c0_i32 = arith.constant 0 : i32
    %2 = arith.addi %1, %c0_i32 : i32
    %c0 = arith.constant 0 : index
    %3 = arith.index_cast %2 : i32 to index
    %c0_0 = arith.constant 0 : index
    %c0_1 = arith.constant 0 : index
    %4 = vector.load %arg2[%c0, %3, %c0_0, %c0_1] : memref<1x18x18x8xbf16, #tpu.memory_space<vmem>>, vector<1x16x16x8xbf16>
    %5 = vector.shape_cast %4 : vector<1x16x16x8xbf16> to vector<16x16x8xbf16>
    %c0_i32_2 = arith.constant 0 : i32
    %6 = arith.addi %1, %c0_i32_2 : i32
    %c0_3 = arith.constant 0 : index
    %7 = arith.index_cast %6 : i32 to index
    %c1 = arith.constant 1 : index
    %c0_4 = arith.constant 0 : index
    %8 = vector.load %arg2[%c0_3, %7, %c1, %c0_4] : memref<1x18x18x8xbf16, #tpu.memory_space<vmem>>, vector<1x16x16x8xbf16>
    %9 = vector.shape_cast %8 : vector<1x16x16x8xbf16> to vector<16x16x8xbf16>
    %c0_i32_5 = arith.constant 0 : i32
    %10 = arith.addi %1, %c0_i32_5 : i32
    %c0_6 = arith.constant 0 : index
    %11 = arith.index_cast %10 : i32 to index
    %c2 = arith.constant 2 : index
    %c0_7 = arith.constant 0 : index
    %12 = vector.load %arg2[%c0_6, %11, %c2, %c0_7] : memref<1x18x18x8xbf16, #tpu.memory_space<vmem>>, vector<1x16x16x8xbf16>
    %13 = vector.shape_cast %12 : vector<1x16x16x8xbf16> to vector<16x16x8xbf16>
    %c1_i32 = arith.constant 1 : i32
    %14 = arith.addi %1, %c1_i32 : i32
    %c0_8 = arith.constant 0 : index
    %15 = arith.index_cast %14 : i32 to index
    %c0_9 = arith.constant 0 : index
    %c0_10 = arith.constant 0 : index
    %16 = vector.load %arg2[%c0_8, %15, %c0_9, %c0_10] : memref<1x18x18x8xbf16, #tpu.memory_space<vmem>>, vector<1x16x16x8xbf16>
    %17 = vector.shape_cast %16 : vector<1x16x16x8xbf16> to vector<16x16x8xbf16>
    %c1_i32_11 = arith.constant 1 : i32
    %18 = arith.addi %1, %c1_i32_11 : i32
    %c0_12 = arith.constant 0 : index
    %19 = arith.index_cast %18 : i32 to index
    %c1_13 = arith.constant 1 : index
    %c0_14 = arith.constant 0 : index
    %20 = vector.load %arg2[%c0_12, %19, %c1_13, %c0_14] : memref<1x18x18x8xbf16, #tpu.memory_space<vmem>>, vector<1x16x16x8xbf16>
    %21 = vector.shape_cast %20 : vector<1x16x16x8xbf16> to vector<16x16x8xbf16>
    %c1_i32_15 = arith.constant 1 : i32
    %22 = arith.addi %1, %c1_i32_15 : i32
    %c0_16 = arith.constant 0 : index
    %23 = arith.index_cast %22 : i32 to index
    %c2_17 = arith.constant 2 : index
    %c0_18 = arith.constant 0 : index
    %24 = vector.load %arg2[%c0_16, %23, %c2_17, %c0_18] : memref<1x18x18x8xbf16, #tpu.memory_space<vmem>>, vector<1x16x16x8xbf16>
    %25 = vector.shape_cast %24 : vector<1x16x16x8xbf16> to vector<16x16x8xbf16>
    %c2_i32 = arith.constant 2 : i32
    %26 = arith.addi %1, %c2_i32 : i32
    %c0_19 = arith.constant 0 : index
    %27 = arith.index_cast %26 : i32 to index
    %c0_20 = arith.constant 0 : index
    %c0_21 = arith.constant 0 : index
    %28 = vector.load %arg2[%c0_19, %27, %c0_20, %c0_21] : memref<1x18x18x8xbf16, #tpu.memory_space<vmem>>, vector<1x16x16x8xbf16>
    %29 = vector.shape_cast %28 : vector<1x16x16x8xbf16> to vector<16x16x8xbf16>
    %c2_i32_22 = arith.constant 2 : i32
    %30 = arith.addi %1, %c2_i32_22 : i32
    %c0_23 = arith.constant 0 : index
    %31 = arith.index_cast %30 : i32 to index
    %c1_24 = arith.constant 1 : index
    %c0_25 = arith.constant 0 : index
    %32 = vector.load %arg2[%c0_23, %31, %c1_24, %c0_25] : memref<1x18x18x8xbf16, #tpu.memory_space<vmem>>, vector<1x16x16x8xbf16>
    %33 = vector.shape_cast %32 : vector<1x16x16x8xbf16> to vector<16x16x8xbf16>
    %c2_i32_26 = arith.constant 2 : i32
    %34 = arith.addi %1, %c2_i32_26 : i32
    %c0_27 = arith.constant 0 : index
    %35 = arith.index_cast %34 : i32 to index
    %c2_28 = arith.constant 2 : index
    %c0_29 = arith.constant 0 : index
    %36 = vector.load %arg2[%c0_27, %35, %c2_28, %c0_29] : memref<1x18x18x8xbf16, #tpu.memory_space<vmem>>, vector<1x16x16x8xbf16>
    %37 = vector.shape_cast %36 : vector<1x16x16x8xbf16> to vector<16x16x8xbf16>
    %38 = tpu.concatenate %5, %9, %13, %17, %21, %25, %29, %33, %37 in 2 : vector<16x16x8xbf16>, vector<16x16x8xbf16>, vector<16x16x8xbf16>, vector<16x16x8xbf16>, vector<16x16x8xbf16>, vector<16x16x8xbf16>, vector<16x16x8xbf16>, vector<16x16x8xbf16>, vector<16x16x8xbf16> -> vector<16x16x72xbf16>
    %39 = vector.shape_cast %38 : vector<16x16x72xbf16> to vector<256x72xbf16>
    %c0_30 = arith.constant 0 : index
    %c0_31 = arith.constant 0 : index
    %40 = vector.load %arg4[%c0_30, %c0_31] : memref<72x8xbf16, #tpu.memory_space<vmem>>, vector<72x8xbf16>
    %cst = arith.constant dense<0.000000e+00> : vector<256x8xf32>
    %41 = tpu.matmul %39, %40, %cst {dimension_numbers = #tpu.dot_dimension_numbers<[1], [0], [0], [1], [0, 0, 1, 1], [], []>} : vector<256x72xbf16>, vector<72x8xbf16>, vector<256x8xf32> -> vector<256x8xf32>
    %c0_32 = arith.constant 0 : index
    %c0_33 = arith.constant 0 : index
    %42 = vector.load %arg5[%c0_32, %c0_33] : memref<1x8xf32, #tpu.memory_space<vmem>>, vector<1x8xf32>
    %43 = vector.broadcast %42 : vector<1x8xf32> to vector<256x8xf32>
    %44 = arith.addf %41, %43 : vector<256x8xf32>
    %cst_34 = arith.constant 0.000000e+00 : f32
    %45 = vector.broadcast %cst_34 : f32 to vector<256x8xf32>
    %46 = arith.maximumf %44, %45 : vector<256x8xf32>
    %47 = arith.truncf %46 : vector<256x8xf32> to vector<256x8xbf16>
    %c0_35 = arith.constant 0 : index
    %c0_36 = arith.constant 0 : index
    %48 = vector.load %arg6[%c0_35, %c0_36] : memref<8x32xbf16, #tpu.memory_space<vmem>>, vector<8x32xbf16>
    %cst_37 = arith.constant dense<0.000000e+00> : vector<256x32xf32>
    %49 = tpu.matmul %47, %48, %cst_37 {dimension_numbers = #tpu.dot_dimension_numbers<[1], [0], [0], [1], [0, 0, 1, 1], [], []>} : vector<256x8xbf16>, vector<8x32xbf16>, vector<256x32xf32> -> vector<256x32xf32>
    %c0_38 = arith.constant 0 : index
    %c0_39 = arith.constant 0 : index
    %50 = vector.load %arg7[%c0_38, %c0_39] : memref<1x32xf32, #tpu.memory_space<vmem>>, vector<1x32xf32>
    %51 = vector.broadcast %50 : vector<1x32xf32> to vector<256x32xf32>
    %52 = arith.addf %49, %51 : vector<256x32xf32>
    %cst_40 = arith.constant 0.000000e+00 : f32
    %53 = vector.broadcast %cst_40 : f32 to vector<256x32xf32>
    %54 = arith.maximumf %52, %53 : vector<256x32xf32>
    %c0_41 = arith.constant 0 : index
    %c0_42 = arith.constant 0 : index
    %c0_43 = arith.constant 0 : index
    %c0_44 = arith.constant 0 : index
    %55 = vector.load %arg3[%c0_41, %c0_42, %c0_43, %c0_44] : memref<1x16x16x32xf32, #tpu.memory_space<vmem>>, vector<1x16x16x32xf32>
    %56 = vector.shape_cast %55 : vector<1x16x16x32xf32> to vector<16x16x32xf32>
    %57 = vector.shape_cast %56 : vector<16x16x32xf32> to vector<256x32xf32>
    %58 = arith.addf %54, %57 : vector<256x32xf32>
    %cst_45 = arith.constant 0.000000e+00 : f32
    %59 = vector.broadcast %cst_45 : f32 to vector<256x32xf32>
    %60 = arith.maximumf %58, %59 : vector<256x32xf32>
    %61 = vector.shape_cast %60 : vector<256x32xf32> to vector<16x16x32xf32>
    %c0_46 = arith.constant 0 : index
    %c0_47 = arith.constant 0 : index
    %c0_48 = arith.constant 0 : index
    %c0_49 = arith.constant 0 : index
    %62 = vector.load %arg8[%c0_46, %c0_47, %c0_48, %c0_49] : memref<1x16x16x32xf32, #tpu.memory_space<vmem>>, vector<1x16x16x32xf32>
    %63 = vector.shape_cast %62 : vector<1x16x16x32xf32> to vector<16x16x32xf32>
    %64 = vector.shape_cast %61 : vector<16x16x32xf32> to vector<1x16x16x32xf32>
    tpu.vector_store %arg8[%c0_46, %c0_47, %c0_48, %c0_49], %64 {strides = array<i32>} : memref<1x16x16x32xf32, #tpu.memory_space<vmem>>, vector<1x16x16x32xf32>,
    return
  }
  func.func @transform_0(%arg0: i32, %arg1: i32) -> (i32, i32, i32, i32) {
    %c0_i32 = arith.constant 0 : i32
    %c0_i32_0 = arith.constant 0 : i32
    %c0_i32_1 = arith.constant 0 : i32
    %c0_i32_2 = arith.constant 0 : i32
    return %arg0, %c0_i32, %c0_i32_0, %c0_i32_1 : i32, i32, i32, i32
  }
  func.func @transform_1(%arg0: i32, %arg1: i32) -> (i32, i32, i32, i32) {
    %c0_i32 = arith.constant 0 : i32
    %c0_i32_0 = arith.constant 0 : i32
    %c0_i32_1 = arith.constant 0 : i32
    return %arg0, %arg1, %c0_i32, %c0_i32_0 : i32, i32, i32, i32
  }
  func.func @transform_2(%arg0: i32, %arg1: i32) -> (i32, i32) {
    %c0_i32 = arith.constant 0 : i32
    %c0_i32_0 = arith.constant 0 : i32
    %c0_i32_1 = arith.constant 0 : i32
    return %c0_i32, %c0_i32_0 : i32, i32
  }
  func.func @transform_3(%arg0: i32, %arg1: i32) -> (i32, i32) {
    %c0_i32 = arith.constant 0 : i32
    %c0_i32_0 = arith.constant 0 : i32
    %c0_i32_1 = arith.constant 0 : i32
    return %c0_i32, %c0_i32_0 : i32, i32
  }
  func.func @transform_4(%arg0: i32, %arg1: i32) -> (i32, i32) {
    %c0_i32 = arith.constant 0 : i32
    %c0_i32_0 = arith.constant 0 : i32
    %c0_i32_1 = arith.constant 0 : i32
    return %c0_i32, %c0_i32_0 : i32, i32
  }
  func.func @transform_5(%arg0: i32, %arg1: i32) -> (i32, i32) {
    %c0_i32 = arith.constant 0 : i32
    %c0_i32_0 = arith.constant 0 : i32
    %c0_i32_1 = arith.constant 0 : i32
    return %c0_i32, %c0_i32_0 : i32, i32
  }
  func.func @transform_6(%arg0: i32, %arg1: i32) -> (i32, i32, i32, i32) {
    %c0_i32 = arith.constant 0 : i32
    %c0_i32_0 = arith.constant 0 : i32
    %c0_i32_1 = arith.constant 0 : i32
    return %arg0, %arg1, %c0_i32, %c0_i32_0 : i32, i32, i32, i32
  }
}

</mosaic_0001>

<llo_original>
// kernel: _lambda_.2
$region0: #{_lambda_.2}
  #allocation0 [shape = 'u32[]', space=smem, size = 0x4, offset = 0x4, fixed_abs, tag = 'smem constant byte address 0x4 - core index']
  #allocation1 [shape = 'u32[144,128]{1,0:T(1,128)}', space=vmem, size = 0x12000, scoped, tag = 'internal scratch']
  %s0 = inlined_call_operand.vmem [shape: bf16[512,32], index: 0, kind: input, shape index: {}]
  %s1 = inlined_call_operand.vmem [shape: bf16[32,8], index: 1, kind: input, shape index: {}]
  %s2 = inlined_call_operand.vmem [shape: f32[1,8], index: 2, kind: input, shape index: {}]
  %s3 = inlined_call_operand.vmem [shape: bf16[512,8], index: 3, kind: output, shape index: {}]
  %s4 = sld [smem:[#allocation0]]
  $region45: #{_lambda_.2} parent=0
    _
  %s6 = ssub.s32 1, %s4
  %s7 = scalar_select 0, %s6, %s4
  loop: start=0, step=1, limit=4
  $region2: #{_lambda_.2} parent=0 // loop_pre_header
    _
  $region3: #{_lambda_.2} parent=0 // loop_header
    %s9 = sphi 0, %s13
    %p10 = scmp.ge.s32.totalorder %s9, 4
    %s19 = sphi 0, %s21
    %s22 = sphi 0, %s19
    %s23 = sphi 0, %s22
    %s39 = sphi 0, %s23
    %s43 = sphi 0, %s43
    %s45 = sphi 0, %s43
    %s46 = sphi 0, %s45
    %s60 = sphi 0, %s46
    %s64 = sphi 0, %s64
    %s66 = sphi 0, %s64
    %s67 = sphi 0, %s66
    %s81 = sphi 0, %s67
    %s87 = sphi 0, %s89
    %s90 = sphi 0, %s87
    %s91 = sphi 0, %s90
    %s107 = sphi 0, %s91
  $region4: #{_lambda_.2} parent=0 // loop_header_branch
    %12 = sbr.rel (%p10) target = $region8
  $region5: #{_lambda_.2} parent=0 // loop_body
    %s14 = ssub.s32 %s9, 1
    %s15 = ssub.s32 %s9, 2
    %s16 = sadd.s32 %s9, 1
    %s17 = ssub.s32 %s9, %s16
    %p18 = scmp.eq.s32.totalorder %s17, 0
    %s20 = sadd.s32 %s19, 1
    %s21 = scalar_select %p18, %s19, %s20
    %p24 = pneg %p18
    %p25 = scmp.eq.s32.totalorder %s9, 1
    %p26 = por %p24, %p25
    %p27 = scmp.ne.s32.totalorder %s19, %s22
    %p28 = scmp.eq.s32.totalorder %s9, 0
    %p29 = por %p27, %p28
    %p30 = scmp.ne.s32.totalorder %s19, %s22
    %p31 = scmp.eq.s32.totalorder %s14, 1
    %p32 = por %p30, %p31
    %p33 = scmp.ne.s32.totalorder %s22, %s23
    %p34 = scmp.eq.s32.totalorder %s14, 0
    %p35 = por %p33, %p34
    %p36 = scmp.ne.s32.totalorder %s22, %s23
    %p37 = scmp.eq.s32.totalorder %s15, 1
    %p38 = por %p36, %p37
    %p40 = scmp.ne.s32.totalorder %s23, %s39
    %p41 = scmp.eq.s32.totalorder %s15, 0
    %p42 = por %p40, %p41
    %s44 = sadd.s32 %s43, 1
    %p47 = scmp.eq.s32.totalorder %s9, 1
    %p48 = scmp.ne.s32.totalorder %s43, %s45
    %p49 = scmp.eq.s32.totalorder %s9, 0
    %p50 = por %p48, %p49
    %p51 = scmp.ne.s32.totalorder %s43, %s45
    %p52 = scmp.eq.s32.totalorder %s14, 1
    %p53 = por %p51, %p52
    %p54 = scmp.ne.s32.totalorder %s45, %s46
    %p55 = scmp.eq.s32.totalorder %s14, 0
    %p56 = por %p54, %p55
    %p57 = scmp.ne.s32.totalorder %s45, %s46
    %p58 = scmp.eq.s32.totalorder %s15, 1
    %p59 = por %p57, %p58
    %p61 = scmp.ne.s32.totalorder %s46, %s60
    %p62 = scmp.eq.s32.totalorder %s15, 0
    %p63 = por %p61, %p62
    %s65 = sadd.s32 %s64, 1
    %p68 = scmp.eq.s32.totalorder %s9, 1
    %p69 = scmp.ne.s32.totalorder %s64, %s66
    %p70 = scmp.eq.s32.totalorder %s9, 0
    %p71 = por %p69, %p70
    %p72 = scmp.ne.s32.totalorder %s64, %s66
    %p73 = scmp.eq.s32.totalorder %s14, 1
    %p74 = por %p72, %p73
    %p75 = scmp.ne.s32.totalorder %s66, %s67
    %p76 = scmp.eq.s32.totalorder %s14, 0
    %p77 = por %p75, %p76
    %p78 = scmp.ne.s32.totalorder %s66, %s67
    %p79 = scmp.eq.s32.totalorder %s15, 1
    %p80 = por %p78, %p79
    %p82 = scmp.ne.s32.totalorder %s67, %s81
    %p83 = scmp.eq.s32.totalorder %s15, 0
    %p84 = por %p82, %p83
    %s85 = ssub.s32 %s9, %s16
    %p86 = scmp.eq.s32.totalorder %s85, 0
    %s88 = sadd.s32 %s87, 1
    %s89 = scalar_select %p86, %s87, %s88
    %p92 = pneg %p86
    %p93 = scmp.eq.s32.totalorder %s9, 1
    %p94 = por %p92, %p93
    %p95 = scmp.ne.s32.totalorder %s87, %s90
    %p96 = scmp.eq.s32.totalorder %s9, 0
    %p97 = por %p95, %p96
    %p98 = scmp.ne.s32.totalorder %s87, %s90
    %p99 = scmp.eq.s32.totalorder %s14, 1
    %p100 = por %p98, %p99
    %p101 = scmp.ne.s32.totalorder %s90, %s91
    %p102 = scmp.eq.s32.totalorder %s14, 0
    %p103 = por %p101, %p102
    %p104 = scmp.ne.s32.totalorder %s90, %s91
    %p105 = scmp.eq.s32.totalorder %s15, 1
    %p106 = por %p104, %p105
    %p108 = scmp.ne.s32.totalorder %s91, %s107
    %p109 = scmp.eq.s32.totalorder %s15, 0
    %p110 = por %p108, %p109
    %p111 = scmp.le.s32.totalorder 1, %s9
    %p112 = scmp.lt.s32.totalorder %s9, 3
    %p113 = pnand %p111, %p112
    %p114 = pneg %p113
    // Predicated region
    $region9: #{_lambda_.2} parent=5 // pred_check
      _
    $region10: #{_lambda_.2} parent=5 // pred_check_branch
      %116 = sbr.rel (%p113) target = $region12
    $region11: #{_lambda_.2} parent=5 // pred_region
      %s117 = ssub.s32 %s9, 1
      // Predicated region
      $region13: #{_lambda_.2} parent=11 // pred_check
        %p118 = pneg %p56
      $region14: #{_lambda_.2} parent=11 // pred_check_branch
        %120 = sbr.rel (%p118) target = $region16
      $region15: #{_lambda_.2} parent=11 // pred_region
        _
      $region16: #{_lambda_.2} parent=11 // pred_fallthru
        _
      // Predicated region
      $region17: #{_lambda_.2} parent=11 // pred_check
        %p121 = pneg %p77
      $region18: #{_lambda_.2} parent=11 // pred_check_branch
        %123 = sbr.rel (%p121) target = $region20
      $region19: #{_lambda_.2} parent=11 // pred_region
        _
      $region20: #{_lambda_.2} parent=11 // pred_fallthru
        _
    $region12: #{_lambda_.2} parent=5 // pred_fallthru
      _
    %p124 = scmp.lt.s32.totalorder %s9, 2
    // Predicated region
    $region21: #{_lambda_.2} parent=5 // pred_check
      %p125 = pneg %p124
    $region22: #{_lambda_.2} parent=5 // pred_check_branch
      %127 = sbr.rel (%p125) target = $region24
    $region23: #{_lambda_.2} parent=5 // pred_region
      // Predicated region
      $region25: #{_lambda_.2} parent=23 // pred_check
        %p128 = pneg %p29
      $region26: #{_lambda_.2} parent=23 // pred_check_branch
        %130 = sbr.rel (%p128) target = $region28
      $region27: #{_lambda_.2} parent=23 // pred_region
        %s131 = smul.u32 32, %s9
        %p132 = scmp.lt.s32.totalorder %s131, 63
        %s133 = scalar_select %p132, %s131, 63
        %s134 = smul.addr %s133, 4
        %s135 = scalar_lea.vmem %s0, %s134
        %s136 = smul.u32 32, %s9
      $region28: #{_lambda_.2} parent=23 // pred_fallthru
        _
    $region24: #{_lambda_.2} parent=5 // pred_fallthru
      _
    %p137 = scmp.le.s32.totalorder 1, %s9
    %p138 = scmp.lt.s32.totalorder %s9, 3
    %p139 = pnand %p137, %p138
    %p140 = pneg %p139
    // Predicated region
    $region29: #{_lambda_.2} parent=5 // pred_check
      _
    $region30: #{_lambda_.2} parent=5 // pred_check_branch
      %142 = sbr.rel (%p139) target = $region32
    $region31: #{_lambda_.2} parent=5 // pred_region
      %s143 = ssub.s32 %s9, 1
      %s144 = smul.u32 32, %s14
      %p145 = scmp.lt.s32.totalorder %s144, 63
      %s146 = scalar_select %p145, %s144, 63
      %s147 = smul.addr %s146, 4
      %s148 = scalar_lea.vmem %s0, %s147
      %p149 = pneg %p35
      %p150 = pneg %p32
      %p151 = pneg %p56
      %p152 = pneg %p53
      %p153 = pneg %p77
      %p154 = pneg %p74
      %p155 = pneg %p103
      %p156 = pneg %p100
      %s157 = smul.u32 32, %s14
      %p158 = scmp.lt.s32.totalorder %s157, 63
      %s159 = scalar_select %p158, %s157, 63
      %s160 = smul.addr %s159, 4
      %s161 = scalar_lea.vmem %s3, %s160
      %s162 = smul.u32 32, %s14
      %p163 = scmp.lt.s32.totalorder %s162, 63
      %s164 = scalar_select %p163, %s162, 63
      %s165 = smul.addr %s164, 4
      %s166 = scalar_lea.vmem %s0, %s165
      %s167 = smul.u32 32, %s14
      %s168 = smul.u32 32, %s14
      %p169 = scmp.lt.s32.totalorder %s168, 63
      %s170 = scalar_select %p169, %s168, 63
      %s171 = smul.addr %s170, 4
      %s172 = scalar_lea.vmem %s3, %s171
      %s173 = smul.u32 32, %s14
      %v175 = vld [vmem:[%s166] sm:$0xf]
      %v176 = vld [vmem:[%s166 + $0x4] sm:$0xf]
      %v177 = vld [vmem:[%s166 + $0x8] sm:$0xf]
      %v178 = vld [vmem:[%s166 + $0xc] sm:$0xf]
      %v179 = vld [vmem:[%s166 + $0x10] sm:$0xf]
      %v180 = vld [vmem:[%s166 + $0x14] sm:$0xf]
      %v181 = vld [vmem:[%s166 + $0x18] sm:$0xf]
      %v182 = vld [vmem:[%s166 + $0x1c] sm:$0xf]
      %v183 = vld [vmem:[%s166 + $0x20] sm:$0xf]
      %v184 = vld [vmem:[%s166 + $0x24] sm:$0xf]
      %v185 = vld [vmem:[%s166 + $0x28] sm:$0xf]
      %v186 = vld [vmem:[%s166 + $0x2c] sm:$0xf]
      %v187 = vld [vmem:[%s166 + $0x30] sm:$0xf]
      %v188 = vld [vmem:[%s166 + $0x34] sm:$0xf]
      %v189 = vld [vmem:[%s166 + $0x38] sm:$0xf]
      %v190 = vld [vmem:[%s166 + $0x3c] sm:$0xf]
      %v191 = vld [vmem:[%s166 + $0x40] sm:$0xf]
      %v192 = vld [vmem:[%s166 + $0x44] sm:$0xf]
      %v193 = vld [vmem:[%s166 + $0x48] sm:$0xf]
      %v194 = vld [vmem:[%s166 + $0x4c] sm:$0xf]
      %v195 = vld [vmem:[%s166 + $0x50] sm:$0xf]
      %v196 = vld [vmem:[%s166 + $0x54] sm:$0xf]
      %v197 = vld [vmem:[%s166 + $0x58] sm:$0xf]
      %v198 = vld [vmem:[%s166 + $0x5c] sm:$0xf]
      %v199 = vld [vmem:[%s166 + $0x60] sm:$0xf]
      %v200 = vld [vmem:[%s166 + $0x64] sm:$0xf]
      %v201 = vld [vmem:[%s166 + $0x68] sm:$0xf]
      %v202 = vld [vmem:[%s166 + $0x6c] sm:$0xf]
      %v203 = vld [vmem:[%s166 + $0x70] sm:$0xf]
      %v204 = vld [vmem:[%s166 + $0x74] sm:$0xf]
      %v205 = vld [vmem:[%s166 + $0x78] sm:$0xf]
      %v206 = vld [vmem:[%s166 + $0x7c] sm:$0xf]
      %v207 = vld [vmem:[%s1] sm:$0xf]
      %v208 = vld [vmem:[%s1 + $0x4] sm:$0xf]
      %v209 = vld [vmem:[%s1 + $0x8] sm:$0xf]
      %v210 = vld [vmem:[%s1 + $0xc] sm:$0xf]
      %v211 = vld [vmem:[%s2] sm:$0x1]
      %v213 = vlaneseq
      %v214 = vshrl.u32 %v213, 7
      %v215 = vsub.s32 0, %v214
      %v216 = vrot.slane %v211, %v215
      %v250 = vunpack.c.l.b16 %v175
      %v251 = vunpack.c.l.b16 %v176
      %v252 = vunpack.c.l.b16 %v177
      %v253 = vunpack.c.l.b16 %v178
      %v254 = vunpack.c.l.b16 %v179
      %v255 = vunpack.c.l.b16 %v180
      %v256 = vunpack.c.l.b16 %v181
      %v257 = vunpack.c.l.b16 %v182
      %v258 = vunpack.c.l.b16 %v183
      %v259 = vunpack.c.l.b16 %v184
      %v260 = vunpack.c.l.b16 %v185
      %v261 = vunpack.c.l.b16 %v186
      %v262 = vunpack.c.l.b16 %v187
      %v263 = vunpack.c.l.b16 %v188
      %v264 = vunpack.c.l.b16 %v189
      %v265 = vunpack.c.l.b16 %v190
      %v266 = vunpack.c.l.b16 %v191
      %v267 = vunpack.c.l.b16 %v192
      %v268 = vunpack.c.l.b16 %v193
      %v269 = vunpack.c.l.b16 %v194
      %v270 = vunpack.c.l.b16 %v195
      %v271 = vunpack.c.l.b16 %v196
      %v272 = vunpack.c.l.b16 %v197
      %v273 = vunpack.c.l.b16 %v198
      %v274 = vunpack.c.l.b16 %v199
      %v275 = vunpack.c.l.b16 %v200
      %v276 = vunpack.c.l.b16 %v201
      %v277 = vunpack.c.l.b16 %v202
      %v278 = vunpack.c.l.b16 %v203
      %v279 = vunpack.c.l.b16 %v204
      %v280 = vunpack.c.l.b16 %v205
      %v281 = vunpack.c.l.b16 %v206
      %v282 = vpack.c.b16 %v251, %v250
      %v283 = vpack.c.b16 %v253, %v252
      %v284 = vpack.c.b16 %v255, %v254
      %v285 = vpack.c.b16 %v257, %v256
      %v286 = vpack.c.b16 %v259, %v258
      %v287 = vpack.c.b16 %v261, %v260
      %v288 = vpack.c.b16 %v263, %v262
      %v289 = vpack.c.b16 %v265, %v264
      %v290 = vpack.c.b16 %v267, %v266
      %v291 = vpack.c.b16 %v269, %v268
      %v292 = vpack.c.b16 %v271, %v270
      %v293 = vpack.c.b16 %v273, %v272
      %v294 = vpack.c.b16 %v275, %v274
      %v295 = vpack.c.b16 %v277, %v276
      %v296 = vpack.c.b16 %v279, %v278
      %v297 = vpack.c.b16 %v281, %v280
      %v302 = vunpack.c.l.b16 %v207
      %v303 = vunpack.c.l.b16 %v208
      %v304 = vunpack.c.l.b16 %v209
      %v305 = vunpack.c.l.b16 %v210
      %v306 = vpack.c.b16 %v303, %v302
      %v307 = vpack.c.b16 %v305, %v304
      %vm310 = vcmask 261120
      %v312 = vsel %vm310, %v282, 0
      %v315 = vsel %vm310, %v283, 0
      %v318 = vsel %vm310, %v284, 0
      %v321 = vsel %vm310, %v285, 0
      %v324 = vsel %vm310, %v286, 0
      %v327 = vsel %vm310, %v287, 0
      %v330 = vsel %vm310, %v288, 0
      %v333 = vsel %vm310, %v289, 0
      %v336 = vsel %vm310, %v290, 0
      %v339 = vsel %vm310, %v291, 0
      %v342 = vsel %vm310, %v292, 0
      %v345 = vsel %vm310, %v293, 0
      %v348 = vsel %vm310, %v294, 0
      %v351 = vsel %vm310, %v295, 0
      %v354 = vsel %vm310, %v296, 0
      %v357 = vsel %vm310, %v297, 0
      %359 = vmatprep.subr.bf16.mxu0 0
      %360 = vmatpush1.bf16.msra.mxu0 %v306
      %361 = vmatprep.subr.bf16.mxu0 0
      %362 = vmatpush1.bf16.msra.mxu0 %v307
      %363 = vmatprep.subr.bf16.mxu0 0
      %364 = vmatpush1.bf16.msra.mxu0 0
      %365 = vmatprep.subr.bf16.mxu0 0
      %366 = vmatpush1.bf16.msra.mxu0 0
      %367 = vmatprep.subr.bf16.mxu0 0
      %368 = vmatpush1.bf16.msra.mxu0 0
      %369 = vmatprep.subr.bf16.mxu0 0
      %370 = vmatpush1.bf16.msra.mxu0 0
      %371 = vmatprep.subr.bf16.mxu0 0
      %372 = vmatpush1.bf16.msra.mxu0 0
      %373 = vmatprep.subr.bf16.mxu0 0
      %374 = vmatpush1.bf16.msra.mxu0 0
      %375 = vmatprep.subr.bf16.mxu0 0
      %376 = vmatpush1.bf16.msra.mxu0 0
      %377 = vmatprep.subr.bf16.mxu0 0
      %378 = vmatpush1.bf16.msra.mxu0 0
      %379 = vmatprep.subr.bf16.mxu0 0
      %380 = vmatpush1.bf16.msra.mxu0 0
      %381 = vmatprep.subr.bf16.mxu0 0
      %382 = vmatpush1.bf16.msra.mxu0 0
      %383 = vmatprep.subr.bf16.mxu0 0
      %384 = vmatpush1.bf16.msra.mxu0 0
      %385 = vmatprep.subr.bf16.mxu0 0
      %386 = vmatpush1.bf16.msra.mxu0 0
      %387 = vmatprep.subr.bf16.mxu0 0
      %388 = vmatpush1.bf16.msra.mxu0 0
      %389 = vmatprep.subr.bf16.mxu0 0
      %390 = vmatpush1.bf16.msra.mxu0 0
      %391 = vmatprep.mubr.bf16.mxu0 0
      %392 = vmatmul.mubr.bf16.gmra.mrb[0].mxu0 %v312
      %v393 = vpop.f32.mrb[0].mxu0
      %v394 = vadd.f32 %v216, %v393
      %v395 = vpop.f32.mrb[0].mxu0
      %v396 = vpop.f32.mrb[0].mxu0
      %v397 = vadd.f32 %v216, %v396
      %v398 = vpop.f32.mrb[0].mxu0
      %399 = vmatprep.mubr.bf16.mxu0 0
      %400 = vmatmul.mubr.bf16.gmra.mrb[0].mxu0 %v315
      %v401 = vpop.f32.mrb[0].mxu0
      %v402 = vadd.f32 %v216, %v401
      %v403 = vpop.f32.mrb[0].mxu0
      %v404 = vpop.f32.mrb[0].mxu0
      %v405 = vadd.f32 %v216, %v404
      %v406 = vpop.f32.mrb[0].mxu0
      %407 = vmatprep.mubr.bf16.mxu0 0
      %408 = vmatmul.mubr.bf16.gmra.mrb[0].mxu0 %v318
      %v409 = vpop.f32.mrb[0].mxu0
      %v410 = vadd.f32 %v216, %v409
      %v411 = vpop.f32.mrb[0].mxu0
      %v412 = vpop.f32.mrb[0].mxu0
      %v413 = vadd.f32 %v216, %v412
      %v414 = vpop.f32.mrb[0].mxu0
      %415 = vmatprep.mubr.bf16.mxu0 0
      %416 = vmatmul.mubr.bf16.gmra.mrb[0].mxu0 %v321
      %v417 = vpop.f32.mrb[0].mxu0
      %v418 = vadd.f32 %v216, %v417
      %v419 = vpop.f32.mrb[0].mxu0
      %v420 = vpop.f32.mrb[0].mxu0
      %v421 = vadd.f32 %v216, %v420
      %v422 = vpop.f32.mrb[0].mxu0
      %423 = vmatprep.mubr.bf16.mxu0 0
      %424 = vmatmul.mubr.bf16.gmra.mrb[0].mxu0 %v324
      %v425 = vpop.f32.mrb[0].mxu0
      %v426 = vadd.f32 %v216, %v425
      %v427 = vpop.f32.mrb[0].mxu0
      %v428 = vpop.f32.mrb[0].mxu0
      %v429 = vadd.f32 %v216, %v428
      %v430 = vpop.f32.mrb[0].mxu0
      %431 = vmatprep.mubr.bf16.mxu0 0
      %432 = vmatmul.mubr.bf16.gmra.mrb[0].mxu0 %v327
      %v433 = vpop.f32.mrb[0].mxu0
      %v434 = vadd.f32 %v216, %v433
      %v435 = vpop.f32.mrb[0].mxu0
      %v436 = vpop.f32.mrb[0].mxu0
      %v437 = vadd.f32 %v216, %v436
      %v438 = vpop.f32.mrb[0].mxu0
      %439 = vmatprep.mubr.bf16.mxu0 0
      %440 = vmatmul.mubr.bf16.gmra.mrb[0].mxu0 %v330
      %v441 = vpop.f32.mrb[0].mxu0
      %v442 = vadd.f32 %v216, %v441
      %v443 = vpop.f32.mrb[0].mxu0
      %v444 = vpop.f32.mrb[0].mxu0
      %v445 = vadd.f32 %v216, %v444
      %v446 = vpop.f32.mrb[0].mxu0
      %447 = vmatprep.mubr.bf16.mxu0 0
      %448 = vmatmul.mubr.bf16.gmra.mrb[0].mxu0 %v333
      %v449 = vpop.f32.mrb[0].mxu0
      %v450 = vadd.f32 %v216, %v449
      %v451 = vpop.f32.mrb[0].mxu0
      %v452 = vpop.f32.mrb[0].mxu0
      %v453 = vadd.f32 %v216, %v452
      %v454 = vpop.f32.mrb[0].mxu0
      %455 = vmatprep.mubr.bf16.mxu0 0
      %456 = vmatmul.mubr.bf16.gmra.mrb[0].mxu0 %v336
      %v457 = vpop.f32.mrb[0].mxu0
      %v458 = vadd.f32 %v216, %v457
      %v459 = vpop.f32.mrb[0].mxu0
      %v460 = vpop.f32.mrb[0].mxu0
      %v461 = vadd.f32 %v216, %v460
      %v462 = vpop.f32.mrb[0].mxu0
      %463 = vmatprep.mubr.bf16.mxu0 0
      %464 = vmatmul.mubr.bf16.gmra.mrb[0].mxu0 %v339
      %v465 = vpop.f32.mrb[0].mxu0
      %v466 = vadd.f32 %v216, %v465
      %v467 = vpop.f32.mrb[0].mxu0
      %v468 = vpop.f32.mrb[0].mxu0
      %v469 = vadd.f32 %v216, %v468
      %v470 = vpop.f32.mrb[0].mxu0
      %471 = vmatprep.mubr.bf16.mxu0 0
      %472 = vmatmul.mubr.bf16.gmra.mrb[0].mxu0 %v342
      %v473 = vpop.f32.mrb[0].mxu0
      %v474 = vadd.f32 %v216, %v473
      %v475 = vpop.f32.mrb[0].mxu0
      %v476 = vpop.f32.mrb[0].mxu0
      %v477 = vadd.f32 %v216, %v476
      %v478 = vpop.f32.mrb[0].mxu0
      %479 = vmatprep.mubr.bf16.mxu0 0
      %480 = vmatmul.mubr.bf16.gmra.mrb[0].mxu0 %v345
      %v481 = vpop.f32.mrb[0].mxu0
      %v482 = vadd.f32 %v216, %v481
      %v483 = vpop.f32.mrb[0].mxu0
      %v484 = vpop.f32.mrb[0].mxu0
      %v485 = vadd.f32 %v216, %v484
      %v486 = vpop.f32.mrb[0].mxu0
      %487 = vmatprep.mubr.bf16.mxu0 0
      %488 = vmatmul.mubr.bf16.gmra.mrb[0].mxu0 %v348
      %v489 = vpop.f32.mrb[0].mxu0
      %v490 = vadd.f32 %v216, %v489
      %v491 = vpop.f32.mrb[0].mxu0
      %v492 = vpop.f32.mrb[0].mxu0
      %v493 = vadd.f32 %v216, %v492
      %v494 = vpop.f32.mrb[0].mxu0
      %495 = vmatprep.mubr.bf16.mxu0 0
      %496 = vmatmul.mubr.bf16.gmra.mrb[0].mxu0 %v351
      %v497 = vpop.f32.mrb[0].mxu0
      %v498 = vadd.f32 %v216, %v497
      %v499 = vpop.f32.mrb[0].mxu0
      %v500 = vpop.f32.mrb[0].mxu0
      %v501 = vadd.f32 %v216, %v500
      %v502 = vpop.f32.mrb[0].mxu0
      %503 = vmatprep.mubr.bf16.mxu0 0
      %504 = vmatmul.mubr.bf16.gmra.mrb[0].mxu0 %v354
      %v505 = vpop.f32.mrb[0].mxu0
      %v506 = vadd.f32 %v216, %v505
      %v507 = vpop.f32.mrb[0].mxu0
      %v508 = vpop.f32.mrb[0].mxu0
      %v509 = vadd.f32 %v216, %v508
      %v510 = vpop.f32.mrb[0].mxu0
      %511 = vmatprep.mubr.bf16.mxu0 0
      %512 = vmatmul.mubr.bf16.gmra.mrb[0].mxu0 %v357
      %v513 = vpop.f32.mrb[0].mxu0
      %v514 = vadd.f32 %v216, %v513
      %v515 = vpop.f32.mrb[0].mxu0
      %v516 = vpop.f32.mrb[0].mxu0
      %v517 = vadd.f32 %v216, %v516
      %v518 = vpop.f32.mrb[0].mxu0
      %519 = vdwg.mxu0
      %v520 = vmax.f32 %v394, 0.0
      %v521 = vmax.f32 %v397, 0.0
      %v522 = vmax.f32 %v402, 0.0
      %v523 = vmax.f32 %v405, 0.0
      %v524 = vmax.f32 %v410, 0.0
      %v525 = vmax.f32 %v413, 0.0
      %v526 = vmax.f32 %v418, 0.0
      %v527 = vmax.f32 %v421, 0.0
      %v528 = vmax.f32 %v426, 0.0
      %v529 = vmax.f32 %v429, 0.0
      %v530 = vmax.f32 %v434, 0.0
      %v531 = vmax.f32 %v437, 0.0
      %v532 = vmax.f32 %v442, 0.0
      %v533 = vmax.f32 %v445, 0.0
      %v534 = vmax.f32 %v450, 0.0
      %v535 = vmax.f32 %v453, 0.0
      %v536 = vmax.f32 %v458, 0.0
      %v537 = vmax.f32 %v461, 0.0
      %v538 = vmax.f32 %v466, 0.0
      %v539 = vmax.f32 %v469, 0.0
      %v540 = vmax.f32 %v474, 0.0
      %v541 = vmax.f32 %v477, 0.0
      %v542 = vmax.f32 %v482, 0.0
      %v543 = vmax.f32 %v485, 0.0
      %v544 = vmax.f32 %v490, 0.0
      %v545 = vmax.f32 %v493, 0.0
      %v546 = vmax.f32 %v498, 0.0
      %v547 = vmax.f32 %v501, 0.0
      %v548 = vmax.f32 %v506, 0.0
      %v549 = vmax.f32 %v509, 0.0
      %v550 = vmax.f32 %v514, 0.0
      %v551 = vmax.f32 %v517, 0.0
      %v552 = vpack.c.bf16 %v521, %v520
      %v553 = vpack.c.bf16 %v523, %v522
      %v554 = vpack.c.bf16 %v525, %v524
      %v555 = vpack.c.bf16 %v527, %v526
      %v556 = vpack.c.bf16 %v529, %v528
      %v557 = vpack.c.bf16 %v531, %v530
      %v558 = vpack.c.bf16 %v533, %v532
      %v559 = vpack.c.bf16 %v535, %v534
      %v560 = vpack.c.bf16 %v537, %v536
      %v561 = vpack.c.bf16 %v539, %v538
      %v562 = vpack.c.bf16 %v541, %v540
      %v563 = vpack.c.bf16 %v543, %v542
      %v564 = vpack.c.bf16 %v545, %v544
      %v565 = vpack.c.bf16 %v547, %v546
      %v566 = vpack.c.bf16 %v549, %v548
      %v567 = vpack.c.bf16 %v551, %v550
      %v584 = vunpack.c.l.b16 %v552
      %v585 = vunpack.c.h.b16 %v552
      %v586 = vunpack.c.l.b16 %v553
      %v587 = vunpack.c.h.b16 %v553
      %v588 = vunpack.c.l.b16 %v554
      %v589 = vunpack.c.h.b16 %v554
      %v590 = vunpack.c.l.b16 %v555
      %v591 = vunpack.c.h.b16 %v555
      %v592 = vunpack.c.l.b16 %v556
      %v593 = vunpack.c.h.b16 %v556
      %v594 = vunpack.c.l.b16 %v557
      %v595 = vunpack.c.h.b16 %v557
      %v596 = vunpack.c.l.b16 %v558
      %v597 = vunpack.c.h.b16 %v558
      %v598 = vunpack.c.l.b16 %v559
      %v599 = vunpack.c.h.b16 %v559
      %v600 = vunpack.c.l.b16 %v560
      %v601 = vunpack.c.h.b16 %v560
      %v602 = vunpack.c.l.b16 %v561
      %v603 = vunpack.c.h.b16 %v561
      %v604 = vunpack.c.l.b16 %v562
      %v605 = vunpack.c.h.b16 %v562
      %v606 = vunpack.c.l.b16 %v563
      %v607 = vunpack.c.h.b16 %v563
      %v608 = vunpack.c.l.b16 %v564
      %v609 = vunpack.c.h.b16 %v564
      %v610 = vunpack.c.l.b16 %v565
      %v611 = vunpack.c.h.b16 %v565
      %v612 = vunpack.c.l.b16 %v566
      %v613 = vunpack.c.h.b16 %v566
      %v614 = vunpack.c.l.b16 %v567
      %v615 = vunpack.c.h.b16 %v567
      %v616 = vpack.c.b16 %v584, %v584
      %v617 = vpack.c.b16 %v585, %v585
      %v618 = vpack.c.b16 %v586, %v586
      %v619 = vpack.c.b16 %v587, %v587
      %v620 = vpack.c.b16 %v588, %v588
      %v621 = vpack.c.b16 %v589, %v589
      %v622 = vpack.c.b16 %v590, %v590
      %v623 = vpack.c.b16 %v591, %v591
      %v624 = vpack.c.b16 %v592, %v592
      %v625 = vpack.c.b16 %v593, %v593
      %v626 = vpack.c.b16 %v594, %v594
      %v627 = vpack.c.b16 %v595, %v595
      %v628 = vpack.c.b16 %v596, %v596
      %v629 = vpack.c.b16 %v597, %v597
      %v630 = vpack.c.b16 %v598, %v598
      %v631 = vpack.c.b16 %v599, %v599
      %v632 = vpack.c.b16 %v600, %v600
      %v633 = vpack.c.b16 %v601, %v601
      %v634 = vpack.c.b16 %v602, %v602
      %v635 = vpack.c.b16 %v603, %v603
      %v636 = vpack.c.b16 %v604, %v604
      %v637 = vpack.c.b16 %v605, %v605
      %v638 = vpack.c.b16 %v606, %v606
      %v639 = vpack.c.b16 %v607, %v607
      %v640 = vpack.c.b16 %v608, %v608
      %v641 = vpack.c.b16 %v609, %v609
      %v642 = vpack.c.b16 %v610, %v610
      %v643 = vpack.c.b16 %v611, %v611
      %v644 = vpack.c.b16 %v612, %v612
      %v645 = vpack.c.b16 %v613, %v613
      %v646 = vpack.c.b16 %v614, %v614
      %v647 = vpack.c.b16 %v615, %v615
      %vm680 = vcmask 60416
      %681 = vst.msk [vmem:[%s172] sm:$0xf] %vm680, %v616
      %682 = vst.msk [vmem:[%s172 + $0x4] sm:$0xf] %vm680, %v617
      %683 = vst.msk [vmem:[%s172 + $0x8] sm:$0xf] %vm680, %v618
      %684 = vst.msk [vmem:[%s172 + $0xc] sm:$0xf] %vm680, %v619
      %685 = vst.msk [vmem:[%s172 + $0x10] sm:$0xf] %vm680, %v620
      %686 = vst.msk [vmem:[%s172 + $0x14] sm:$0xf] %vm680, %v621
      %687 = vst.msk [vmem:[%s172 + $0x18] sm:$0xf] %vm680, %v622
      %688 = vst.msk [vmem:[%s172 + $0x1c] sm:$0xf] %vm680, %v623
      %689 = vst.msk [vmem:[%s172 + $0x20] sm:$0xf] %vm680, %v624
      %690 = vst.msk [vmem:[%s172 + $0x24] sm:$0xf] %vm680, %v625
      %691 = vst.msk [vmem:[%s172 + $0x28] sm:$0xf] %vm680, %v626
      %692 = vst.msk [vmem:[%s172 + $0x2c] sm:$0xf] %vm680, %v627
      %693 = vst.msk [vmem:[%s172 + $0x30] sm:$0xf] %vm680, %v628
      %694 = vst.msk [vmem:[%s172 + $0x34] sm:$0xf] %vm680, %v629
      %695 = vst.msk [vmem:[%s172 + $0x38] sm:$0xf] %vm680, %v630
      %696 = vst.msk [vmem:[%s172 + $0x3c] sm:$0xf] %vm680, %v631
      %697 = vst.msk [vmem:[%s172 + $0x40] sm:$0xf] %vm680, %v632
      %698 = vst.msk [vmem:[%s172 + $0x44] sm:$0xf] %vm680, %v633
      %699 = vst.msk [vmem:[%s172 + $0x48] sm:$0xf] %vm680, %v634
      %700 = vst.msk [vmem:[%s172 + $0x4c] sm:$0xf] %vm680, %v635
      %701 = vst.msk [vmem:[%s172 + $0x50] sm:$0xf] %vm680, %v636
      %702 = vst.msk [vmem:[%s172 + $0x54] sm:$0xf] %vm680, %v637
      %703 = vst.msk [vmem:[%s172 + $0x58] sm:$0xf] %vm680, %v638
      %704 = vst.msk [vmem:[%s172 + $0x5c] sm:$0xf] %vm680, %v639
      %705 = vst.msk [vmem:[%s172 + $0x60] sm:$0xf] %vm680, %v640
      %706 = vst.msk [vmem:[%s172 + $0x64] sm:$0xf] %vm680, %v641
      %707 = vst.msk [vmem:[%s172 + $0x68] sm:$0xf] %vm680, %v642
      %708 = vst.msk [vmem:[%s172 + $0x6c] sm:$0xf] %vm680, %v643
      %709 = vst.msk [vmem:[%s172 + $0x70] sm:$0xf] %vm680, %v644
      %710 = vst.msk [vmem:[%s172 + $0x74] sm:$0xf] %vm680, %v645
      %711 = vst.msk [vmem:[%s172 + $0x78] sm:$0xf] %vm680, %v646
      %712 = vst.msk [vmem:[%s172 + $0x7c] sm:$0xf] %vm680, %v647
      %s713 = smul.u32 32, %s14
      %p714 = scmp.lt.s32.totalorder %s713, 63
      %s715 = scalar_select %p714, %s713, 63
      %s716 = smul.addr %s715, 4
      %s717 = scalar_lea.vmem %s3, %s716
      // Predicated region
      $region33: #{_lambda_.2} parent=31 // pred_check
        %p718 = pneg %p100
      $region34: #{_lambda_.2} parent=31 // pred_check_branch
        %720 = sbr.rel (%p718) target = $region36
      $region35: #{_lambda_.2} parent=31 // pred_region
        %s721 = smul.u32 32, %s14
      $region36: #{_lambda_.2} parent=31 // pred_fallthru
        _
    $region32: #{_lambda_.2} parent=5 // pred_fallthru
      _
    %p722 = scmp.le.s32.totalorder 2, %s9
    // Predicated region
    $region37: #{_lambda_.2} parent=5 // pred_check
      %p723 = pneg %p722
    $region38: #{_lambda_.2} parent=5 // pred_check_branch
      %725 = sbr.rel (%p723) target = $region40
    $region39: #{_lambda_.2} parent=5 // pred_region
      %s726 = ssub.s32 %s9, 2
      // Predicated region
      $region41: #{_lambda_.2} parent=39 // pred_check
        %p727 = pneg %p106
      $region42: #{_lambda_.2} parent=39 // pred_check_branch
        %729 = sbr.rel (%p727) target = $region44
      $region43: #{_lambda_.2} parent=39 // pred_region
        %s730 = smul.u32 32, %s15
        %p731 = scmp.lt.s32.totalorder %s730, 63
        %s732 = scalar_select %p731, %s730, 63
        %s733 = smul.addr %s732, 4
        %s734 = scalar_lea.vmem %s3, %s733
      $region44: #{_lambda_.2} parent=39 // pred_fallthru
        _
    $region40: #{_lambda_.2} parent=5 // pred_fallthru
      _
  $region6: #{_lambda_.2} parent=0 // loop_footer
    %s13 = sadd.s32 1, %s9
  $region7: #{_lambda_.2} parent=0 // loop_footer_branch
    %8 = sbr.rel target = $region3
  $region8: #{_lambda_.2} parent=0 // loop_exit
    _

// kernel: _lambda_.3
$region0: #{_lambda_.3}
  #allocation0 [shape = 'u32[]', space=smem, size = 0x4, offset = 0x4, fixed_abs, tag = 'smem constant byte address 0x4 - core index']
  #allocation1 [shape = 'u32[144,128]{1,0:T(1,128)}', space=vmem, size = 0x12000, scoped, tag = 'internal scratch']
  %s0 = inlined_call_operand.vmem [shape: bf16[2,18,18,8], index: 0, kind: input, shape index: {}]
  %s1 = inlined_call_operand.vmem [shape: f32[2,16,16,32], index: 1, kind: input, shape index: {}]
  %s2 = inlined_call_operand.vmem [shape: bf16[72,8], index: 2, kind: input, shape index: {}]
  %s3 = inlined_call_operand.vmem [shape: f32[1,8], index: 3, kind: input, shape index: {}]
  %s4 = inlined_call_operand.vmem [shape: bf16[8,32], index: 4, kind: input, shape index: {}]
  %s5 = inlined_call_operand.vmem [shape: f32[1,32], index: 5, kind: input, shape index: {}]
  %s6 = inlined_call_operand.hbm [shape: f32[2,16,16,32], index: 6, kind: output, shape index: {}]
  %s7 = sld [smem:[#allocation0]]
  $region57: #{_lambda_.3} parent=0
    _
  %s9 = ssub.s32 1, %s7
  %s10 = scalar_select 0, %s9, %s7
  $region1: #{_lambda_.3} parent=0
    #allocation2 [shape = 'u8[262144]{0}', space=vmem, size = 0x40000, scoped, tag = 'output window, operand 0']
    #allocation3 [shape = 's32[2]{0}', space=sflag, size = 0x8, scoped, tag = 'scoped memory for _lambda_.3']
    %11 = vsyncpa [#allocation3], 0
    %s12 = scalar_lea.sflag [#allocation3], 1
    %13 = vsyncpa %s12, 0
    loop: start=0, step=1, limit=4
    $region2: #{_lambda_.3} parent=1 // loop_pre_header
      _
    $region3: #{_lambda_.3} parent=1 // loop_header
      %s15 = sphi 0, %s19
      %p16 = scmp.ge.s32.totalorder %s15, 4
      %s22 = sphi 0, %s34
      %s23 = sphi 0, %s30
      %s24 = sphi 0, %s22
      %s25 = sphi 0, %s23
      %s26 = sphi 0, %s24
      %s27 = sphi 0, %s25
      %s37 = sphi 0, %s39
      %s40 = sphi 0, %s37
      %s41 = sphi 0, %s40
      %s57 = sphi 0, %s41
      %s65 = sphi 0, %s67
      %s68 = sphi 0, %s65
      %s69 = sphi 0, %s68
      %s85 = sphi 0, %s69
      %s89 = sphi 0, %s89
      %s91 = sphi 0, %s89
      %s92 = sphi 0, %s91
      %s106 = sphi 0, %s92
      %s110 = sphi 0, %s110
      %s112 = sphi 0, %s110
      %s113 = sphi 0, %s112
      %s127 = sphi 0, %s113
      %s131 = sphi 0, %s131
      %s133 = sphi 0, %s131
      %s134 = sphi 0, %s133
      %s148 = sphi 0, %s134
      %s152 = sphi 0, %s152
      %s154 = sphi 0, %s152
      %s155 = sphi 0, %s154
      %s169 = sphi 0, %s155
      %s177 = sphi 0, %s179
      %s180 = sphi 0, %s177
      %s181 = sphi 0, %s180
      %s197 = sphi 0, %s181
    $region4: #{_lambda_.3} parent=1 // loop_header_branch
      %18 = sbr.rel (%p16) target = $region8
    $region5: #{_lambda_.3} parent=1 // loop_body
      %s20 = ssub.s32 %s15, 1
      %s21 = ssub.s32 %s15, 2
      %s28 = sadd.s32 1, %s23
      %p29 = scmp.ge.s32.totalorder %s28, 1
      %s30 = scalar_select %p29, 0, %s28
      %s31 = sadd.s32 1, %s22
      %s32 = scalar_select %p29, %s31, %s22
      %p33 = scmp.ge.s32.totalorder %s32, 2
      %s34 = scalar_select %p33, 0, %s32
      %s35 = ssub.s32 %s22, %s34
      %p36 = scmp.eq.s32.totalorder %s35, 0
      %s38 = sadd.s32 %s37, 1
      %s39 = scalar_select %p36, %s37, %s38
      %p42 = pneg %p36
      %p43 = scmp.eq.s32.totalorder %s15, 1
      %p44 = por %p42, %p43
      %p45 = scmp.ne.s32.totalorder %s37, %s40
      %p46 = scmp.eq.s32.totalorder %s15, 0
      %p47 = por %p45, %p46
      %p48 = scmp.ne.s32.totalorder %s37, %s40
      %p49 = scmp.eq.s32.totalorder %s20, 1
      %p50 = por %p48, %p49
      %p51 = scmp.ne.s32.totalorder %s40, %s41
      %p52 = scmp.eq.s32.totalorder %s20, 0
      %p53 = por %p51, %p52
      %p54 = scmp.ne.s32.totalorder %s40, %s41
      %p55 = scmp.eq.s32.totalorder %s21, 1
      %p56 = por %p54, %p55
      %p58 = scmp.ne.s32.totalorder %s41, %s57
      %p59 = scmp.eq.s32.totalorder %s21, 0
      %p60 = por %p58, %p59
      %s61 = ssub.s32 %s22, %s34
      %s62 = ssub.s32 %s23, %s30
      %s63 = sor.u32 %s61, %s62
      %p64 = scmp.eq.s32.totalorder %s63, 0
      %s66 = sadd.s32 %s65, 1
      %s67 = scalar_select %p64, %s65, %s66
      %p70 = pneg %p64
      %p71 = scmp.eq.s32.totalorder %s15, 1
      %p72 = por %p70, %p71
      %p73 = scmp.ne.s32.totalorder %s65, %s68
      %p74 = scmp.eq.s32.totalorder %s15, 0
      %p75 = por %p73, %p74
      %p76 = scmp.ne.s32.totalorder %s65, %s68
      %p77 = scmp.eq.s32.totalorder %s20, 1
      %p78 = por %p76, %p77
      %p79 = scmp.ne.s32.totalorder %s68, %s69
      %p80 = scmp.eq.s32.totalorder %s20, 0
      %p81 = por %p79, %p80
      %p82 = scmp.ne.s32.totalorder %s68, %s69
      %p83 = scmp.eq.s32.totalorder %s21, 1
      %p84 = por %p82, %p83
      %p86 = scmp.ne.s32.totalorder %s69, %s85
      %p87 = scmp.eq.s32.totalorder %s21, 0
      %p88 = por %p86, %p87
      %s90 = sadd.s32 %s89, 1
      %p93 = scmp.eq.s32.totalorder %s15, 1
      %p94 = scmp.ne.s32.totalorder %s89, %s91
      %p95 = scmp.eq.s32.totalorder %s15, 0
      %p96 = por %p94, %p95
      %p97 = scmp.ne.s32.totalorder %s89, %s91
      %p98 = scmp.eq.s32.totalorder %s20, 1
      %p99 = por %p97, %p98
      %p100 = scmp.ne.s32.totalorder %s91, %s92
      %p101 = scmp.eq.s32.totalorder %s20, 0
      %p102 = por %p100, %p101
      %p103 = scmp.ne.s32.totalorder %s91, %s92
      %p104 = scmp.eq.s32.totalorder %s21, 1
      %p105 = por %p103, %p104
      %p107 = scmp.ne.s32.totalorder %s92, %s106
      %p108 = scmp.eq.s32.totalorder %s21, 0
      %p109 = por %p107, %p108
      %s111 = sadd.s32 %s110, 1
      %p114 = scmp.eq.s32.totalorder %s15, 1
      %p115 = scmp.ne.s32.totalorder %s110, %s112
      %p116 = scmp.eq.s32.totalorder %s15, 0
      %p117 = por %p115, %p116
      %p118 = scmp.ne.s32.totalorder %s110, %s112
      %p119 = scmp.eq.s32.totalorder %s20, 1
      %p120 = por %p118, %p119
      %p121 = scmp.ne.s32.totalorder %s112, %s113
      %p122 = scmp.eq.s32.totalorder %s20, 0
      %p123 = por %p121, %p122
      %p124 = scmp.ne.s32.totalorder %s112, %s113
      %p125 = scmp.eq.s32.totalorder %s21, 1
      %p126 = por %p124, %p125
      %p128 = scmp.ne.s32.totalorder %s113, %s127
      %p129 = scmp.eq.s32.totalorder %s21, 0
      %p130 = por %p128, %p129
      %s132 = sadd.s32 %s131, 1
      %p135 = scmp.eq.s32.totalorder %s15, 1
      %p136 = scmp.ne.s32.totalorder %s131, %s133
      %p137 = scmp.eq.s32.totalorder %s15, 0
      %p138 = por %p136, %p137
      %p139 = scmp.ne.s32.totalorder %s131, %s133
      %p140 = scmp.eq.s32.totalorder %s20, 1
      %p141 = por %p139, %p140
      %p142 = scmp.ne.s32.totalorder %s133, %s134
      %p143 = scmp.eq.s32.totalorder %s20, 0
      %p144 = por %p142, %p143
      %p145 = scmp.ne.s32.totalorder %s133, %s134
      %p146 = scmp.eq.s32.totalorder %s21, 1
      %p147 = por %p145, %p146
      %p149 = scmp.ne.s32.totalorder %s134, %s148
      %p150 = scmp.eq.s32.totalorder %s21, 0
      %p151 = por %p149, %p150
      %s153 = sadd.s32 %s152, 1
      %p156 = scmp.eq.s32.totalorder %s15, 1
      %p157 = scmp.ne.s32.totalorder %s152, %s154
      %p158 = scmp.eq.s32.totalorder %s15, 0
      %p159 = por %p157, %p158
      %p160 = scmp.ne.s32.totalorder %s152, %s154
      %p161 = scmp.eq.s32.totalorder %s20, 1
      %p162 = por %p160, %p161
      %p163 = scmp.ne.s32.totalorder %s154, %s155
      %p164 = scmp.eq.s32.totalorder %s20, 0
      %p165 = por %p163, %p164
      %p166 = scmp.ne.s32.totalorder %s154, %s155
      %p167 = scmp.eq.s32.totalorder %s21, 1
      %p168 = por %p166, %p167
      %p170 = scmp.ne.s32.totalorder %s155, %s169
      %p171 = scmp.eq.s32.totalorder %s21, 0
      %p172 = por %p170, %p171
      %s173 = ssub.s32 %s22, %s34
      %s174 = ssub.s32 %s23, %s30
      %s175 = sor.u32 %s173, %s174
      %p176 = scmp.eq.s32.totalorder %s175, 0
      %s178 = sadd.s32 %s177, 1
      %s179 = scalar_select %p176, %s177, %s178
      %p182 = pneg %p176
      %p183 = scmp.eq.s32.totalorder %s15, 1
      %p184 = por %p182, %p183
      %p185 = scmp.ne.s32.totalorder %s177, %s180
      %p186 = scmp.eq.s32.totalorder %s15, 0
      %p187 = por %p185, %p186
      %p188 = scmp.ne.s32.totalorder %s177, %s180
      %p189 = scmp.eq.s32.totalorder %s20, 1
      %p190 = por %p188, %p189
      %p191 = scmp.ne.s32.totalorder %s180, %s181
      %p192 = scmp.eq.s32.totalorder %s20, 0
      %p193 = por %p191, %p192
      %p194 = scmp.ne.s32.totalorder %s180, %s181
      %p195 = scmp.eq.s32.totalorder %s21, 1
      %p196 = por %p194, %p195
      %p198 = scmp.ne.s32.totalorder %s181, %s197
      %p199 = scmp.eq.s32.totalorder %s21, 0
      %p200 = por %p198, %p199
      %p201 = scmp.le.s32.totalorder 1, %s15
      %p202 = scmp.lt.s32.totalorder %s15, 3
      %p203 = pnand %p201, %p202
      %p204 = pneg %p203
      // Predicated region
      $region9: #{_lambda_.3} parent=5 // pred_check
        _
      $region10: #{_lambda_.3} parent=5 // pred_check_branch
        %206 = sbr.rel (%p203) target = $region12
      $region11: #{_lambda_.3} parent=5 // pred_region
        %s207 = ssub.s32 %s15, 1
        // Predicated region
        $region13: #{_lambda_.3} parent=11 // pred_check
          %p208 = pneg %p102
        $region14: #{_lambda_.3} parent=11 // pred_check_branch
          %210 = sbr.rel (%p208) target = $region16
        $region15: #{_lambda_.3} parent=11 // pred_region
          _
        $region16: #{_lambda_.3} parent=11 // pred_fallthru
          _
        // Predicated region
        $region17: #{_lambda_.3} parent=11 // pred_check
          %p211 = pneg %p123
        $region18: #{_lambda_.3} parent=11 // pred_check_branch
          %213 = sbr.rel (%p211) target = $region20
        $region19: #{_lambda_.3} parent=11 // pred_region
          _
        $region20: #{_lambda_.3} parent=11 // pred_fallthru
          _
        // Predicated region
        $region21: #{_lambda_.3} parent=11 // pred_check
          %p214 = pneg %p144
        $region22: #{_lambda_.3} parent=11 // pred_check_branch
          %216 = sbr.rel (%p214) target = $region24
        $region23: #{_lambda_.3} parent=11 // pred_region
          _
        $region24: #{_lambda_.3} parent=11 // pred_fallthru
          _
        // Predicated region
        $region25: #{_lambda_.3} parent=11 // pred_check
          %p217 = pneg %p165
        $region26: #{_lambda_.3} parent=11 // pred_check_branch
          %219 = sbr.rel (%p217) target = $region28
        $region27: #{_lambda_.3} parent=11 // pred_region
          _
        $region28: #{_lambda_.3} parent=11 // pred_fallthru
          _
      $region12: #{_lambda_.3} parent=5 // pred_fallthru
        _
      %p220 = scmp.lt.s32.totalorder %s15, 2
      // Predicated region
      $region29: #{_lambda_.3} parent=5 // pred_check
        %p221 = pneg %p220
      $region30: #{_lambda_.3} parent=5 // pred_check_branch
        %223 = sbr.rel (%p221) target = $region32
      $region31: #{_lambda_.3} parent=5 // pred_region
        // Predicated region
        $region33: #{_lambda_.3} parent=31 // pred_check
          %p224 = pneg %p47
        $region34: #{_lambda_.3} parent=31 // pred_check_branch
          %226 = sbr.rel (%p224) target = $region36
        $region35: #{_lambda_.3} parent=31 // pred_region
          %p227 = scmp.lt.s32.totalorder %s22, 1
          %s228 = scalar_select %p227, %s22, 1
          %s229 = smul.addr %s228, 54
          %s230 = smul.addr %s229, 4
          %s231 = scalar_lea.vmem %s0, %s230
        $region36: #{_lambda_.3} parent=31 // pred_fallthru
          _
        // Predicated region
        $region37: #{_lambda_.3} parent=31 // pred_check
          %p232 = pneg %p75
        $region38: #{_lambda_.3} parent=31 // pred_check_branch
          %234 = sbr.rel (%p232) target = $region40
        $region39: #{_lambda_.3} parent=31 // pred_region
          %s235 = smul.u32 16, %s23
          %p236 = scmp.lt.s32.totalorder %s22, 1
          %s237 = scalar_select %p236, %s22, 1
          %p238 = scmp.lt.s32.totalorder %s235, 15
          %s239 = scalar_select %p238, %s235, 15
          %s240 = smul.addr %s239, 2
          %s241 = smul.addr %s237, 32
          %s242 = sadd.s32 %s240, %s241
          %s243 = smul.addr %s242, 8
          %s244 = scalar_lea.vmem %s1, %s243
          %s245 = smul.u32 16, %s23
        $region40: #{_lambda_.3} parent=31 // pred_fallthru
          _
      $region32: #{_lambda_.3} parent=5 // pred_fallthru
        _
      %p246 = scmp.le.s32.totalorder 1, %s15
      %p247 = scmp.lt.s32.totalorder %s15, 3
      %p248 = pnand %p246, %p247
      %p249 = pneg %p248
      // Predicated region
      $region41: #{_lambda_.3} parent=5 // pred_check
        _
      $region42: #{_lambda_.3} parent=5 // pred_check_branch
        %251 = sbr.rel (%p248) target = $region44
      $region43: #{_lambda_.3} parent=5 // pred_region
        %s252 = ssub.s32 %s15, 1
        %p253 = scmp.lt.s32.totalorder %s24, 1
        %s254 = scalar_select %p253, %s24, 1
        %s255 = smul.addr %s254, 54
        %s256 = smul.addr %s255, 4
        %s257 = scalar_lea.vmem %s0, %s256
        %p258 = pneg %p53
        %p259 = pneg %p50
        %s260 = smul.u32 16, %s25
        %p261 = scmp.lt.s32.totalorder %s24, 1
        %s262 = scalar_select %p261, %s24, 1
        %p263 = scmp.lt.s32.totalorder %s260, 15
        %s264 = scalar_select %p263, %s260, 15
        %s265 = smul.addr %s264, 2
        %s266 = smul.addr %s262, 32
        %s267 = sadd.s32 %s265, %s266
        %s268 = smul.addr %s267, 8
        %s269 = scalar_lea.vmem %s1, %s268
        %p270 = pneg %p81
        %p271 = pneg %p78
        %p272 = pneg %p102
        %p273 = pneg %p99
        %p274 = pneg %p123
        %p275 = pneg %p120
        %p276 = pneg %p144
        %p277 = pneg %p141
        %p278 = pneg %p165
        %p279 = pneg %p162
        %p280 = pneg %p193
        %p281 = pneg %p190
        %s282 = sand.u32 %s180, 1
        %s283 = scalar_lea.sflag [#allocation3], %s282
        %s284 = sand.u32 %s180, 1
        %s285 = smul.addr %s284, 256
        %s286 = scalar_lea.vmem [#allocation2], %s285
        %p287 = scmp.lt.s32.totalorder %s24, 1
        %s288 = scalar_select %p287, %s24, 1
        %s289 = smul.addr %s288, 54
        %s290 = smul.addr %s289, 4
        %s291 = scalar_lea.vmem %s0, %s290
        %s292 = smul.u32 16, %s25
        %p293 = scmp.lt.s32.totalorder %s24, 1
        %s294 = scalar_select %p293, %s24, 1
        %p295 = scmp.lt.s32.totalorder %s292, 15
        %s296 = scalar_select %p295, %s292, 15
        %s297 = smul.addr %s296, 2
        %s298 = smul.addr %s294, 32
        %s299 = sadd.s32 %s297, %s298
        %s300 = smul.addr %s299, 8
        %s301 = scalar_lea.vmem %s1, %s300
        %s302 = smul.u32 16, %s25
        %s303 = smul.u32 16, %s25
        %s305 = smul.u32 %s25, 16
        %s306 = smul.u32 %s305, 3
        %s307 = smul.addr %s306, 4
        %s308 = scalar_lea.vmem %s291, %s307
        %v309 = vld [vmem:[%s308] sm:$0xf]
        %v310 = vld [vmem:[%s308 + $0x4] sm:$0xf]
        %v311 = vld [vmem:[%s308 + $0xc] sm:$0xf]
        %v312 = vld [vmem:[%s308 + $0x10] sm:$0xf]
        %v313 = vld [vmem:[%s308 + $0x18] sm:$0xf]
        %v314 = vld [vmem:[%s308 + $0x1c] sm:$0xf]
        %v315 = vld [vmem:[%s308 + $0x24] sm:$0xf]
        %v316 = vld [vmem:[%s308 + $0x28] sm:$0xf]
        %v317 = vld [vmem:[%s308 + $0x30] sm:$0xf]
        %v318 = vld [vmem:[%s308 + $0x34] sm:$0xf]
        %v319 = vld [vmem:[%s308 + $0x3c] sm:$0xf]
        %v320 = vld [vmem:[%s308 + $0x40] sm:$0xf]
        %v321 = vld [vmem:[%s308 + $0x48] sm:$0xf]
        %v322 = vld [vmem:[%s308 + $0x4c] sm:$0xf]
        %v323 = vld [vmem:[%s308 + $0x54] sm:$0xf]
        %v324 = vld [vmem:[%s308 + $0x58] sm:$0xf]
        %v325 = vld [vmem:[%s308 + $0x60] sm:$0xf]
        %v326 = vld [vmem:[%s308 + $0x64] sm:$0xf]
        %v327 = vld [vmem:[%s308 + $0x6c] sm:$0xf]
        %v328 = vld [vmem:[%s308 + $0x70] sm:$0xf]
        %v329 = vld [vmem:[%s308 + $0x78] sm:$0xf]
        %v330 = vld [vmem:[%s308 + $0x7c] sm:$0xf]
        %v331 = vld [vmem:[%s308 + $0x84] sm:$0xf]
        %v332 = vld [vmem:[%s308 + $0x88] sm:$0xf]
        %v333 = vld [vmem:[%s308 + $0x90] sm:$0xf]
        %v334 = vld [vmem:[%s308 + $0x94] sm:$0xf]
        %v335 = vld [vmem:[%s308 + $0x9c] sm:$0xf]
        %v336 = vld [vmem:[%s308 + $0xa0] sm:$0xf]
        %v337 = vld [vmem:[%s308 + $0xa8] sm:$0xf]
        %v338 = vld [vmem:[%s308 + $0xac] sm:$0xf]
        %v339 = vld [vmem:[%s308 + $0xb4] sm:$0xf]
        %v340 = vld [vmem:[%s308 + $0xb8] sm:$0xf]
        %v341 = vld [vmem:[%s308 + $0x8] sm:$0x1]
        %v342 = vld [vmem:[%s308 + $0x14] sm:$0x1]
        %v343 = vld [vmem:[%s308 + $0x20] sm:$0x1]
        %v344 = vld [vmem:[%s308 + $0x2c] sm:$0x1]
        %v345 = vld [vmem:[%s308 + $0x38] sm:$0x1]
        %v346 = vld [vmem:[%s308 + $0x44] sm:$0x1]
        %v347 = vld [vmem:[%s308 + $0x50] sm:$0x1]
        %v348 = vld [vmem:[%s308 + $0x5c] sm:$0x1]
        %v349 = vld [vmem:[%s308 + $0x68] sm:$0x1]
        %v350 = vld [vmem:[%s308 + $0x74] sm:$0x1]
        %v351 = vld [vmem:[%s308 + $0x80] sm:$0x1]
        %v352 = vld [vmem:[%s308 + $0x8c] sm:$0x1]
        %v353 = vld [vmem:[%s308 + $0x98] sm:$0x1]
        %v354 = vld [vmem:[%s308 + $0xa4] sm:$0x1]
        %v355 = vld [vmem:[%s308 + $0xb0] sm:$0x1]
        %v356 = vld [vmem:[%s308 + $0xbc] sm:$0x1]
        %v357 = vld [vmem:[%s308] sm:$0xe]
        %v358 = vld [vmem:[%s308 + $0xc] sm:$0xe]
        %v359 = vld [vmem:[%s308 + $0x18] sm:$0xe]
        %v360 = vld [vmem:[%s308 + $0x24] sm:$0xe]
        %v361 = vld [vmem:[%s308 + $0x30] sm:$0xe]
        %v362 = vld [vmem:[%s308 + $0x3c] sm:$0xe]
        %v363 = vld [vmem:[%s308 + $0x48] sm:$0xe]
        %v364 = vld [vmem:[%s308 + $0x54] sm:$0xe]
        %v365 = vld [vmem:[%s308 + $0x60] sm:$0xe]
        %v366 = vld [vmem:[%s308 + $0x6c] sm:$0xe]
        %v367 = vld [vmem:[%s308 + $0x78] sm:$0xe]
        %v368 = vld [vmem:[%s308 + $0x84] sm:$0xe]
        %v369 = vld [vmem:[%s308 + $0x90] sm:$0xe]
        %v370 = vld [vmem:[%s308 + $0x9c] sm:$0xe]
        %v371 = vld [vmem:[%s308 + $0xa8] sm:$0xe]
        %v372 = vld [vmem:[%s308 + $0xb4] sm:$0xe]
        %s373 = sadd.s32 %s305, 1
        %s374 = smul.u32 %s373, 3
        %s375 = smul.addr %s374, 4
        %s376 = scalar_lea.vmem %s291, %s375
        %v377 = vld [vmem:[%s376] sm:$0xf]
        %v378 = vld [vmem:[%s376 + $0x4] sm:$0xf]
        %v379 = vld [vmem:[%s376 + $0xc] sm:$0xf]
        %v380 = vld [vmem:[%s376 + $0x10] sm:$0xf]
        %v381 = vld [vmem:[%s376 + $0x18] sm:$0xf]
        %v382 = vld [vmem:[%s376 + $0x1c] sm:$0xf]
        %v383 = vld [vmem:[%s376 + $0x24] sm:$0xf]
        %v384 = vld [vmem:[%s376 + $0x28] sm:$0xf]
        %v385 = vld [vmem:[%s376 + $0x30] sm:$0xf]
        %v386 = vld [vmem:[%s376 + $0x34] sm:$0xf]
        %v387 = vld [vmem:[%s376 + $0x3c] sm:$0xf]
        %v388 = vld [vmem:[%s376 + $0x40] sm:$0xf]
        %v389 = vld [vmem:[%s376 + $0x48] sm:$0xf]
        %v390 = vld [vmem:[%s376 + $0x4c] sm:$0xf]
        %v391 = vld [vmem:[%s376 + $0x54] sm:$0xf]
        %v392 = vld [vmem:[%s376 + $0x58] sm:$0xf]
        %v393 = vld [vmem:[%s376 + $0x60] sm:$0xf]
        %v394 = vld [vmem:[%s376 + $0x64] sm:$0xf]
        %v395 = vld [vmem:[%s376 + $0x6c] sm:$0xf]
        %v396 = vld [vmem:[%s376 + $0x70] sm:$0xf]
        %v397 = vld [vmem:[%s376 + $0x78] sm:$0xf]
        %v398 = vld [vmem:[%s376 + $0x7c] sm:$0xf]
        %v399 = vld [vmem:[%s376 + $0x84] sm:$0xf]
        %v400 = vld [vmem:[%s376 + $0x88] sm:$0xf]
        %v401 = vld [vmem:[%s376 + $0x90] sm:$0xf]
        %v402 = vld [vmem:[%s376 + $0x94] sm:$0xf]
        %v403 = vld [vmem:[%s376 + $0x9c] sm:$0xf]
        %v404 = vld [vmem:[%s376 + $0xa0] sm:$0xf]
        %v405 = vld [vmem:[%s376 + $0xa8] sm:$0xf]
        %v406 = vld [vmem:[%s376 + $0xac] sm:$0xf]
        %v407 = vld [vmem:[%s376 + $0xb4] sm:$0xf]
        %v408 = vld [vmem:[%s376 + $0xb8] sm:$0xf]
        %v409 = vld [vmem:[%s376 + $0x8] sm:$0x1]
        %v410 = vld [vmem:[%s376 + $0x14] sm:$0x1]
        %v411 = vld [vmem:[%s376 + $0x20] sm:$0x1]
        %v412 = vld [vmem:[%s376 + $0x2c] sm:$0x1]
        %v413 = vld [vmem:[%s376 + $0x38] sm:$0x1]
        %v414 = vld [vmem:[%s376 + $0x44] sm:$0x1]
        %v415 = vld [vmem:[%s376 + $0x50] sm:$0x1]
        %v416 = vld [vmem:[%s376 + $0x5c] sm:$0x1]
        %v417 = vld [vmem:[%s376 + $0x68] sm:$0x1]
        %v418 = vld [vmem:[%s376 + $0x74] sm:$0x1]
        %v419 = vld [vmem:[%s376 + $0x80] sm:$0x1]
        %v420 = vld [vmem:[%s376 + $0x8c] sm:$0x1]
        %v421 = vld [vmem:[%s376 + $0x98] sm:$0x1]
        %v422 = vld [vmem:[%s376 + $0xa4] sm:$0x1]
        %v423 = vld [vmem:[%s376 + $0xb0] sm:$0x1]
        %v424 = vld [vmem:[%s376 + $0xbc] sm:$0x1]
        %v425 = vld [vmem:[%s376] sm:$0xe]
        %v426 = vld [vmem:[%s376 + $0xc] sm:$0xe]
        %v427 = vld [vmem:[%s376 + $0x18] sm:$0xe]
        %v428 = vld [vmem:[%s376 + $0x24] sm:$0xe]
        %v429 = vld [vmem:[%s376 + $0x30] sm:$0xe]
        %v430 = vld [vmem:[%s376 + $0x3c] sm:$0xe]
        %v431 = vld [vmem:[%s376 + $0x48] sm:$0xe]
        %v432 = vld [vmem:[%s376 + $0x54] sm:$0xe]
        %v433 = vld [vmem:[%s376 + $0x60] sm:$0xe]
        %v434 = vld [vmem:[%s376 + $0x6c] sm:$0xe]
        %v435 = vld [vmem:[%s376 + $0x78] sm:$0xe]
        %v436 = vld [vmem:[%s376 + $0x84] sm:$0xe]
        %v437 = vld [vmem:[%s376 + $0x90] sm:$0xe]
        %v438 = vld [vmem:[%s376 + $0x9c] sm:$0xe]
        %v439 = vld [vmem:[%s376 + $0xa8] sm:$0xe]
        %v440 = vld [vmem:[%s376 + $0xb4] sm:$0xe]
        %s441 = sadd.s32 %s305, 2
        %s442 = smul.u32 %s441, 3
        %s443 = smul.addr %s442, 4
        %s444 = scalar_lea.vmem %s291, %s443
        %v445 = vld [vmem:[%s444] sm:$0xf]
        %v446 = vld [vmem:[%s444 + $0x4] sm:$0xf]
        %v447 = vld [vmem:[%s444 + $0xc] sm:$0xf]
        %v448 = vld [vmem:[%s444 + $0x10] sm:$0xf]
        %v449 = vld [vmem:[%s444 + $0x18] sm:$0xf]
        %v450 = vld [vmem:[%s444 + $0x1c] sm:$0xf]
        %v451 = vld [vmem:[%s444 + $0x24] sm:$0xf]
        %v452 = vld [vmem:[%s444 + $0x28] sm:$0xf]
        %v453 = vld [vmem:[%s444 + $0x30] sm:$0xf]
        %v454 = vld [vmem:[%s444 + $0x34] sm:$0xf]
        %v455 = vld [vmem:[%s444 + $0x3c] sm:$0xf]
        %v456 = vld [vmem:[%s444 + $0x40] sm:$0xf]
        %v457 = vld [vmem:[%s444 + $0x48] sm:$0xf]
        %v458 = vld [vmem:[%s444 + $0x4c] sm:$0xf]
        %v459 = vld [vmem:[%s444 + $0x54] sm:$0xf]
        %v460 = vld [vmem:[%s444 + $0x58] sm:$0xf]
        %v461 = vld [vmem:[%s444 + $0x60] sm:$0xf]
        %v462 = vld [vmem:[%s444 + $0x64] sm:$0xf]
        %v463 = vld [vmem:[%s444 + $0x6c] sm:$0xf]
        %v464 = vld [vmem:[%s444 + $0x70] sm:$0xf]
        %v465 = vld [vmem:[%s444 + $0x78] sm:$0xf]
        %v466 = vld [vmem:[%s444 + $0x7c] sm:$0xf]
        %v467 = vld [vmem:[%s444 + $0x84] sm:$0xf]
        %v468 = vld [vmem:[%s444 + $0x88] sm:$0xf]
        %v469 = vld [vmem:[%s444 + $0x90] sm:$0xf]
        %v470 = vld [vmem:[%s444 + $0x94] sm:$0xf]
        %v471 = vld [vmem:[%s444 + $0x9c] sm:$0xf]
        %v472 = vld [vmem:[%s444 + $0xa0] sm:$0xf]
        %v473 = vld [vmem:[%s444 + $0xa8] sm:$0xf]
        %v474 = vld [vmem:[%s444 + $0xac] sm:$0xf]
        %v475 = vld [vmem:[%s444 + $0xb4] sm:$0xf]
        %v476 = vld [vmem:[%s444 + $0xb8] sm:$0xf]
        %v477 = vld [vmem:[%s444 + $0x8] sm:$0x1]
        %v478 = vld [vmem:[%s444 + $0x14] sm:$0x1]
        %v479 = vld [vmem:[%s444 + $0x20] sm:$0x1]
        %v480 = vld [vmem:[%s444 + $0x2c] sm:$0x1]
        %v481 = vld [vmem:[%s444 + $0x38] sm:$0x1]
        %v482 = vld [vmem:[%s444 + $0x44] sm:$0x1]
        %v483 = vld [vmem:[%s444 + $0x50] sm:$0x1]
        %v484 = vld [vmem:[%s444 + $0x5c] sm:$0x1]
        %v485 = vld [vmem:[%s444 + $0x68] sm:$0x1]
        %v486 = vld [vmem:[%s444 + $0x74] sm:$0x1]
        %v487 = vld [vmem:[%s444 + $0x80] sm:$0x1]
        %v488 = vld [vmem:[%s444 + $0x8c] sm:$0x1]
        %v489 = vld [vmem:[%s444 + $0x98] sm:$0x1]
        %v490 = vld [vmem:[%s444 + $0xa4] sm:$0x1]
        %v491 = vld [vmem:[%s444 + $0xb0] sm:$0x1]
        %v492 = vld [vmem:[%s444 + $0xbc] sm:$0x1]
        %v493 = vld [vmem:[%s444] sm:$0xe]
        %v494 = vld [vmem:[%s444 + $0xc] sm:$0xe]
        %v495 = vld [vmem:[%s444 + $0x18] sm:$0xe]
        %v496 = vld [vmem:[%s444 + $0x24] sm:$0xe]
        %v497 = vld [vmem:[%s444 + $0x30] sm:$0xe]
        %v498 = vld [vmem:[%s444 + $0x3c] sm:$0xe]
        %v499 = vld [vmem:[%s444 + $0x48] sm:$0xe]
        %v500 = vld [vmem:[%s444 + $0x54] sm:$0xe]
        %v501 = vld [vmem:[%s444 + $0x60] sm:$0xe]
        %v502 = vld [vmem:[%s444 + $0x6c] sm:$0xe]
        %v503 = vld [vmem:[%s444 + $0x78] sm:$0xe]
        %v504 = vld [vmem:[%s444 + $0x84] sm:$0xe]
        %v505 = vld [vmem:[%s444 + $0x90] sm:$0xe]
        %v506 = vld [vmem:[%s444 + $0x9c] sm:$0xe]
        %v507 = vld [vmem:[%s444 + $0xa8] sm:$0xe]
        %v508 = vld [vmem:[%s444 + $0xb4] sm:$0xe]
        %v541 = vunpack.c.l.b16 %v309
        %v542 = vunpack.c.l.b16 %v310
        %v543 = vunpack.c.l.b16 %v311
        %v544 = vunpack.c.l.b16 %v312
        %v545 = vunpack.c.l.b16 %v313
        %v546 = vunpack.c.l.b16 %v314
        %v547 = vunpack.c.l.b16 %v315
        %v548 = vunpack.c.l.b16 %v316
        %v549 = vunpack.c.l.b16 %v317
        %v550 = vunpack.c.l.b16 %v318
        %v551 = vunpack.c.l.b16 %v319
        %v552 = vunpack.c.l.b16 %v320
        %v553 = vunpack.c.l.b16 %v321
        %v554 = vunpack.c.l.b16 %v322
        %v555 = vunpack.c.l.b16 %v323
        %v556 = vunpack.c.l.b16 %v324
        %v557 = vunpack.c.l.b16 %v325
        %v558 = vunpack.c.l.b16 %v326
        %v559 = vunpack.c.l.b16 %v327
        %v560 = vunpack.c.l.b16 %v328
        %v561 = vunpack.c.l.b16 %v329
        %v562 = vunpack.c.l.b16 %v330
        %v563 = vunpack.c.l.b16 %v331
        %v564 = vunpack.c.l.b16 %v332
        %v565 = vunpack.c.l.b16 %v333
        %v566 = vunpack.c.l.b16 %v334
        %v567 = vunpack.c.l.b16 %v335
        %v568 = vunpack.c.l.b16 %v336
        %v569 = vunpack.c.l.b16 %v337
        %v570 = vunpack.c.l.b16 %v338
        %v571 = vunpack.c.l.b16 %v339
        %v572 = vunpack.c.l.b16 %v340
        %v573 = vpack.c.b16 %v542, %v541
        %v574 = vpack.c.b16 %v544, %v543
        %v575 = vpack.c.b16 %v546, %v545
        %v576 = vpack.c.b16 %v548, %v547
        %v577 = vpack.c.b16 %v550, %v549
        %v578 = vpack.c.b16 %v552, %v551
        %v579 = vpack.c.b16 %v554, %v553
        %v580 = vpack.c.b16 %v556, %v555
        %v581 = vpack.c.b16 %v558, %v557
        %v582 = vpack.c.b16 %v560, %v559
        %v583 = vpack.c.b16 %v562, %v561
        %v584 = vpack.c.b16 %v564, %v563
        %v585 = vpack.c.b16 %v566, %v565
        %v586 = vpack.c.b16 %v568, %v567
        %v587 = vpack.c.b16 %v570, %v569
        %v588 = vpack.c.b16 %v572, %v571
        %v605 = vunpack.c.l.b16 %v341
        %v606 = vunpack.c.l.b16 %v342
        %v607 = vunpack.c.l.b16 %v343
        %v608 = vunpack.c.l.b16 %v344
        %v609 = vunpack.c.l.b16 %v345
        %v610 = vunpack.c.l.b16 %v346
        %v611 = vunpack.c.l.b16 %v347
        %v612 = vunpack.c.l.b16 %v348
        %v613 = vunpack.c.l.b16 %v349
        %v614 = vunpack.c.l.b16 %v350
        %v615 = vunpack.c.l.b16 %v351
        %v616 = vunpack.c.l.b16 %v352
        %v617 = vunpack.c.l.b16 %v353
        %v618 = vunpack.c.l.b16 %v354
        %v619 = vunpack.c.l.b16 %v355
        %v620 = vunpack.c.l.b16 %v356
        %v621 = vpack.c.b16 %v605, %v605
        %v622 = vpack.c.b16 %v606, %v606
        %v623 = vpack.c.b16 %v607, %v607
        %v624 = vpack.c.b16 %v608, %v608
        %v625 = vpack.c.b16 %v609, %v609
        %v626 = vpack.c.b16 %v610, %v610
        %v627 = vpack.c.b16 %v611, %v611
        %v628 = vpack.c.b16 %v612, %v612
        %v629 = vpack.c.b16 %v613, %v613
        %v630 = vpack.c.b16 %v614, %v614
        %v631 = vpack.c.b16 %v615, %v615
        %v632 = vpack.c.b16 %v616, %v616
        %v633 = vpack.c.b16 %v617, %v617
        %v634 = vpack.c.b16 %v618, %v618
        %v635 = vpack.c.b16 %v619, %v619
        %v636 = vpack.c.b16 %v620, %v620
        %vm637 = vsmask.f32 7424
        %v639 = vshrl.u32 %v573, 16
        %v641 = vshll.u32 %v573, 16
        %v643 = vrot.slane %v641, 1
        %v644 = vor.u32 %v639, %v643
        %v646 = vshll.u32 %v621, 16
        %v648 = vrot.slane %v646, 1
        %v649 = vsel %vm637, %v644, %v648
        %v651 = vshrl.u32 %v574, 16
        %v653 = vshll.u32 %v574, 16
        %v655 = vrot.slane %v653, 1
        %v656 = vor.u32 %v651, %v655
        %v658 = vshll.u32 %v622, 16
        %v660 = vrot.slane %v658, 1
        %v661 = vsel %vm637, %v656, %v660
        %v663 = vshrl.u32 %v575, 16
        %v665 = vshll.u32 %v575, 16
        %v667 = vrot.slane %v665, 1
        %v668 = vor.u32 %v663, %v667
        %v670 = vshll.u32 %v623, 16
        %v672 = vrot.slane %v670, 1
        %v673 = vsel %vm637, %v668, %v672
        %v675 = vshrl.u32 %v576, 16
        %v677 = vshll.u32 %v576, 16
        %v679 = vrot.slane %v677, 1
        %v680 = vor.u32 %v675, %v679
        %v682 = vshll.u32 %v624, 16
        %v684 = vrot.slane %v682, 1
        %v685 = vsel %vm637, %v680, %v684
        %v687 = vshrl.u32 %v577, 16
        %v689 = vshll.u32 %v577, 16
        %v691 = vrot.slane %v689, 1
        %v692 = vor.u32 %v687, %v691
        %v694 = vshll.u32 %v625, 16
        %v696 = vrot.slane %v694, 1
        %v697 = vsel %vm637, %v692, %v696
        %v699 = vshrl.u32 %v578, 16
        %v701 = vshll.u32 %v578, 16
        %v703 = vrot.slane %v701, 1
        %v704 = vor.u32 %v699, %v703
        %v706 = vshll.u32 %v626, 16
        %v708 = vrot.slane %v706, 1
        %v709 = vsel %vm637, %v704, %v708
        %v711 = vshrl.u32 %v579, 16
        %v713 = vshll.u32 %v579, 16
        %v715 = vrot.slane %v713, 1
        %v716 = vor.u32 %v711, %v715
        %v718 = vshll.u32 %v627, 16
        %v720 = vrot.slane %v718, 1
        %v721 = vsel %vm637, %v716, %v720
        %v723 = vshrl.u32 %v580, 16
        %v725 = vshll.u32 %v580, 16
        %v727 = vrot.slane %v725, 1
        %v728 = vor.u32 %v723, %v727
        %v730 = vshll.u32 %v628, 16
        %v732 = vrot.slane %v730, 1
        %v733 = vsel %vm637, %v728, %v732
        %v735 = vshrl.u32 %v581, 16
        %v737 = vshll.u32 %v581, 16
        %v739 = vrot.slane %v737, 1
        %v740 = vor.u32 %v735, %v739
        %v742 = vshll.u32 %v629, 16
        %v744 = vrot.slane %v742, 1
        %v745 = vsel %vm637, %v740, %v744
        %v747 = vshrl.u32 %v582, 16
        %v749 = vshll.u32 %v582, 16
        %v751 = vrot.slane %v749, 1
        %v752 = vor.u32 %v747, %v751
        %v754 = vshll.u32 %v630, 16
        %v756 = vrot.slane %v754, 1
        %v757 = vsel %vm637, %v752, %v756
        %v759 = vshrl.u32 %v583, 16
        %v761 = vshll.u32 %v583, 16
        %v763 = vrot.slane %v761, 1
        %v764 = vor.u32 %v759, %v763
        %v766 = vshll.u32 %v631, 16
        %v768 = vrot.slane %v766, 1
        %v769 = vsel %vm637, %v764, %v768
        %v771 = vshrl.u32 %v584, 16
        %v773 = vshll.u32 %v584, 16
        %v775 = vrot.slane %v773, 1
        %v776 = vor.u32 %v771, %v775
        %v778 = vshll.u32 %v632, 16
        %v780 = vrot.slane %v778, 1
        %v781 = vsel %vm637, %v776, %v780
        %v783 = vshrl.u32 %v585, 16
        %v785 = vshll.u32 %v585, 16
        %v787 = vrot.slane %v785, 1
        %v788 = vor.u32 %v783, %v787
        %v790 = vshll.u32 %v633, 16
        %v792 = vrot.slane %v790, 1
        %v793 = vsel %vm637, %v788, %v792
        %v795 = vshrl.u32 %v586, 16
        %v797 = vshll.u32 %v586, 16
        %v799 = vrot.slane %v797, 1
        %v800 = vor.u32 %v795, %v799
        %v802 = vshll.u32 %v634, 16
        %v804 = vrot.slane %v802, 1
        %v805 = vsel %vm637, %v800, %v804
        %v807 = vshrl.u32 %v587, 16
        %v809 = vshll.u32 %v587, 16
        %v811 = vrot.slane %v809, 1
        %v812 = vor.u32 %v807, %v811
        %v814 = vshll.u32 %v635, 16
        %v816 = vrot.slane %v814, 1
        %v817 = vsel %vm637, %v812, %v816
        %v819 = vshrl.u32 %v588, 16
        %v821 = vshll.u32 %v588, 16
        %v823 = vrot.slane %v821, 1
        %v824 = vor.u32 %v819, %v823
        %v826 = vshll.u32 %v636, 16
        %v828 = vrot.slane %v826, 1
        %v829 = vsel %vm637, %v824, %v828
        %830 = vrot.lane.b32.xlu0 %v649, 8
        %v831 = vpop.permute.xlu0 %830
        %832 = vrot.lane.b32.xlu0 %v661, 8
        %v833 = vpop.permute.xlu0 %832
        %834 = vrot.lane.b32.xlu0 %v673, 8
        %v835 = vpop.permute.xlu0 %834
        %836 = vrot.lane.b32.xlu0 %v685, 8
        %v837 = vpop.permute.xlu0 %836
        %838 = vrot.lane.b32.xlu0 %v697, 8
        %v839 = vpop.permute.xlu0 %838
        %840 = vrot.lane.b32.xlu0 %v709, 8
        %v841 = vpop.permute.xlu0 %840
        %842 = vrot.lane.b32.xlu0 %v721, 8
        %v843 = vpop.permute.xlu0 %842
        %844 = vrot.lane.b32.xlu0 %v733, 8
        %v845 = vpop.permute.xlu0 %844
        %846 = vrot.lane.b32.xlu0 %v745, 8
        %v847 = vpop.permute.xlu0 %846
        %848 = vrot.lane.b32.xlu0 %v757, 8
        %v849 = vpop.permute.xlu0 %848
        %850 = vrot.lane.b32.xlu0 %v769, 8
        %v851 = vpop.permute.xlu0 %850
        %852 = vrot.lane.b32.xlu0 %v781, 8
        %v853 = vpop.permute.xlu0 %852
        %854 = vrot.lane.b32.xlu0 %v793, 8
        %v855 = vpop.permute.xlu0 %854
        %856 = vrot.lane.b32.xlu0 %v805, 8
        %v857 = vpop.permute.xlu0 %856
        %858 = vrot.lane.b32.xlu0 %v817, 8
        %v859 = vpop.permute.xlu0 %858
        %860 = vrot.lane.b32.xlu0 %v829, 8
        %v861 = vpop.permute.xlu0 %860
        %v878 = vunpack.c.l.b16 %v357
        %v879 = vunpack.c.l.b16 %v358
        %v880 = vunpack.c.l.b16 %v359
        %v881 = vunpack.c.l.b16 %v360
        %v882 = vunpack.c.l.b16 %v361
        %v883 = vunpack.c.l.b16 %v362
        %v884 = vunpack.c.l.b16 %v363
        %v885 = vunpack.c.l.b16 %v364
        %v886 = vunpack.c.l.b16 %v365
        %v887 = vunpack.c.l.b16 %v366
        %v888 = vunpack.c.l.b16 %v367
        %v889 = vunpack.c.l.b16 %v368
        %v890 = vunpack.c.l.b16 %v369
        %v891 = vunpack.c.l.b16 %v370
        %v892 = vunpack.c.l.b16 %v371
        %v893 = vunpack.c.l.b16 %v372
        %v894 = vpack.c.b16 %v542, %v878
        %v895 = vpack.c.b16 %v544, %v879
        %v896 = vpack.c.b16 %v546, %v880
        %v897 = vpack.c.b16 %v548, %v881
        %v898 = vpack.c.b16 %v550, %v882
        %v899 = vpack.c.b16 %v552, %v883
        %v900 = vpack.c.b16 %v554, %v884
        %v901 = vpack.c.b16 %v556, %v885
        %v902 = vpack.c.b16 %v558, %v886
        %v903 = vpack.c.b16 %v560, %v887
        %v904 = vpack.c.b16 %v562, %v888
        %v905 = vpack.c.b16 %v564, %v889
        %v906 = vpack.c.b16 %v566, %v890
        %v907 = vpack.c.b16 %v568, %v891
        %v908 = vpack.c.b16 %v570, %v892
        %v909 = vpack.c.b16 %v572, %v893
        %vm910 = vcmask 1046528
        %v911 = vrot.slane %v894, 1
        %v912 = vrot.slane %v621, 1
        %v913 = vsel %vm910, %v911, %v912
        %v914 = vrot.slane %v895, 1
        %v915 = vrot.slane %v622, 1
        %v916 = vsel %vm910, %v914, %v915
        %v917 = vrot.slane %v896, 1
        %v918 = vrot.slane %v623, 1
        %v919 = vsel %vm910, %v917, %v918
        %v920 = vrot.slane %v897, 1
        %v921 = vrot.slane %v624, 1
        %v922 = vsel %vm910, %v920, %v921
        %v923 = vrot.slane %v898, 1
        %v924 = vrot.slane %v625, 1
        %v925 = vsel %vm910, %v923, %v924
        %v926 = vrot.slane %v899, 1
        %v927 = vrot.slane %v626, 1
        %v928 = vsel %vm910, %v926, %v927
        %v929 = vrot.slane %v900, 1
        %v930 = vrot.slane %v627, 1
        %v931 = vsel %vm910, %v929, %v930
        %v932 = vrot.slane %v901, 1
        %v933 = vrot.slane %v628, 1
        %v934 = vsel %vm910, %v932, %v933
        %v935 = vrot.slane %v902, 1
        %v936 = vrot.slane %v629, 1
        %v937 = vsel %vm910, %v935, %v936
        %v938 = vrot.slane %v903, 1
        %v939 = vrot.slane %v630, 1
        %v940 = vsel %vm910, %v938, %v939
        %v941 = vrot.slane %v904, 1
        %v942 = vrot.slane %v631, 1
        %v943 = vsel %vm910, %v941, %v942
        %v944 = vrot.slane %v905, 1
        %v945 = vrot.slane %v632, 1
        %v946 = vsel %vm910, %v944, %v945
        %v947 = vrot.slane %v906, 1
        %v948 = vrot.slane %v633, 1
        %v949 = vsel %vm910, %v947, %v948
        %v950 = vrot.slane %v907, 1
        %v951 = vrot.slane %v634, 1
        %v952 = vsel %vm910, %v950, %v951
        %v953 = vrot.slane %v908, 1
        %v954 = vrot.slane %v635, 1
        %v955 = vsel %vm910, %v953, %v954
        %v956 = vrot.slane %v909, 1
        %v957 = vrot.slane %v636, 1
        %v958 = vsel %vm910, %v956, %v957
        %959 = vrot.lane.b32.xlu0 %v913, 16
        %v960 = vpop.permute.xlu0 %959
        %961 = vrot.lane.b32.xlu0 %v916, 16
        %v962 = vpop.permute.xlu0 %961
        %963 = vrot.lane.b32.xlu0 %v919, 16
        %v964 = vpop.permute.xlu0 %963
        %965 = vrot.lane.b32.xlu0 %v922, 16
        %v966 = vpop.permute.xlu0 %965
        %967 = vrot.lane.b32.xlu0 %v925, 16
        %v968 = vpop.permute.xlu0 %967
        %969 = vrot.lane.b32.xlu0 %v928, 16
        %v970 = vpop.permute.xlu0 %969
        %971 = vrot.lane.b32.xlu0 %v931, 16
        %v972 = vpop.permute.xlu0 %971
        %973 = vrot.lane.b32.xlu0 %v934, 16
        %v974 = vpop.permute.xlu0 %973
        %975 = vrot.lane.b32.xlu0 %v937, 16
        %v976 = vpop.permute.xlu0 %975
        %977 = vrot.lane.b32.xlu0 %v940, 16
        %v978 = vpop.permute.xlu0 %977
        %979 = vrot.lane.b32.xlu0 %v943, 16
        %v980 = vpop.permute.xlu0 %979
        %981 = vrot.lane.b32.xlu0 %v946, 16
        %v982 = vpop.permute.xlu0 %981
        %983 = vrot.lane.b32.xlu0 %v949, 16
        %v984 = vpop.permute.xlu0 %983
        %985 = vrot.lane.b32.xlu0 %v952, 16
        %v986 = vpop.permute.xlu0 %985
        %987 = vrot.lane.b32.xlu0 %v955, 16
        %v988 = vpop.permute.xlu0 %987
        %989 = vrot.lane.b32.xlu0 %v958, 16
        %v990 = vpop.permute.xlu0 %989
        %v1023 = vunpack.c.l.b16 %v377
        %v1024 = vunpack.c.l.b16 %v378
        %v1025 = vunpack.c.l.b16 %v379
        %v1026 = vunpack.c.l.b16 %v380
        %v1027 = vunpack.c.l.b16 %v381
        %v1028 = vunpack.c.l.b16 %v382
        %v1029 = vunpack.c.l.b16 %v383
        %v1030 = vunpack.c.l.b16 %v384
        %v1031 = vunpack.c.l.b16 %v385
        %v1032 = vunpack.c.l.b16 %v386
        %v1033 = vunpack.c.l.b16 %v387
        %v1034 = vunpack.c.l.b16 %v388
        %v1035 = vunpack.c.l.b16 %v389
        %v1036 = vunpack.c.l.b16 %v390
        %v1037 = vunpack.c.l.b16 %v391
        %v1038 = vunpack.c.l.b16 %v392
        %v1039 = vunpack.c.l.b16 %v393
        %v1040 = vunpack.c.l.b16 %v394
        %v1041 = vunpack.c.l.b16 %v395
        %v1042 = vunpack.c.l.b16 %v396
        %v1043 = vunpack.c.l.b16 %v397
        %v1044 = vunpack.c.l.b16 %v398
        %v1045 = vunpack.c.l.b16 %v399
        %v1046 = vunpack.c.l.b16 %v400
        %v1047 = vunpack.c.l.b16 %v401
        %v1048 = vunpack.c.l.b16 %v402
        %v1049 = vunpack.c.l.b16 %v403
        %v1050 = vunpack.c.l.b16 %v404
        %v1051 = vunpack.c.l.b16 %v405
        %v1052 = vunpack.c.l.b16 %v406
        %v1053 = vunpack.c.l.b16 %v407
        %v1054 = vunpack.c.l.b16 %v408
        %v1055 = vpack.c.b16 %v1024, %v1023
        %v1056 = vpack.c.b16 %v1026, %v1025
        %v1057 = vpack.c.b16 %v1028, %v1027
        %v1058 = vpack.c.b16 %v1030, %v1029
        %v1059 = vpack.c.b16 %v1032, %v1031
        %v1060 = vpack.c.b16 %v1034, %v1033
        %v1061 = vpack.c.b16 %v1036, %v1035
        %v1062 = vpack.c.b16 %v1038, %v1037
        %v1063 = vpack.c.b16 %v1040, %v1039
        %v1064 = vpack.c.b16 %v1042, %v1041
        %v1065 = vpack.c.b16 %v1044, %v1043
        %v1066 = vpack.c.b16 %v1046, %v1045
        %v1067 = vpack.c.b16 %v1048, %v1047
        %v1068 = vpack.c.b16 %v1050, %v1049
        %v1069 = vpack.c.b16 %v1052, %v1051
        %v1070 = vpack.c.b16 %v1054, %v1053
        %1071 = vrot.lane.b32.xlu0 %v1055, 24
        %v1072 = vpop.permute.xlu0 %1071
        %1073 = vrot.lane.b32.xlu0 %v1056, 24
        %v1074 = vpop.permute.xlu0 %1073
        %1075 = vrot.lane.b32.xlu0 %v1057, 24
        %v1076 = vpop.permute.xlu0 %1075
        %1077 = vrot.lane.b32.xlu0 %v1058, 24
        %v1078 = vpop.permute.xlu0 %1077
        %1079 = vrot.lane.b32.xlu0 %v1059, 24
        %v1080 = vpop.permute.xlu0 %1079
        %1081 = vrot.lane.b32.xlu0 %v1060, 24
        %v1082 = vpop.permute.xlu0 %1081
        %1083 = vrot.lane.b32.xlu0 %v1061, 24
        %v1084 = vpop.permute.xlu0 %1083
        %1085 = vrot.lane.b32.xlu0 %v1062, 24
        %v1086 = vpop.permute.xlu0 %1085
        %1087 = vrot.lane.b32.xlu0 %v1063, 24
        %v1088 = vpop.permute.xlu0 %1087
        %1089 = vrot.lane.b32.xlu0 %v1064, 24
        %v1090 = vpop.permute.xlu0 %1089
        %1091 = vrot.lane.b32.xlu0 %v1065, 24
        %v1092 = vpop.permute.xlu0 %1091
        %1093 = vrot.lane.b32.xlu0 %v1066, 24
        %v1094 = vpop.permute.xlu0 %1093
        %1095 = vrot.lane.b32.xlu0 %v1067, 24
        %v1096 = vpop.permute.xlu0 %1095
        %1097 = vrot.lane.b32.xlu0 %v1068, 24
        %v1098 = vpop.permute.xlu0 %1097
        %1099 = vrot.lane.b32.xlu0 %v1069, 24
        %v1100 = vpop.permute.xlu0 %1099
        %1101 = vrot.lane.b32.xlu0 %v1070, 24
        %v1102 = vpop.permute.xlu0 %1101
        %v1119 = vunpack.c.l.b16 %v409
        %v1120 = vunpack.c.l.b16 %v410
        %v1121 = vunpack.c.l.b16 %v411
        %v1122 = vunpack.c.l.b16 %v412
        %v1123 = vunpack.c.l.b16 %v413
        %v1124 = vunpack.c.l.b16 %v414
        %v1125 = vunpack.c.l.b16 %v415
        %v1126 = vunpack.c.l.b16 %v416
        %v1127 = vunpack.c.l.b16 %v417
        %v1128 = vunpack.c.l.b16 %v418
        %v1129 = vunpack.c.l.b16 %v419
        %v1130 = vunpack.c.l.b16 %v420
        %v1131 = vunpack.c.l.b16 %v421
        %v1132 = vunpack.c.l.b16 %v422
        %v1133 = vunpack.c.l.b16 %v423
        %v1134 = vunpack.c.l.b16 %v424
        %v1135 = vpack.c.b16 %v1119, %v1119
        %v1136 = vpack.c.b16 %v1120, %v1120
        %v1137 = vpack.c.b16 %v1121, %v1121
        %v1138 = vpack.c.b16 %v1122, %v1122
        %v1139 = vpack.c.b16 %v1123, %v1123
        %v1140 = vpack.c.b16 %v1124, %v1124
        %v1141 = vpack.c.b16 %v1125, %v1125
        %v1142 = vpack.c.b16 %v1126, %v1126
        %v1143 = vpack.c.b16 %v1127, %v1127
        %v1144 = vpack.c.b16 %v1128, %v1128
        %v1145 = vpack.c.b16 %v1129, %v1129
        %v1146 = vpack.c.b16 %v1130, %v1130
        %v1147 = vpack.c.b16 %v1131, %v1131
        %v1148 = vpack.c.b16 %v1132, %v1132
        %v1149 = vpack.c.b16 %v1133, %v1133
        %v1150 = vpack.c.b16 %v1134, %v1134
        %v1152 = vshrl.u32 %v1055, 16
        %v1154 = vshll.u32 %v1055, 16
        %v1156 = vrot.slane %v1154, 1
        %v1157 = vor.u32 %v1152, %v1156
        %v1159 = vshll.u32 %v1135, 16
        %v1161 = vrot.slane %v1159, 1
        %v1162 = vsel %vm637, %v1157, %v1161
        %v1164 = vshrl.u32 %v1056, 16
        %v1166 = vshll.u32 %v1056, 16
        %v1168 = vrot.slane %v1166, 1
        %v1169 = vor.u32 %v1164, %v1168
        %v1171 = vshll.u32 %v1136, 16
        %v1173 = vrot.slane %v1171, 1
        %v1174 = vsel %vm637, %v1169, %v1173
        %v1176 = vshrl.u32 %v1057, 16
        %v1178 = vshll.u32 %v1057, 16
        %v1180 = vrot.slane %v1178, 1
        %v1181 = vor.u32 %v1176, %v1180
        %v1183 = vshll.u32 %v1137, 16
        %v1185 = vrot.slane %v1183, 1
        %v1186 = vsel %vm637, %v1181, %v1185
        %v1188 = vshrl.u32 %v1058, 16
        %v1190 = vshll.u32 %v1058, 16
        %v1192 = vrot.slane %v1190, 1
        %v1193 = vor.u32 %v1188, %v1192
        %v1195 = vshll.u32 %v1138, 16
        %v1197 = vrot.slane %v1195, 1
        %v1198 = vsel %vm637, %v1193, %v1197
        %v1200 = vshrl.u32 %v1059, 16
        %v1202 = vshll.u32 %v1059, 16
        %v1204 = vrot.slane %v1202, 1
        %v1205 = vor.u32 %v1200, %v1204
        %v1207 = vshll.u32 %v1139, 16
        %v1209 = vrot.slane %v1207, 1
        %v1210 = vsel %vm637, %v1205, %v1209
        %v1212 = vshrl.u32 %v1060, 16
        %v1214 = vshll.u32 %v1060, 16
        %v1216 = vrot.slane %v1214, 1
        %v1217 = vor.u32 %v1212, %v1216
        %v1219 = vshll.u32 %v1140, 16
        %v1221 = vrot.slane %v1219, 1
        %v1222 = vsel %vm637, %v1217, %v1221
        %v1224 = vshrl.u32 %v1061, 16
        %v1226 = vshll.u32 %v1061, 16
        %v1228 = vrot.slane %v1226, 1
        %v1229 = vor.u32 %v1224, %v1228
        %v1231 = vshll.u32 %v1141, 16
        %v1233 = vrot.slane %v1231, 1
        %v1234 = vsel %vm637, %v1229, %v1233
        %v1236 = vshrl.u32 %v1062, 16
        %v1238 = vshll.u32 %v1062, 16
        %v1240 = vrot.slane %v1238, 1
        %v1241 = vor.u32 %v1236, %v1240
        %v1243 = vshll.u32 %v1142, 16
        %v1245 = vrot.slane %v1243, 1
        %v1246 = vsel %vm637, %v1241, %v1245
        %v1248 = vshrl.u32 %v1063, 16
        %v1250 = vshll.u32 %v1063, 16
        %v1252 = vrot.slane %v1250, 1
        %v1253 = vor.u32 %v1248, %v1252
        %v1255 = vshll.u32 %v1143, 16
        %v1257 = vrot.slane %v1255, 1
        %v1258 = vsel %vm637, %v1253, %v1257
        %v1260 = vshrl.u32 %v1064, 16
        %v1262 = vshll.u32 %v1064, 16
        %v1264 = vrot.slane %v1262, 1
        %v1265 = vor.u32 %v1260, %v1264
        %v1267 = vshll.u32 %v1144, 16
        %v1269 = vrot.slane %v1267, 1
        %v1270 = vsel %vm637, %v1265, %v1269
        %v1272 = vshrl.u32 %v1065, 16
        %v1274 = vshll.u32 %v1065, 16
        %v1276 = vrot.slane %v1274, 1
        %v1277 = vor.u32 %v1272, %v1276
        %v1279 = vshll.u32 %v1145, 16
        %v1281 = vrot.slane %v1279, 1
        %v1282 = vsel %vm637, %v1277, %v1281
        %v1284 = vshrl.u32 %v1066, 16
        %v1286 = vshll.u32 %v1066, 16
        %v1288 = vrot.slane %v1286, 1
        %v1289 = vor.u32 %v1284, %v1288
        %v1291 = vshll.u32 %v1146, 16
        %v1293 = vrot.slane %v1291, 1
        %v1294 = vsel %vm637, %v1289, %v1293
        %v1296 = vshrl.u32 %v1067, 16
        %v1298 = vshll.u32 %v1067, 16
        %v1300 = vrot.slane %v1298, 1
        %v1301 = vor.u32 %v1296, %v1300
        %v1303 = vshll.u32 %v1147, 16
        %v1305 = vrot.slane %v1303, 1
        %v1306 = vsel %vm637, %v1301, %v1305
        %v1308 = vshrl.u32 %v1068, 16
        %v1310 = vshll.u32 %v1068, 16
        %v1312 = vrot.slane %v1310, 1
        %v1313 = vor.u32 %v1308, %v1312
        %v1315 = vshll.u32 %v1148, 16
        %v1317 = vrot.slane %v1315, 1
        %v1318 = vsel %vm637, %v1313, %v1317
        %v1320 = vshrl.u32 %v1069, 16
        %v1322 = vshll.u32 %v1069, 16
        %v1324 = vrot.slane %v1322, 1
        %v1325 = vor.u32 %v1320, %v1324
        %v1327 = vshll.u32 %v1149, 16
        %v1329 = vrot.slane %v1327, 1
        %v1330 = vsel %vm637, %v1325, %v1329
        %v1332 = vshrl.u32 %v1070, 16
        %v1334 = vshll.u32 %v1070, 16
        %v1336 = vrot.slane %v1334, 1
        %v1337 = vor.u32 %v1332, %v1336
        %v1339 = vshll.u32 %v1150, 16
        %v1341 = vrot.slane %v1339, 1
        %v1342 = vsel %vm637, %v1337, %v1341
        %1343 = vrot.lane.b32.xlu0 %v1162, 32
        %v1344 = vpop.permute.xlu0 %1343
        %1345 = vrot.lane.b32.xlu0 %v1174, 32
        %v1346 = vpop.permute.xlu0 %1345
        %1347 = vrot.lane.b32.xlu0 %v1186, 32
        %v1348 = vpop.permute.xlu0 %1347
        %1349 = vrot.lane.b32.xlu0 %v1198, 32
        %v1350 = vpop.permute.xlu0 %1349
        %1351 = vrot.lane.b32.xlu0 %v1210, 32
        %v1352 = vpop.permute.xlu0 %1351
        %1353 = vrot.lane.b32.xlu0 %v1222, 32
        %v1354 = vpop.permute.xlu0 %1353
        %1355 = vrot.lane.b32.xlu0 %v1234, 32
        %v1356 = vpop.permute.xlu0 %1355
        %1357 = vrot.lane.b32.xlu0 %v1246, 32
        %v1358 = vpop.permute.xlu0 %1357
        %1359 = vrot.lane.b32.xlu0 %v1258, 32
        %v1360 = vpop.permute.xlu0 %1359
        %1361 = vrot.lane.b32.xlu0 %v1270, 32
        %v1362 = vpop.permute.xlu0 %1361
        %1363 = vrot.lane.b32.xlu0 %v1282, 32
        %v1364 = vpop.permute.xlu0 %1363
        %1365 = vrot.lane.b32.xlu0 %v1294, 32
        %v1366 = vpop.permute.xlu0 %1365
        %1367 = vrot.lane.b32.xlu0 %v1306, 32
        %v1368 = vpop.permute.xlu0 %1367
        %1369 = vrot.lane.b32.xlu0 %v1318, 32
        %v1370 = vpop.permute.xlu0 %1369
        %1371 = vrot.lane.b32.xlu0 %v1330, 32
        %v1372 = vpop.permute.xlu0 %1371
        %1373 = vrot.lane.b32.xlu0 %v1342, 32
        %v1374 = vpop.permute.xlu0 %1373
        %v1391 = vunpack.c.l.b16 %v425
        %v1392 = vunpack.c.l.b16 %v426
        %v1393 = vunpack.c.l.b16 %v427
        %v1394 = vunpack.c.l.b16 %v428
        %v1395 = vunpack.c.l.b16 %v429
        %v1396 = vunpack.c.l.b16 %v430
        %v1397 = vunpack.c.l.b16 %v431
        %v1398 = vunpack.c.l.b16 %v432
        %v1399 = vunpack.c.l.b16 %v433
        %v1400 = vunpack.c.l.b16 %v434
        %v1401 = vunpack.c.l.b16 %v435
        %v1402 = vunpack.c.l.b16 %v436
        %v1403 = vunpack.c.l.b16 %v437
        %v1404 = vunpack.c.l.b16 %v438
        %v1405 = vunpack.c.l.b16 %v439
        %v1406 = vunpack.c.l.b16 %v440
        %v1407 = vpack.c.b16 %v1024, %v1391
        %v1408 = vpack.c.b16 %v1026, %v1392
        %v1409 = vpack.c.b16 %v1028, %v1393
        %v1410 = vpack.c.b16 %v1030, %v1394
        %v1411 = vpack.c.b16 %v1032, %v1395
        %v1412 = vpack.c.b16 %v1034, %v1396
        %v1413 = vpack.c.b16 %v1036, %v1397
        %v1414 = vpack.c.b16 %v1038, %v1398
        %v1415 = vpack.c.b16 %v1040, %v1399
        %v1416 = vpack.c.b16 %v1042, %v1400
        %v1417 = vpack.c.b16 %v1044, %v1401
        %v1418 = vpack.c.b16 %v1046, %v1402
        %v1419 = vpack.c.b16 %v1048, %v1403
        %v1420 = vpack.c.b16 %v1050, %v1404
        %v1421 = vpack.c.b16 %v1052, %v1405
        %v1422 = vpack.c.b16 %v1054, %v1406
        %v1423 = vrot.slane %v1407, 1
        %v1424 = vrot.slane %v1135, 1
        %v1425 = vsel %vm910, %v1423, %v1424
        %v1426 = vrot.slane %v1408, 1
        %v1427 = vrot.slane %v1136, 1
        %v1428 = vsel %vm910, %v1426, %v1427
        %v1429 = vrot.slane %v1409, 1
        %v1430 = vrot.slane %v1137, 1
        %v1431 = vsel %vm910, %v1429, %v1430
        %v1432 = vrot.slane %v1410, 1
        %v1433 = vrot.slane %v1138, 1
        %v1434 = vsel %vm910, %v1432, %v1433
        %v1435 = vrot.slane %v1411, 1
        %v1436 = vrot.slane %v1139, 1
        %v1437 = vsel %vm910, %v1435, %v1436
        %v1438 = vrot.slane %v1412, 1
        %v1439 = vrot.slane %v1140, 1
        %v1440 = vsel %vm910, %v1438, %v1439
        %v1441 = vrot.slane %v1413, 1
        %v1442 = vrot.slane %v1141, 1
        %v1443 = vsel %vm910, %v1441, %v1442
        %v1444 = vrot.slane %v1414, 1
        %v1445 = vrot.slane %v1142, 1
        %v1446 = vsel %vm910, %v1444, %v1445
        %v1447 = vrot.slane %v1415, 1
        %v1448 = vrot.slane %v1143, 1
        %v1449 = vsel %vm910, %v1447, %v1448
        %v1450 = vrot.slane %v1416, 1
        %v1451 = vrot.slane %v1144, 1
        %v1452 = vsel %vm910, %v1450, %v1451
        %v1453 = vrot.slane %v1417, 1
        %v1454 = vrot.slane %v1145, 1
        %v1455 = vsel %vm910, %v1453, %v1454
        %v1456 = vrot.slane %v1418, 1
        %v1457 = vrot.slane %v1146, 1
        %v1458 = vsel %vm910, %v1456, %v1457
        %v1459 = vrot.slane %v1419, 1
        %v1460 = vrot.slane %v1147, 1
        %v1461 = vsel %vm910, %v1459, %v1460
        %v1462 = vrot.slane %v1420, 1
        %v1463 = vrot.slane %v1148, 1
        %v1464 = vsel %vm910, %v1462, %v1463
        %v1465 = vrot.slane %v1421, 1
        %v1466 = vrot.slane %v1149, 1
        %v1467 = vsel %vm910, %v1465, %v1466
        %v1468 = vrot.slane %v1422, 1
        %v1469 = vrot.slane %v1150, 1
        %v1470 = vsel %vm910, %v1468, %v1469
        %1471 = vrot.lane.b32.xlu0 %v1425, 40
        %v1472 = vpop.permute.xlu0 %1471
        %1473 = vrot.lane.b32.xlu0 %v1428, 40
        %v1474 = vpop.permute.xlu0 %1473
        %1475 = vrot.lane.b32.xlu0 %v1431, 40
        %v1476 = vpop.permute.xlu0 %1475
        %1477 = vrot.lane.b32.xlu0 %v1434, 40
        %v1478 = vpop.permute.xlu0 %1477
        %1479 = vrot.lane.b32.xlu0 %v1437, 40
        %v1480 = vpop.permute.xlu0 %1479
        %1481 = vrot.lane.b32.xlu0 %v1440, 40
        %v1482 = vpop.permute.xlu0 %1481
        %1483 = vrot.lane.b32.xlu0 %v1443, 40
        %v1484 = vpop.permute.xlu0 %1483
        %1485 = vrot.lane.b32.xlu0 %v1446, 40
        %v1486 = vpop.permute.xlu0 %1485
        %1487 = vrot.lane.b32.xlu0 %v1449, 40
        %v1488 = vpop.permute.xlu0 %1487
        %1489 = vrot.lane.b32.xlu0 %v1452, 40
        %v1490 = vpop.permute.xlu0 %1489
        %1491 = vrot.lane.b32.xlu0 %v1455, 40
        %v1492 = vpop.permute.xlu0 %1491
        %1493 = vrot.lane.b32.xlu0 %v1458, 40
        %v1494 = vpop.permute.xlu0 %1493
        %1495 = vrot.lane.b32.xlu0 %v1461, 40
        %v1496 = vpop.permute.xlu0 %1495
        %1497 = vrot.lane.b32.xlu0 %v1464, 40
        %v1498 = vpop.permute.xlu0 %1497
        %1499 = vrot.lane.b32.xlu0 %v1467, 40
        %v1500 = vpop.permute.xlu0 %1499
        %1501 = vrot.lane.b32.xlu0 %v1470, 40
        %v1502 = vpop.permute.xlu0 %1501
        %v1535 = vunpack.c.l.b16 %v445
        %v1536 = vunpack.c.l.b16 %v446
        %v1537 = vunpack.c.l.b16 %v447
        %v1538 = vunpack.c.l.b16 %v448
        %v1539 = vunpack.c.l.b16 %v449
        %v1540 = vunpack.c.l.b16 %v450
        %v1541 = vunpack.c.l.b16 %v451
        %v1542 = vunpack.c.l.b16 %v452
        %v1543 = vunpack.c.l.b16 %v453
        %v1544 = vunpack.c.l.b16 %v454
        %v1545 = vunpack.c.l.b16 %v455
        %v1546 = vunpack.c.l.b16 %v456
        %v1547 = vunpack.c.l.b16 %v457
        %v1548 = vunpack.c.l.b16 %v458
        %v1549 = vunpack.c.l.b16 %v459
        %v1550 = vunpack.c.l.b16 %v460
        %v1551 = vunpack.c.l.b16 %v461
        %v1552 = vunpack.c.l.b16 %v462
        %v1553 = vunpack.c.l.b16 %v463
        %v1554 = vunpack.c.l.b16 %v464
        %v1555 = vunpack.c.l.b16 %v465
        %v1556 = vunpack.c.l.b16 %v466
        %v1557 = vunpack.c.l.b16 %v467
        %v1558 = vunpack.c.l.b16 %v468
        %v1559 = vunpack.c.l.b16 %v469
        %v1560 = vunpack.c.l.b16 %v470
        %v1561 = vunpack.c.l.b16 %v471
        %v1562 = vunpack.c.l.b16 %v472
        %v1563 = vunpack.c.l.b16 %v473
        %v1564 = vunpack.c.l.b16 %v474
        %v1565 = vunpack.c.l.b16 %v475
        %v1566 = vunpack.c.l.b16 %v476
        %v1567 = vpack.c.b16 %v1536, %v1535
        %v1568 = vpack.c.b16 %v1538, %v1537
        %v1569 = vpack.c.b16 %v1540, %v1539
        %v1570 = vpack.c.b16 %v1542, %v1541
        %v1571 = vpack.c.b16 %v1544, %v1543
        %v1572 = vpack.c.b16 %v1546, %v1545
        %v1573 = vpack.c.b16 %v1548, %v1547
        %v1574 = vpack.c.b16 %v1550, %v1549
        %v1575 = vpack.c.b16 %v1552, %v1551
        %v1576 = vpack.c.b16 %v1554, %v1553
        %v1577 = vpack.c.b16 %v1556, %v1555
        %v1578 = vpack.c.b16 %v1558, %v1557
        %v1579 = vpack.c.b16 %v1560, %v1559
        %v1580 = vpack.c.b16 %v1562, %v1561
        %v1581 = vpack.c.b16 %v1564, %v1563
        %v1582 = vpack.c.b16 %v1566, %v1565
        %1583 = vrot.lane.b32.xlu0 %v1567, 48
        %v1584 = vpop.permute.xlu0 %1583
        %1585 = vrot.lane.b32.xlu0 %v1568, 48
        %v1586 = vpop.permute.xlu0 %1585
        %1587 = vrot.lane.b32.xlu0 %v1569, 48
        %v1588 = vpop.permute.xlu0 %1587
        %1589 = vrot.lane.b32.xlu0 %v1570, 48
        %v1590 = vpop.permute.xlu0 %1589
        %1591 = vrot.lane.b32.xlu0 %v1571, 48
        %v1592 = vpop.permute.xlu0 %1591
        %1593 = vrot.lane.b32.xlu0 %v1572, 48
        %v1594 = vpop.permute.xlu0 %1593
        %1595 = vrot.lane.b32.xlu0 %v1573, 48
        %v1596 = vpop.permute.xlu0 %1595
        %1597 = vrot.lane.b32.xlu0 %v1574, 48
        %v1598 = vpop.permute.xlu0 %1597
        %1599 = vrot.lane.b32.xlu0 %v1575, 48
        %v1600 = vpop.permute.xlu0 %1599
        %1601 = vrot.lane.b32.xlu0 %v1576, 48
        %v1602 = vpop.permute.xlu0 %1601
        %1603 = vrot.lane.b32.xlu0 %v1577, 48
        %v1604 = vpop.permute.xlu0 %1603
        %1605 = vrot.lane.b32.xlu0 %v1578, 48
        %v1606 = vpop.permute.xlu0 %1605
        %1607 = vrot.lane.b32.xlu0 %v1579, 48
        %v1608 = vpop.permute.xlu0 %1607
        %1609 = vrot.lane.b32.xlu0 %v1580, 48
        %v1610 = vpop.permute.xlu0 %1609
        %1611 = vrot.lane.b32.xlu0 %v1581, 48
        %v1612 = vpop.permute.xlu0 %1611
        %1613 = vrot.lane.b32.xlu0 %v1582, 48
        %v1614 = vpop.permute.xlu0 %1613
        %v1631 = vunpack.c.l.b16 %v477
        %v1632 = vunpack.c.l.b16 %v478
        %v1633 = vunpack.c.l.b16 %v479
        %v1634 = vunpack.c.l.b16 %v480
        %v1635 = vunpack.c.l.b16 %v481
        %v1636 = vunpack.c.l.b16 %v482
        %v1637 = vunpack.c.l.b16 %v483
        %v1638 = vunpack.c.l.b16 %v484
        %v1639 = vunpack.c.l.b16 %v485
        %v1640 = vunpack.c.l.b16 %v486
        %v1641 = vunpack.c.l.b16 %v487
        %v1642 = vunpack.c.l.b16 %v488
        %v1643 = vunpack.c.l.b16 %v489
        %v1644 = vunpack.c.l.b16 %v490
        %v1645 = vunpack.c.l.b16 %v491
        %v1646 = vunpack.c.l.b16 %v492
        %v1647 = vpack.c.b16 %v1631, %v1631
        %v1648 = vpack.c.b16 %v1632, %v1632
        %v1649 = vpack.c.b16 %v1633, %v1633
        %v1650 = vpack.c.b16 %v1634, %v1634
        %v1651 = vpack.c.b16 %v1635, %v1635
        %v1652 = vpack.c.b16 %v1636, %v1636
        %v1653 = vpack.c.b16 %v1637, %v1637
        %v1654 = vpack.c.b16 %v1638, %v1638
        %v1655 = vpack.c.b16 %v1639, %v1639
        %v1656 = vpack.c.b16 %v1640, %v1640
        %v1657 = vpack.c.b16 %v1641, %v1641
        %v1658 = vpack.c.b16 %v1642, %v1642
        %v1659 = vpack.c.b16 %v1643, %v1643
        %v1660 = vpack.c.b16 %v1644, %v1644
        %v1661 = vpack.c.b16 %v1645, %v1645
        %v1662 = vpack.c.b16 %v1646, %v1646
        %v1664 = vshrl.u32 %v1567, 16
        %v1666 = vshll.u32 %v1567, 16
        %v1668 = vrot.slane %v1666, 1
        %v1669 = vor.u32 %v1664, %v1668
        %v1671 = vshll.u32 %v1647, 16
        %v1673 = vrot.slane %v1671, 1
        %v1674 = vsel %vm637, %v1669, %v1673
        %v1676 = vshrl.u32 %v1568, 16
        %v1678 = vshll.u32 %v1568, 16
        %v1680 = vrot.slane %v1678, 1
        %v1681 = vor.u32 %v1676, %v1680
        %v1683 = vshll.u32 %v1648, 16
        %v1685 = vrot.slane %v1683, 1
        %v1686 = vsel %vm637, %v1681, %v1685
        %v1688 = vshrl.u32 %v1569, 16
        %v1690 = vshll.u32 %v1569, 16
        %v1692 = vrot.slane %v1690, 1
        %v1693 = vor.u32 %v1688, %v1692
        %v1695 = vshll.u32 %v1649, 16
        %v1697 = vrot.slane %v1695, 1
        %v1698 = vsel %vm637, %v1693, %v1697
        %v1700 = vshrl.u32 %v1570, 16
        %v1702 = vshll.u32 %v1570, 16
        %v1704 = vrot.slane %v1702, 1
        %v1705 = vor.u32 %v1700, %v1704
        %v1707 = vshll.u32 %v1650, 16
        %v1709 = vrot.slane %v1707, 1
        %v1710 = vsel %vm637, %v1705, %v1709
        %v1712 = vshrl.u32 %v1571, 16
        %v1714 = vshll.u32 %v1571, 16
        %v1716 = vrot.slane %v1714, 1
        %v1717 = vor.u32 %v1712, %v1716
        %v1719 = vshll.u32 %v1651, 16
        %v1721 = vrot.slane %v1719, 1
        %v1722 = vsel %vm637, %v1717, %v1721
        %v1724 = vshrl.u32 %v1572, 16
        %v1726 = vshll.u32 %v1572, 16
        %v1728 = vrot.slane %v1726, 1
        %v1729 = vor.u32 %v1724, %v1728
        %v1731 = vshll.u32 %v1652, 16
        %v1733 = vrot.slane %v1731, 1
        %v1734 = vsel %vm637, %v1729, %v1733
        %v1736 = vshrl.u32 %v1573, 16
        %v1738 = vshll.u32 %v1573, 16
        %v1740 = vrot.slane %v1738, 1
        %v1741 = vor.u32 %v1736, %v1740
        %v1743 = vshll.u32 %v1653, 16
        %v1745 = vrot.slane %v1743, 1
        %v1746 = vsel %vm637, %v1741, %v1745
        %v1748 = vshrl.u32 %v1574, 16
        %v1750 = vshll.u32 %v1574, 16
        %v1752 = vrot.slane %v1750, 1
        %v1753 = vor.u32 %v1748, %v1752
        %v1755 = vshll.u32 %v1654, 16
        %v1757 = vrot.slane %v1755, 1
        %v1758 = vsel %vm637, %v1753, %v1757
        %v1760 = vshrl.u32 %v1575, 16
        %v1762 = vshll.u32 %v1575, 16
        %v1764 = vrot.slane %v1762, 1
        %v1765 = vor.u32 %v1760, %v1764
        %v1767 = vshll.u32 %v1655, 16
        %v1769 = vrot.slane %v1767, 1
        %v1770 = vsel %vm637, %v1765, %v1769
        %v1772 = vshrl.u32 %v1576, 16
        %v1774 = vshll.u32 %v1576, 16
        %v1776 = vrot.slane %v1774, 1
        %v1777 = vor.u32 %v1772, %v1776
        %v1779 = vshll.u32 %v1656, 16
        %v1781 = vrot.slane %v1779, 1
        %v1782 = vsel %vm637, %v1777, %v1781
        %v1784 = vshrl.u32 %v1577, 16
        %v1786 = vshll.u32 %v1577, 16
        %v1788 = vrot.slane %v1786, 1
        %v1789 = vor.u32 %v1784, %v1788
        %v1791 = vshll.u32 %v1657, 16
        %v1793 = vrot.slane %v1791, 1
        %v1794 = vsel %vm637, %v1789, %v1793
        %v1796 = vshrl.u32 %v1578, 16
        %v1798 = vshll.u32 %v1578, 16
        %v1800 = vrot.slane %v1798, 1
        %v1801 = vor.u32 %v1796, %v1800
        %v1803 = vshll.u32 %v1658, 16
        %v1805 = vrot.slane %v1803, 1
        %v1806 = vsel %vm637, %v1801, %v1805
        %v1808 = vshrl.u32 %v1579, 16
        %v1810 = vshll.u32 %v1579, 16
        %v1812 = vrot.slane %v1810, 1
        %v1813 = vor.u32 %v1808, %v1812
        %v1815 = vshll.u32 %v1659, 16
        %v1817 = vrot.slane %v1815, 1
        %v1818 = vsel %vm637, %v1813, %v1817
        %v1820 = vshrl.u32 %v1580, 16
        %v1822 = vshll.u32 %v1580, 16
        %v1824 = vrot.slane %v1822, 1
        %v1825 = vor.u32 %v1820, %v1824
        %v1827 = vshll.u32 %v1660, 16
        %v1829 = vrot.slane %v1827, 1
        %v1830 = vsel %vm637, %v1825, %v1829
        %v1832 = vshrl.u32 %v1581, 16
        %v1834 = vshll.u32 %v1581, 16
        %v1836 = vrot.slane %v1834, 1
        %v1837 = vor.u32 %v1832, %v1836
        %v1839 = vshll.u32 %v1661, 16
        %v1841 = vrot.slane %v1839, 1
        %v1842 = vsel %vm637, %v1837, %v1841
        %v1844 = vshrl.u32 %v1582, 16
        %v1846 = vshll.u32 %v1582, 16
        %v1848 = vrot.slane %v1846, 1
        %v1849 = vor.u32 %v1844, %v1848
        %v1851 = vshll.u32 %v1662, 16
        %v1853 = vrot.slane %v1851, 1
        %v1854 = vsel %vm637, %v1849, %v1853
        %1855 = vrot.lane.b32.xlu0 %v1674, 56
        %v1856 = vpop.permute.xlu0 %1855
        %1857 = vrot.lane.b32.xlu0 %v1686, 56
        %v1858 = vpop.permute.xlu0 %1857
        %1859 = vrot.lane.b32.xlu0 %v1698, 56
        %v1860 = vpop.permute.xlu0 %1859
        %1861 = vrot.lane.b32.xlu0 %v1710, 56
        %v1862 = vpop.permute.xlu0 %1861
        %1863 = vrot.lane.b32.xlu0 %v1722, 56
        %v1864 = vpop.permute.xlu0 %1863
        %1865 = vrot.lane.b32.xlu0 %v1734, 56
        %v1866 = vpop.permute.xlu0 %1865
        %1867 = vrot.lane.b32.xlu0 %v1746, 56
        %v1868 = vpop.permute.xlu0 %1867
        %1869 = vrot.lane.b32.xlu0 %v1758, 56
        %v1870 = vpop.permute.xlu0 %1869
        %1871 = vrot.lane.b32.xlu0 %v1770, 56
        %v1872 = vpop.permute.xlu0 %1871
        %1873 = vrot.lane.b32.xlu0 %v1782, 56
        %v1874 = vpop.permute.xlu0 %1873
        %1875 = vrot.lane.b32.xlu0 %v1794, 56
        %v1876 = vpop.permute.xlu0 %1875
        %1877 = vrot.lane.b32.xlu0 %v1806, 56
        %v1878 = vpop.permute.xlu0 %1877
        %1879 = vrot.lane.b32.xlu0 %v1818, 56
        %v1880 = vpop.permute.xlu0 %1879
        %1881 = vrot.lane.b32.xlu0 %v1830, 56
        %v1882 = vpop.permute.xlu0 %1881
        %1883 = vrot.lane.b32.xlu0 %v1842, 56
        %v1884 = vpop.permute.xlu0 %1883
        %1885 = vrot.lane.b32.xlu0 %v1854, 56
        %v1886 = vpop.permute.xlu0 %1885
        %v1903 = vunpack.c.l.b16 %v493
        %v1904 = vunpack.c.l.b16 %v494
        %v1905 = vunpack.c.l.b16 %v495
        %v1906 = vunpack.c.l.b16 %v496
        %v1907 = vunpack.c.l.b16 %v497
        %v1908 = vunpack.c.l.b16 %v498
        %v1909 = vunpack.c.l.b16 %v499
        %v1910 = vunpack.c.l.b16 %v500
        %v1911 = vunpack.c.l.b16 %v501
        %v1912 = vunpack.c.l.b16 %v502
        %v1913 = vunpack.c.l.b16 %v503
        %v1914 = vunpack.c.l.b16 %v504
        %v1915 = vunpack.c.l.b16 %v505
        %v1916 = vunpack.c.l.b16 %v506
        %v1917 = vunpack.c.l.b16 %v507
        %v1918 = vunpack.c.l.b16 %v508
        %v1919 = vpack.c.b16 %v1536, %v1903
        %v1920 = vpack.c.b16 %v1538, %v1904
        %v1921 = vpack.c.b16 %v1540, %v1905
        %v1922 = vpack.c.b16 %v1542, %v1906
        %v1923 = vpack.c.b16 %v1544, %v1907
        %v1924 = vpack.c.b16 %v1546, %v1908
        %v1925 = vpack.c.b16 %v1548, %v1909
        %v1926 = vpack.c.b16 %v1550, %v1910
        %v1927 = vpack.c.b16 %v1552, %v1911
        %v1928 = vpack.c.b16 %v1554, %v1912
        %v1929 = vpack.c.b16 %v1556, %v1913
        %v1930 = vpack.c.b16 %v1558, %v1914
        %v1931 = vpack.c.b16 %v1560, %v1915
        %v1932 = vpack.c.b16 %v1562, %v1916
        %v1933 = vpack.c.b16 %v1564, %v1917
        %v1934 = vpack.c.b16 %v1566, %v1918
        %v1935 = vrot.slane %v1919, 1
        %v1936 = vrot.slane %v1647, 1
        %v1937 = vsel %vm910, %v1935, %v1936
        %v1938 = vrot.slane %v1920, 1
        %v1939 = vrot.slane %v1648, 1
        %v1940 = vsel %vm910, %v1938, %v1939
        %v1941 = vrot.slane %v1921, 1
        %v1942 = vrot.slane %v1649, 1
        %v1943 = vsel %vm910, %v1941, %v1942
        %v1944 = vrot.slane %v1922, 1
        %v1945 = vrot.slane %v1650, 1
        %v1946 = vsel %vm910, %v1944, %v1945
        %v1947 = vrot.slane %v1923, 1
        %v1948 = vrot.slane %v1651, 1
        %v1949 = vsel %vm910, %v1947, %v1948
        %v1950 = vrot.slane %v1924, 1
        %v1951 = vrot.slane %v1652, 1
        %v1952 = vsel %vm910, %v1950, %v1951
        %v1953 = vrot.slane %v1925, 1
        %v1954 = vrot.slane %v1653, 1
        %v1955 = vsel %vm910, %v1953, %v1954
        %v1956 = vrot.slane %v1926, 1
        %v1957 = vrot.slane %v1654, 1
        %v1958 = vsel %vm910, %v1956, %v1957
        %v1959 = vrot.slane %v1927, 1
        %v1960 = vrot.slane %v1655, 1
        %v1961 = vsel %vm910, %v1959, %v1960
        %v1962 = vrot.slane %v1928, 1
        %v1963 = vrot.slane %v1656, 1
        %v1964 = vsel %vm910, %v1962, %v1963
        %v1965 = vrot.slane %v1929, 1
        %v1966 = vrot.slane %v1657, 1
        %v1967 = vsel %vm910, %v1965, %v1966
        %v1968 = vrot.slane %v1930, 1
        %v1969 = vrot.slane %v1658, 1
        %v1970 = vsel %vm910, %v1968, %v1969
        %v1971 = vrot.slane %v1931, 1
        %v1972 = vrot.slane %v1659, 1
        %v1973 = vsel %vm910, %v1971, %v1972
        %v1974 = vrot.slane %v1932, 1
        %v1975 = vrot.slane %v1660, 1
        %v1976 = vsel %vm910, %v1974, %v1975
        %v1977 = vrot.slane %v1933, 1
        %v1978 = vrot.slane %v1661, 1
        %v1979 = vsel %vm910, %v1977, %v1978
        %v1980 = vrot.slane %v1934, 1
        %v1981 = vrot.slane %v1662, 1
        %v1982 = vsel %vm910, %v1980, %v1981
        %1983 = vrot.lane.b32.xlu0 %v1937, 64
        %v1984 = vpop.permute.xlu0 %1983
        %1985 = vrot.lane.b32.xlu0 %v1940, 64
        %v1986 = vpop.permute.xlu0 %1985
        %1987 = vrot.lane.b32.xlu0 %v1943, 64
        %v1988 = vpop.permute.xlu0 %1987
        %1989 = vrot.lane.b32.xlu0 %v1946, 64
        %v1990 = vpop.permute.xlu0 %1989
        %1991 = vrot.lane.b32.xlu0 %v1949, 64
        %v1992 = vpop.permute.xlu0 %1991
        %1993 = vrot.lane.b32.xlu0 %v1952, 64
        %v1994 = vpop.permute.xlu0 %1993
        %1995 = vrot.lane.b32.xlu0 %v1955, 64
        %v1996 = vpop.permute.xlu0 %1995
        %1997 = vrot.lane.b32.xlu0 %v1958, 64
        %v1998 = vpop.permute.xlu0 %1997
        %1999 = vrot.lane.b32.xlu0 %v1961, 64
        %v2000 = vpop.permute.xlu0 %1999
        %2001 = vrot.lane.b32.xlu0 %v1964, 64
        %v2002 = vpop.permute.xlu0 %2001
        %2003 = vrot.lane.b32.xlu0 %v1967, 64
        %v2004 = vpop.permute.xlu0 %2003
        %2005 = vrot.lane.b32.xlu0 %v1970, 64
        %v2006 = vpop.permute.xlu0 %2005
        %2007 = vrot.lane.b32.xlu0 %v1973, 64
        %v2008 = vpop.permute.xlu0 %2007
        %2009 = vrot.lane.b32.xlu0 %v1976, 64
        %v2010 = vpop.permute.xlu0 %2009
        %2011 = vrot.lane.b32.xlu0 %v1979, 64
        %v2012 = vpop.permute.xlu0 %2011
        %2013 = vrot.lane.b32.xlu0 %v1982, 64
        %v2014 = vpop.permute.xlu0 %2013
        %vm2015 = vcmask 64512
        %v2017 = vsel %vm2015, %v573, %v831
        %v2019 = vsel %vm2015, %v574, %v833
        %v2021 = vsel %vm2015, %v575, %v835
        %v2023 = vsel %vm2015, %v576, %v837
        %v2025 = vsel %vm2015, %v577, %v839
        %v2027 = vsel %vm2015, %v578, %v841
        %v2029 = vsel %vm2015, %v579, %v843
        %v2031 = vsel %vm2015, %v580, %v845
        %v2033 = vsel %vm2015, %v581, %v847
        %v2035 = vsel %vm2015, %v582, %v849
        %v2037 = vsel %vm2015, %v583, %v851
        %v2039 = vsel %vm2015, %v584, %v853
        %v2041 = vsel %vm2015, %v585, %v855
        %v2043 = vsel %vm2015, %v586, %v857
        %v2045 = vsel %vm2015, %v587, %v859
        %v2047 = vsel %vm2015, %v588, %v861
        %vm2048 = vcmask 130048
        %v2050 = vsel %vm2048, %v2017, %v960
        %v2052 = vsel %vm2048, %v2019, %v962
        %v2054 = vsel %vm2048, %v2021, %v964
        %v2056 = vsel %vm2048, %v2023, %v966
        %v2058 = vsel %vm2048, %v2025, %v968
        %v2060 = vsel %vm2048, %v2027, %v970
        %v2062 = vsel %vm2048, %v2029, %v972
        %v2064 = vsel %vm2048, %v2031, %v974
        %v2066 = vsel %vm2048, %v2033, %v976
        %v2068 = vsel %vm2048, %v2035, %v978
        %v2070 = vsel %vm2048, %v2037, %v980
        %v2072 = vsel %vm2048, %v2039, %v982
        %v2074 = vsel %vm2048, %v2041, %v984
        %v2076 = vsel %vm2048, %v2043, %v986
        %v2078 = vsel %vm2048, %v2045, %v988
        %v2080 = vsel %vm2048, %v2047, %v990
        %vm2081 = vcmask 195584
        %v2083 = vsel %vm2081, %v2050, %v1072
        %v2085 = vsel %vm2081, %v2052, %v1074
        %v2087 = vsel %vm2081, %v2054, %v1076
        %v2089 = vsel %vm2081, %v2056, %v1078
        %v2091 = vsel %vm2081, %v2058, %v1080
        %v2093 = vsel %vm2081, %v2060, %v1082
        %v2095 = vsel %vm2081, %v2062, %v1084
        %v2097 = vsel %vm2081, %v2064, %v1086
        %v2099 = vsel %vm2081, %v2066, %v1088
        %v2101 = vsel %vm2081, %v2068, %v1090
        %v2103 = vsel %vm2081, %v2070, %v1092
        %v2105 = vsel %vm2081, %v2072, %v1094
        %v2107 = vsel %vm2081, %v2074, %v1096
        %v2109 = vsel %vm2081, %v2076, %v1098
        %v2111 = vsel %vm2081, %v2078, %v1100
        %v2113 = vsel %vm2081, %v2080, %v1102
        %vm2114 = vcmask 261120
        %v2116 = vsel %vm2114, %v2083, %v1344
        %v2118 = vsel %vm2114, %v2085, %v1346
        %v2120 = vsel %vm2114, %v2087, %v1348
        %v2122 = vsel %vm2114, %v2089, %v1350
        %v2124 = vsel %vm2114, %v2091, %v1352
        %v2126 = vsel %vm2114, %v2093, %v1354
        %v2128 = vsel %vm2114, %v2095, %v1356
        %v2130 = vsel %vm2114, %v2097, %v1358
        %v2132 = vsel %vm2114, %v2099, %v1360
        %v2134 = vsel %vm2114, %v2101, %v1362
        %v2136 = vsel %vm2114, %v2103, %v1364
        %v2138 = vsel %vm2114, %v2105, %v1366
        %v2140 = vsel %vm2114, %v2107, %v1368
        %v2142 = vsel %vm2114, %v2109, %v1370
        %v2144 = vsel %vm2114, %v2111, %v1372
        %v2146 = vsel %vm2114, %v2113, %v1374
        %vm2147 = vcmask 326656
        %v2149 = vsel %vm2147, %v2116, %v1472
        %v2151 = vsel %vm2147, %v2118, %v1474
        %v2153 = vsel %vm2147, %v2120, %v1476
        %v2155 = vsel %vm2147, %v2122, %v1478
        %v2157 = vsel %vm2147, %v2124, %v1480
        %v2159 = vsel %vm2147, %v2126, %v1482
        %v2161 = vsel %vm2147, %v2128, %v1484
        %v2163 = vsel %vm2147, %v2130, %v1486
        %v2165 = vsel %vm2147, %v2132, %v1488
        %v2167 = vsel %vm2147, %v2134, %v1490
        %v2169 = vsel %vm2147, %v2136, %v1492
        %v2171 = vsel %vm2147, %v2138, %v1494
        %v2173 = vsel %vm2147, %v2140, %v1496
        %v2175 = vsel %vm2147, %v2142, %v1498
        %v2177 = vsel %vm2147, %v2144, %v1500
        %v2179 = vsel %vm2147, %v2146, %v1502
        %vm2180 = vcmask 392192
        %v2182 = vsel %vm2180, %v2149, %v1584
        %v2184 = vsel %vm2180, %v2151, %v1586
        %v2186 = vsel %vm2180, %v2153, %v1588
        %v2188 = vsel %vm2180, %v2155, %v1590
        %v2190 = vsel %vm2180, %v2157, %v1592
        %v2192 = vsel %vm2180, %v2159, %v1594
        %v2194 = vsel %vm2180, %v2161, %v1596
        %v2196 = vsel %vm2180, %v2163, %v1598
        %v2198 = vsel %vm2180, %v2165, %v1600
        %v2200 = vsel %vm2180, %v2167, %v1602
        %v2202 = vsel %vm2180, %v2169, %v1604
        %v2204 = vsel %vm2180, %v2171, %v1606
        %v2206 = vsel %vm2180, %v2173, %v1608
        %v2208 = vsel %vm2180, %v2175, %v1610
        %v2210 = vsel %vm2180, %v2177, %v1612
        %v2212 = vsel %vm2180, %v2179, %v1614
        %vm2213 = vcmask 457728
        %v2215 = vsel %vm2213, %v2182, %v1856
        %v2217 = vsel %vm2213, %v2184, %v1858
        %v2219 = vsel %vm2213, %v2186, %v1860
        %v2221 = vsel %vm2213, %v2188, %v1862
        %v2223 = vsel %vm2213, %v2190, %v1864
        %v2225 = vsel %vm2213, %v2192, %v1866
        %v2227 = vsel %vm2213, %v2194, %v1868
        %v2229 = vsel %vm2213, %v2196, %v1870
        %v2231 = vsel %vm2213, %v2198, %v1872
        %v2233 = vsel %vm2213, %v2200, %v1874
        %v2235 = vsel %vm2213, %v2202, %v1876
        %v2237 = vsel %vm2213, %v2204, %v1878
        %v2239 = vsel %vm2213, %v2206, %v1880
        %v2241 = vsel %vm2213, %v2208, %v1882
        %v2243 = vsel %vm2213, %v2210, %v1884
        %v2245 = vsel %vm2213, %v2212, %v1886
        %vm2246 = vcmask 523264
        %v2248 = vsel %vm2246, %v2215, %v1984
        %v2250 = vsel %vm2246, %v2217, %v1986
        %v2252 = vsel %vm2246, %v2219, %v1988
        %v2254 = vsel %vm2246, %v2221, %v1990
        %v2256 = vsel %vm2246, %v2223, %v1992
        %v2258 = vsel %vm2246, %v2225, %v1994
        %v2260 = vsel %vm2246, %v2227, %v1996
        %v2262 = vsel %vm2246, %v2229, %v1998
        %v2264 = vsel %vm2246, %v2231, %v2000
        %v2266 = vsel %vm2246, %v2233, %v2002
        %v2268 = vsel %vm2246, %v2235, %v2004
        %v2270 = vsel %vm2246, %v2237, %v2006
        %v2272 = vsel %vm2246, %v2239, %v2008
        %v2274 = vsel %vm2246, %v2241, %v2010
        %v2276 = vsel %vm2246, %v2243, %v2012
        %v2278 = vsel %vm2246, %v2245, %v2014
        %v2279 = vld [vmem:[%s2] sm:$0xf]
        %v2280 = vld [vmem:[%s2 + $0x4] sm:$0xf]
        %v2281 = vld [vmem:[%s2 + $0x8] sm:$0xf]
        %v2282 = vld [vmem:[%s2 + $0xc] sm:$0xf]
        %v2283 = vld [vmem:[%s2 + $0x10] sm:$0xf]
        %v2284 = vld [vmem:[%s2 + $0x14] sm:$0xf]
        %v2285 = vld [vmem:[%s2 + $0x18] sm:$0xf]
        %v2286 = vld [vmem:[%s2 + $0x1c] sm:$0xf]
        %v2287 = vld [vmem:[%s2 + $0x20] sm:$0xf]
        %v2288 = vld [vmem:[%s3] sm:$0x1]
        %v2290 = vlaneseq
        %v2291 = vshrl.u32 %v2290, 7
        %v2292 = vsub.s32 0, %v2291
        %v2293 = vrot.slane %v2288, %v2292
        %v2304 = vunpack.c.l.b16 %v2279
        %v2305 = vunpack.c.l.b16 %v2280
        %v2306 = vunpack.c.l.b16 %v2281
        %v2307 = vunpack.c.l.b16 %v2282
        %v2308 = vunpack.c.l.b16 %v2283
        %v2309 = vunpack.c.l.b16 %v2284
        %v2310 = vunpack.c.l.b16 %v2285
        %v2311 = vunpack.c.l.b16 %v2286
        %v2312 = vunpack.c.l.b16 %v2287
        %v2313 = vpack.c.b16 %v2305, %v2304
        %v2314 = vpack.c.b16 %v2307, %v2306
        %v2315 = vpack.c.b16 %v2309, %v2308
        %v2316 = vpack.c.b16 %v2311, %v2310
        %v2317 = vpack.c.b16 %v2312, %v2312
        %vm2322 = vcmask 588800
        %v2323 = vsel %vm2322, %v2248, 0
        %v2325 = vsel %vm2322, %v2250, 0
        %v2327 = vsel %vm2322, %v2252, 0
        %v2329 = vsel %vm2322, %v2254, 0
        %v2331 = vsel %vm2322, %v2256, 0
        %v2333 = vsel %vm2322, %v2258, 0
        %v2335 = vsel %vm2322, %v2260, 0
        %v2337 = vsel %vm2322, %v2262, 0
        %v2339 = vsel %vm2322, %v2264, 0
        %v2341 = vsel %vm2322, %v2266, 0
        %v2343 = vsel %vm2322, %v2268, 0
        %v2345 = vsel %vm2322, %v2270, 0
        %v2347 = vsel %vm2322, %v2272, 0
        %v2349 = vsel %vm2322, %v2274, 0
        %v2351 = vsel %vm2322, %v2276, 0
        %v2353 = vsel %vm2322, %v2278, 0
        %vm2355 = vcmask 1043456
        %v2357 = vsel %vm2355, %v2317, 0
        %2359 = vmatprep.subr.bf16.mxu0 0
        %2360 = vmatpush1.bf16.msra.mxu0 %v2313
        %2361 = vmatprep.subr.bf16.mxu0 0
        %2362 = vmatpush1.bf16.msra.mxu0 %v2314
        %2363 = vmatprep.subr.bf16.mxu0 0
        %2364 = vmatpush1.bf16.msra.mxu0 %v2315
        %2365 = vmatprep.subr.bf16.mxu0 0
        %2366 = vmatpush1.bf16.msra.mxu0 %v2316
        %2367 = vmatprep.subr.bf16.mxu0 0
        %2368 = vmatpush1.bf16.msra.mxu0 %v2357
        %2369 = vmatprep.subr.bf16.mxu0 0
        %2370 = vmatpush1.bf16.msra.mxu0 0
        %2371 = vmatprep.subr.bf16.mxu0 0
        %2372 = vmatpush1.bf16.msra.mxu0 0
        %2373 = vmatprep.subr.bf16.mxu0 0
        %2374 = vmatpush1.bf16.msra.mxu0 0
        %2375 = vmatprep.subr.bf16.mxu0 0
        %2376 = vmatpush1.bf16.msra.mxu0 0
        %2377 = vmatprep.subr.bf16.mxu0 0
        %2378 = vmatpush1.bf16.msra.mxu0 0
        %2379 = vmatprep.subr.bf16.mxu0 0
        %2380 = vmatpush1.bf16.msra.mxu0 0
        %2381 = vmatprep.subr.bf16.mxu0 0
        %2382 = vmatpush1.bf16.msra.mxu0 0
        %2383 = vmatprep.subr.bf16.mxu0 0
        %2384 = vmatpush1.bf16.msra.mxu0 0
        %2385 = vmatprep.subr.bf16.mxu0 0
        %2386 = vmatpush1.bf16.msra.mxu0 0
        %2387 = vmatprep.subr.bf16.mxu0 0
        %2388 = vmatpush1.bf16.msra.mxu0 0
        %2389 = vmatprep.subr.bf16.mxu0 0
        %2390 = vmatpush1.bf16.msra.mxu0 0
        %2391 = vmatprep.mubr.bf16.mxu0 0
        %2392 = vmatmul.mubr.bf16.gmra.mrb[0].mxu0 %v2323
        %v2393 = vpop.f32.mrb[0].mxu0
        %v2394 = vadd.f32 %v2293, %v2393
        %v2395 = vpop.f32.mrb[0].mxu0
        %v2396 = vpop.f32.mrb[0].mxu0
        %v2397 = vadd.f32 %v2293, %v2396
        %v2398 = vpop.f32.mrb[0].mxu0
        %2399 = vmatprep.mubr.bf16.mxu0 0
        %2400 = vmatmul.mubr.bf16.gmra.mrb[0].mxu0 %v2325
        %v2401 = vpop.f32.mrb[0].mxu0
        %v2402 = vadd.f32 %v2293, %v2401
        %v2403 = vpop.f32.mrb[0].mxu0
        %v2404 = vpop.f32.mrb[0].mxu0
        %v2405 = vadd.f32 %v2293, %v2404
        %v2406 = vpop.f32.mrb[0].mxu0
        %2407 = vmatprep.mubr.bf16.mxu0 0
        %2408 = vmatmul.mubr.bf16.gmra.mrb[0].mxu0 %v2327
        %v2409 = vpop.f32.mrb[0].mxu0
        %v2410 = vadd.f32 %v2293, %v2409
        %v2411 = vpop.f32.mrb[0].mxu0
        %v2412 = vpop.f32.mrb[0].mxu0
        %v2413 = vadd.f32 %v2293, %v2412
        %v2414 = vpop.f32.mrb[0].mxu0
        %2415 = vmatprep.mubr.bf16.mxu0 0
        %2416 = vmatmul.mubr.bf16.gmra.mrb[0].mxu0 %v2329
        %v2417 = vpop.f32.mrb[0].mxu0
        %v2418 = vadd.f32 %v2293, %v2417
        %v2419 = vpop.f32.mrb[0].mxu0
        %v2420 = vpop.f32.mrb[0].mxu0
        %v2421 = vadd.f32 %v2293, %v2420
        %v2422 = vpop.f32.mrb[0].mxu0
        %2423 = vmatprep.mubr.bf16.mxu0 0
        %2424 = vmatmul.mubr.bf16.gmra.mrb[0].mxu0 %v2331
        %v2425 = vpop.f32.mrb[0].mxu0
        %v2426 = vadd.f32 %v2293, %v2425
        %v2427 = vpop.f32.mrb[0].mxu0
        %v2428 = vpop.f32.mrb[0].mxu0
        %v2429 = vadd.f32 %v2293, %v2428
        %v2430 = vpop.f32.mrb[0].mxu0
        %2431 = vmatprep.mubr.bf16.mxu0 0
        %2432 = vmatmul.mubr.bf16.gmra.mrb[0].mxu0 %v2333
        %v2433 = vpop.f32.mrb[0].mxu0
        %v2434 = vadd.f32 %v2293, %v2433
        %v2435 = vpop.f32.mrb[0].mxu0
        %v2436 = vpop.f32.mrb[0].mxu0
        %v2437 = vadd.f32 %v2293, %v2436
        %v2438 = vpop.f32.mrb[0].mxu0
        %2439 = vmatprep.mubr.bf16.mxu0 0
        %2440 = vmatmul.mubr.bf16.gmra.mrb[0].mxu0 %v2335
        %v2441 = vpop.f32.mrb[0].mxu0
        %v2442 = vadd.f32 %v2293, %v2441
        %v2443 = vpop.f32.mrb[0].mxu0
        %v2444 = vpop.f32.mrb[0].mxu0
        %v2445 = vadd.f32 %v2293, %v2444
        %v2446 = vpop.f32.mrb[0].mxu0
        %2447 = vmatprep.mubr.bf16.mxu0 0
        %2448 = vmatmul.mubr.bf16.gmra.mrb[0].mxu0 %v2337
        %v2449 = vpop.f32.mrb[0].mxu0
        %v2450 = vadd.f32 %v2293, %v2449
        %v2451 = vpop.f32.mrb[0].mxu0
        %v2452 = vpop.f32.mrb[0].mxu0
        %v2453 = vadd.f32 %v2293, %v2452
        %v2454 = vpop.f32.mrb[0].mxu0
        %2455 = vmatprep.mubr.bf16.mxu0 0
        %2456 = vmatmul.mubr.bf16.gmra.mrb[0].mxu0 %v2339
        %v2457 = vpop.f32.mrb[0].mxu0
        %v2458 = vadd.f32 %v2293, %v2457
        %v2459 = vpop.f32.mrb[0].mxu0
        %v2460 = vpop.f32.mrb[0].mxu0
        %v2461 = vadd.f32 %v2293, %v2460
        %v2462 = vpop.f32.mrb[0].mxu0
        %2463 = vmatprep.mubr.bf16.mxu0 0
        %2464 = vmatmul.mubr.bf16.gmra.mrb[0].mxu0 %v2341
        %v2465 = vpop.f32.mrb[0].mxu0
        %v2466 = vadd.f32 %v2293, %v2465
        %v2467 = vpop.f32.mrb[0].mxu0
        %v2468 = vpop.f32.mrb[0].mxu0
        %v2469 = vadd.f32 %v2293, %v2468
        %v2470 = vpop.f32.mrb[0].mxu0
        %2471 = vmatprep.mubr.bf16.mxu0 0
        %2472 = vmatmul.mubr.bf16.gmra.mrb[0].mxu0 %v2343
        %v2473 = vpop.f32.mrb[0].mxu0
        %v2474 = vadd.f32 %v2293, %v2473
        %v2475 = vpop.f32.mrb[0].mxu0
        %v2476 = vpop.f32.mrb[0].mxu0
        %v2477 = vadd.f32 %v2293, %v2476
        %v2478 = vpop.f32.mrb[0].mxu0
        %2479 = vmatprep.mubr.bf16.mxu0 0
        %2480 = vmatmul.mubr.bf16.gmra.mrb[0].mxu0 %v2345
        %v2481 = vpop.f32.mrb[0].mxu0
        %v2482 = vadd.f32 %v2293, %v2481
        %v2483 = vpop.f32.mrb[0].mxu0
        %v2484 = vpop.f32.mrb[0].mxu0
        %v2485 = vadd.f32 %v2293, %v2484
        %v2486 = vpop.f32.mrb[0].mxu0
        %2487 = vmatprep.mubr.bf16.mxu0 0
        %2488 = vmatmul.mubr.bf16.gmra.mrb[0].mxu0 %v2347
        %v2489 = vpop.f32.mrb[0].mxu0
        %v2490 = vadd.f32 %v2293, %v2489
        %v2491 = vpop.f32.mrb[0].mxu0
        %v2492 = vpop.f32.mrb[0].mxu0
        %v2493 = vadd.f32 %v2293, %v2492
        %v2494 = vpop.f32.mrb[0].mxu0
        %2495 = vmatprep.mubr.bf16.mxu0 0
        %2496 = vmatmul.mubr.bf16.gmra.mrb[0].mxu0 %v2349
        %v2497 = vpop.f32.mrb[0].mxu0
        %v2498 = vadd.f32 %v2293, %v2497
        %v2499 = vpop.f32.mrb[0].mxu0
        %v2500 = vpop.f32.mrb[0].mxu0
        %v2501 = vadd.f32 %v2293, %v2500
        %v2502 = vpop.f32.mrb[0].mxu0
        %2503 = vmatprep.mubr.bf16.mxu0 0
        %2504 = vmatmul.mubr.bf16.gmra.mrb[0].mxu0 %v2351
        %v2505 = vpop.f32.mrb[0].mxu0
        %v2506 = vadd.f32 %v2293, %v2505
        %v2507 = vpop.f32.mrb[0].mxu0
        %v2508 = vpop.f32.mrb[0].mxu0
        %v2509 = vadd.f32 %v2293, %v2508
        %v2510 = vpop.f32.mrb[0].mxu0
        %2511 = vmatprep.mubr.bf16.mxu0 0
        %2512 = vmatmul.mubr.bf16.gmra.mrb[0].mxu0 %v2353
        %v2513 = vpop.f32.mrb[0].mxu0
        %v2514 = vadd.f32 %v2293, %v2513
        %v2515 = vpop.f32.mrb[0].mxu0
        %v2516 = vpop.f32.mrb[0].mxu0
        %v2517 = vadd.f32 %v2293, %v2516
        %v2518 = vpop.f32.mrb[0].mxu0
        %2519 = vdwg.mxu0
        %v2520 = vmax.f32 %v2394, 0.0
        %v2521 = vmax.f32 %v2397, 0.0
        %v2522 = vmax.f32 %v2402, 0.0
        %v2523 = vmax.f32 %v2405, 0.0
        %v2524 = vmax.f32 %v2410, 0.0
        %v2525 = vmax.f32 %v2413, 0.0
        %v2526 = vmax.f32 %v2418, 0.0
        %v2527 = vmax.f32 %v2421, 0.0
        %v2528 = vmax.f32 %v2426, 0.0
        %v2529 = vmax.f32 %v2429, 0.0
        %v2530 = vmax.f32 %v2434, 0.0
        %v2531 = vmax.f32 %v2437, 0.0
        %v2532 = vmax.f32 %v2442, 0.0
        %v2533 = vmax.f32 %v2445, 0.0
        %v2534 = vmax.f32 %v2450, 0.0
        %v2535 = vmax.f32 %v2453, 0.0
        %v2536 = vmax.f32 %v2458, 0.0
        %v2537 = vmax.f32 %v2461, 0.0
        %v2538 = vmax.f32 %v2466, 0.0
        %v2539 = vmax.f32 %v2469, 0.0
        %v2540 = vmax.f32 %v2474, 0.0
        %v2541 = vmax.f32 %v2477, 0.0
        %v2542 = vmax.f32 %v2482, 0.0
        %v2543 = vmax.f32 %v2485, 0.0
        %v2544 = vmax.f32 %v2490, 0.0
        %v2545 = vmax.f32 %v2493, 0.0
        %v2546 = vmax.f32 %v2498, 0.0
        %v2547 = vmax.f32 %v2501, 0.0
        %v2548 = vmax.f32 %v2506, 0.0
        %v2549 = vmax.f32 %v2509, 0.0
        %v2550 = vmax.f32 %v2514, 0.0
        %v2551 = vmax.f32 %v2517, 0.0
        %v2552 = vpack.c.bf16 %v2521, %v2520
        %v2553 = vpack.c.bf16 %v2523, %v2522
        %v2554 = vpack.c.bf16 %v2525, %v2524
        %v2555 = vpack.c.bf16 %v2527, %v2526
        %v2556 = vpack.c.bf16 %v2529, %v2528
        %v2557 = vpack.c.bf16 %v2531, %v2530
        %v2558 = vpack.c.bf16 %v2533, %v2532
        %v2559 = vpack.c.bf16 %v2535, %v2534
        %v2560 = vpack.c.bf16 %v2537, %v2536
        %v2561 = vpack.c.bf16 %v2539, %v2538
        %v2562 = vpack.c.bf16 %v2541, %v2540
        %v2563 = vpack.c.bf16 %v2543, %v2542
        %v2564 = vpack.c.bf16 %v2545, %v2544
        %v2565 = vpack.c.bf16 %v2547, %v2546
        %v2566 = vpack.c.bf16 %v2549, %v2548
        %v2567 = vpack.c.bf16 %v2551, %v2550
        %v2568 = vld [vmem:[%s4] sm:$0xf]
        %v2569 = vld [vmem:[%s5] sm:$0x1]
        %v2571 = vlaneseq
        %v2572 = vshrl.u32 %v2571, 7
        %v2573 = vsub.s32 0, %v2572
        %v2574 = vrot.slane %v2569, %v2573
        %v2577 = vsel %vm2015, %v2552, 0
        %v2580 = vsel %vm2015, %v2553, 0
        %v2583 = vsel %vm2015, %v2554, 0
        %v2586 = vsel %vm2015, %v2555, 0
        %v2589 = vsel %vm2015, %v2556, 0
        %v2592 = vsel %vm2015, %v2557, 0
        %v2595 = vsel %vm2015, %v2558, 0
        %v2598 = vsel %vm2015, %v2559, 0
        %v2601 = vsel %vm2015, %v2560, 0
        %v2604 = vsel %vm2015, %v2561, 0
        %v2607 = vsel %vm2015, %v2562, 0
        %v2610 = vsel %vm2015, %v2563, 0
        %v2613 = vsel %vm2015, %v2564, 0
        %v2616 = vsel %vm2015, %v2565, 0
        %v2619 = vsel %vm2015, %v2566, 0
        %v2622 = vsel %vm2015, %v2567, 0
        %v2625 = vsel %vm2355, %v2568, 0
        %2627 = vmatprep.subr.bf16.mxu0 0
        %2628 = vmatpush1.bf16.msra.mxu0 %v2625
        %2629 = vmatprep.subr.bf16.mxu0 0
        %2630 = vmatpush1.bf16.msra.mxu0 0
        %2631 = vmatprep.subr.bf16.mxu0 0
        %2632 = vmatpush1.bf16.msra.mxu0 0
        %2633 = vmatprep.subr.bf16.mxu0 0
        %2634 = vmatpush1.bf16.msra.mxu0 0
        %2635 = vmatprep.subr.bf16.mxu0 0
        %2636 = vmatpush1.bf16.msra.mxu0 0
        %2637 = vmatprep.subr.bf16.mxu0 0
        %2638 = vmatpush1.bf16.msra.mxu0 0
        %2639 = vmatprep.subr.bf16.mxu0 0
        %2640 = vmatpush1.bf16.msra.mxu0 0
        %2641 = vmatprep.subr.bf16.mxu0 0
        %2642 = vmatpush1.bf16.msra.mxu0 0
        %2643 = vmatprep.subr.bf16.mxu0 0
        %2644 = vmatpush1.bf16.msra.mxu0 0
        %2645 = vmatprep.subr.bf16.mxu0 0
        %2646 = vmatpush1.bf16.msra.mxu0 0
        %2647 = vmatprep.subr.bf16.mxu0 0
        %2648 = vmatpush1.bf16.msra.mxu0 0
        %2649 = vmatprep.subr.bf16.mxu0 0
        %2650 = vmatpush1.bf16.msra.mxu0 0
        %2651 = vmatprep.subr.bf16.mxu0 0
        %2652 = vmatpush1.bf16.msra.mxu0 0
        %2653 = vmatprep.subr.bf16.mxu0 0
        %2654 = vmatpush1.bf16.msra.mxu0 0
        %2655 = vmatprep.subr.bf16.mxu0 0
        %2656 = vmatpush1.bf16.msra.mxu0 0
        %2657 = vmatprep.subr.bf16.mxu0 0
        %2658 = vmatpush1.bf16.msra.mxu0 0
        %2659 = vmatprep.mubr.bf16.mxu0 0
        %2660 = vmatmul.mubr.bf16.gmra.mrb[0].mxu0 %v2577
        %v2661 = vpop.f32.mrb[0].mxu0
        %v2662 = vadd.f32 %v2574, %v2661
        %v2663 = vpop.f32.mrb[0].mxu0
        %v2664 = vpop.f32.mrb[0].mxu0
        %v2665 = vadd.f32 %v2574, %v2664
        %v2666 = vpop.f32.mrb[0].mxu0
        %2667 = vmatprep.mubr.bf16.mxu0 0
        %2668 = vmatmul.mubr.bf16.gmra.mrb[0].mxu0 %v2580
        %v2669 = vpop.f32.mrb[0].mxu0
        %v2670 = vadd.f32 %v2574, %v2669
        %v2671 = vpop.f32.mrb[0].mxu0
        %v2672 = vpop.f32.mrb[0].mxu0
        %v2673 = vadd.f32 %v2574, %v2672
        %v2674 = vpop.f32.mrb[0].mxu0
        %2675 = vmatprep.mubr.bf16.mxu0 0
        %2676 = vmatmul.mubr.bf16.gmra.mrb[0].mxu0 %v2583
        %v2677 = vpop.f32.mrb[0].mxu0
        %v2678 = vadd.f32 %v2574, %v2677
        %v2679 = vpop.f32.mrb[0].mxu0
        %v2680 = vpop.f32.mrb[0].mxu0
        %v2681 = vadd.f32 %v2574, %v2680
        %v2682 = vpop.f32.mrb[0].mxu0
        %2683 = vmatprep.mubr.bf16.mxu0 0
        %2684 = vmatmul.mubr.bf16.gmra.mrb[0].mxu0 %v2586
        %v2685 = vpop.f32.mrb[0].mxu0
        %v2686 = vadd.f32 %v2574, %v2685
        %v2687 = vpop.f32.mrb[0].mxu0
        %v2688 = vpop.f32.mrb[0].mxu0
        %v2689 = vadd.f32 %v2574, %v2688
        %v2690 = vpop.f32.mrb[0].mxu0
        %2691 = vmatprep.mubr.bf16.mxu0 0
        %2692 = vmatmul.mubr.bf16.gmra.mrb[0].mxu0 %v2589
        %v2693 = vpop.f32.mrb[0].mxu0
        %v2694 = vadd.f32 %v2574, %v2693
        %v2695 = vpop.f32.mrb[0].mxu0
        %v2696 = vpop.f32.mrb[0].mxu0
        %v2697 = vadd.f32 %v2574, %v2696
        %v2698 = vpop.f32.mrb[0].mxu0
        %2699 = vmatprep.mubr.bf16.mxu0 0
        %2700 = vmatmul.mubr.bf16.gmra.mrb[0].mxu0 %v2592
        %v2701 = vpop.f32.mrb[0].mxu0
        %v2702 = vadd.f32 %v2574, %v2701
        %v2703 = vpop.f32.mrb[0].mxu0
        %v2704 = vpop.f32.mrb[0].mxu0
        %v2705 = vadd.f32 %v2574, %v2704
        %v2706 = vpop.f32.mrb[0].mxu0
        %2707 = vmatprep.mubr.bf16.mxu0 0
        %2708 = vmatmul.mubr.bf16.gmra.mrb[0].mxu0 %v2595
        %v2709 = vpop.f32.mrb[0].mxu0
        %v2710 = vadd.f32 %v2574, %v2709
        %v2711 = vpop.f32.mrb[0].mxu0
        %v2712 = vpop.f32.mrb[0].mxu0
        %v2713 = vadd.f32 %v2574, %v2712
        %v2714 = vpop.f32.mrb[0].mxu0
        %2715 = vmatprep.mubr.bf16.mxu0 0
        %2716 = vmatmul.mubr.bf16.gmra.mrb[0].mxu0 %v2598
        %v2717 = vpop.f32.mrb[0].mxu0
        %v2718 = vadd.f32 %v2574, %v2717
        %v2719 = vpop.f32.mrb[0].mxu0
        %v2720 = vpop.f32.mrb[0].mxu0
        %v2721 = vadd.f32 %v2574, %v2720
        %v2722 = vpop.f32.mrb[0].mxu0
        %2723 = vmatprep.mubr.bf16.mxu0 0
        %2724 = vmatmul.mubr.bf16.gmra.mrb[0].mxu0 %v2601
        %v2725 = vpop.f32.mrb[0].mxu0
        %v2726 = vadd.f32 %v2574, %v2725
        %v2727 = vpop.f32.mrb[0].mxu0
        %v2728 = vpop.f32.mrb[0].mxu0
        %v2729 = vadd.f32 %v2574, %v2728
        %v2730 = vpop.f32.mrb[0].mxu0
        %2731 = vmatprep.mubr.bf16.mxu0 0
        %2732 = vmatmul.mubr.bf16.gmra.mrb[0].mxu0 %v2604
        %v2733 = vpop.f32.mrb[0].mxu0
        %v2734 = vadd.f32 %v2574, %v2733
        %v2735 = vpop.f32.mrb[0].mxu0
        %v2736 = vpop.f32.mrb[0].mxu0
        %v2737 = vadd.f32 %v2574, %v2736
        %v2738 = vpop.f32.mrb[0].mxu0
        %2739 = vmatprep.mubr.bf16.mxu0 0
        %2740 = vmatmul.mubr.bf16.gmra.mrb[0].mxu0 %v2607
        %v2741 = vpop.f32.mrb[0].mxu0
        %v2742 = vadd.f32 %v2574, %v2741
        %v2743 = vpop.f32.mrb[0].mxu0
        %v2744 = vpop.f32.mrb[0].mxu0
        %v2745 = vadd.f32 %v2574, %v2744
        %v2746 = vpop.f32.mrb[0].mxu0
        %2747 = vmatprep.mubr.bf16.mxu0 0
        %2748 = vmatmul.mubr.bf16.gmra.mrb[0].mxu0 %v2610
        %v2749 = vpop.f32.mrb[0].mxu0
        %v2750 = vadd.f32 %v2574, %v2749
        %v2751 = vpop.f32.mrb[0].mxu0
        %v2752 = vpop.f32.mrb[0].mxu0
        %v2753 = vadd.f32 %v2574, %v2752
        %v2754 = vpop.f32.mrb[0].mxu0
        %2755 = vmatprep.mubr.bf16.mxu0 0
        %2756 = vmatmul.mubr.bf16.gmra.mrb[0].mxu0 %v2613
        %v2757 = vpop.f32.mrb[0].mxu0
        %v2758 = vadd.f32 %v2574, %v2757
        %v2759 = vpop.f32.mrb[0].mxu0
        %v2760 = vpop.f32.mrb[0].mxu0
        %v2761 = vadd.f32 %v2574, %v2760
        %v2762 = vpop.f32.mrb[0].mxu0
        %2763 = vmatprep.mubr.bf16.mxu0 0
        %2764 = vmatmul.mubr.bf16.gmra.mrb[0].mxu0 %v2616
        %v2765 = vpop.f32.mrb[0].mxu0
        %v2766 = vadd.f32 %v2574, %v2765
        %v2767 = vpop.f32.mrb[0].mxu0
        %v2768 = vpop.f32.mrb[0].mxu0
        %v2769 = vadd.f32 %v2574, %v2768
        %v2770 = vpop.f32.mrb[0].mxu0
        %2771 = vmatprep.mubr.bf16.mxu0 0
        %2772 = vmatmul.mubr.bf16.gmra.mrb[0].mxu0 %v2619
        %v2773 = vpop.f32.mrb[0].mxu0
        %v2774 = vadd.f32 %v2574, %v2773
        %v2775 = vpop.f32.mrb[0].mxu0
        %v2776 = vpop.f32.mrb[0].mxu0
        %v2777 = vadd.f32 %v2574, %v2776
        %v2778 = vpop.f32.mrb[0].mxu0
        %2779 = vmatprep.mubr.bf16.mxu0 0
        %2780 = vmatmul.mubr.bf16.gmra.mrb[0].mxu0 %v2622
        %v2781 = vpop.f32.mrb[0].mxu0
        %v2782 = vadd.f32 %v2574, %v2781
        %v2783 = vpop.f32.mrb[0].mxu0
        %v2784 = vpop.f32.mrb[0].mxu0
        %v2785 = vadd.f32 %v2574, %v2784
        %v2786 = vpop.f32.mrb[0].mxu0
        %2787 = vdwg.mxu0
        %v2788 = vmax.f32 %v2662, 0.0
        %v2789 = vmax.f32 %v2665, 0.0
        %v2790 = vmax.f32 %v2670, 0.0
        %v2791 = vmax.f32 %v2673, 0.0
        %v2792 = vmax.f32 %v2678, 0.0
        %v2793 = vmax.f32 %v2681, 0.0
        %v2794 = vmax.f32 %v2686, 0.0
        %v2795 = vmax.f32 %v2689, 0.0
        %v2796 = vmax.f32 %v2694, 0.0
        %v2797 = vmax.f32 %v2697, 0.0
        %v2798 = vmax.f32 %v2702, 0.0
        %v2799 = vmax.f32 %v2705, 0.0
        %v2800 = vmax.f32 %v2710, 0.0
        %v2801 = vmax.f32 %v2713, 0.0
        %v2802 = vmax.f32 %v2718, 0.0
        %v2803 = vmax.f32 %v2721, 0.0
        %v2804 = vmax.f32 %v2726, 0.0
        %v2805 = vmax.f32 %v2729, 0.0
        %v2806 = vmax.f32 %v2734, 0.0
        %v2807 = vmax.f32 %v2737, 0.0
        %v2808 = vmax.f32 %v2742, 0.0
        %v2809 = vmax.f32 %v2745, 0.0
        %v2810 = vmax.f32 %v2750, 0.0
        %v2811 = vmax.f32 %v2753, 0.0
        %v2812 = vmax.f32 %v2758, 0.0
        %v2813 = vmax.f32 %v2761, 0.0
        %v2814 = vmax.f32 %v2766, 0.0
        %v2815 = vmax.f32 %v2769, 0.0
        %v2816 = vmax.f32 %v2774, 0.0
        %v2817 = vmax.f32 %v2777, 0.0
        %v2818 = vmax.f32 %v2782, 0.0
        %v2819 = vmax.f32 %v2785, 0.0
        %v2820 = vld [vmem:[%s301] sm:$0xff]
        %v2821 = vld [vmem:[%s301 + $0x8] sm:$0xff]
        %v2822 = vld [vmem:[%s301 + $0x10] sm:$0xff]
        %v2823 = vld [vmem:[%s301 + $0x18] sm:$0xff]
        %v2824 = vld [vmem:[%s301 + $0x20] sm:$0xff]
        %v2825 = vld [vmem:[%s301 + $0x28] sm:$0xff]
        %v2826 = vld [vmem:[%s301 + $0x30] sm:$0xff]
        %v2827 = vld [vmem:[%s301 + $0x38] sm:$0xff]
        %v2828 = vld [vmem:[%s301 + $0x40] sm:$0xff]
        %v2829 = vld [vmem:[%s301 + $0x48] sm:$0xff]
        %v2830 = vld [vmem:[%s301 + $0x50] sm:$0xff]
        %v2831 = vld [vmem:[%s301 + $0x58] sm:$0xff]
        %v2832 = vld [vmem:[%s301 + $0x60] sm:$0xff]
        %v2833 = vld [vmem:[%s301 + $0x68] sm:$0xff]
        %v2834 = vld [vmem:[%s301 + $0x70] sm:$0xff]
        %v2835 = vld [vmem:[%s301 + $0x78] sm:$0xff]
        %v2836 = vld [vmem:[%s301 + $0x80] sm:$0xff]
        %v2837 = vld [vmem:[%s301 + $0x88] sm:$0xff]
        %v2838 = vld [vmem:[%s301 + $0x90] sm:$0xff]
        %v2839 = vld [vmem:[%s301 + $0x98] sm:$0xff]
        %v2840 = vld [vmem:[%s301 + $0xa0] sm:$0xff]
        %v2841 = vld [vmem:[%s301 + $0xa8] sm:$0xff]
        %v2842 = vld [vmem:[%s301 + $0xb0] sm:$0xff]
        %v2843 = vld [vmem:[%s301 + $0xb8] sm:$0xff]
        %v2844 = vld [vmem:[%s301 + $0xc0] sm:$0xff]
        %v2845 = vld [vmem:[%s301 + $0xc8] sm:$0xff]
        %v2846 = vld [vmem:[%s301 + $0xd0] sm:$0xff]
        %v2847 = vld [vmem:[%s301 + $0xd8] sm:$0xff]
        %v2848 = vld [vmem:[%s301 + $0xe0] sm:$0xff]
        %v2849 = vld [vmem:[%s301 + $0xe8] sm:$0xff]
        %v2850 = vld [vmem:[%s301 + $0xf0] sm:$0xff]
        %v2851 = vld [vmem:[%s301 + $0xf8] sm:$0xff]
        %v2852 = vadd.f32 %v2788, %v2820
        %v2853 = vadd.f32 %v2789, %v2821
        %v2854 = vadd.f32 %v2790, %v2822
        %v2855 = vadd.f32 %v2791, %v2823
        %v2856 = vadd.f32 %v2792, %v2824
        %v2857 = vadd.f32 %v2793, %v2825
        %v2858 = vadd.f32 %v2794, %v2826
        %v2859 = vadd.f32 %v2795, %v2827
        %v2860 = vadd.f32 %v2796, %v2828
        %v2861 = vadd.f32 %v2797, %v2829
        %v2862 = vadd.f32 %v2798, %v2830
        %v2863 = vadd.f32 %v2799, %v2831
        %v2864 = vadd.f32 %v2800, %v2832
        %v2865 = vadd.f32 %v2801, %v2833
        %v2866 = vadd.f32 %v2802, %v2834
        %v2867 = vadd.f32 %v2803, %v2835
        %v2868 = vadd.f32 %v2804, %v2836
        %v2869 = vadd.f32 %v2805, %v2837
        %v2870 = vadd.f32 %v2806, %v2838
        %v2871 = vadd.f32 %v2807, %v2839
        %v2872 = vadd.f32 %v2808, %v2840
        %v2873 = vadd.f32 %v2809, %v2841
        %v2874 = vadd.f32 %v2810, %v2842
        %v2875 = vadd.f32 %v2811, %v2843
        %v2876 = vadd.f32 %v2812, %v2844
        %v2877 = vadd.f32 %v2813, %v2845
        %v2878 = vadd.f32 %v2814, %v2846
        %v2879 = vadd.f32 %v2815, %v2847
        %v2880 = vadd.f32 %v2816, %v2848
        %v2881 = vadd.f32 %v2817, %v2849
        %v2882 = vadd.f32 %v2818, %v2850
        %v2883 = vadd.f32 %v2819, %v2851
        %v2884 = vmax.f32 %v2852, 0.0
        %v2885 = vmax.f32 %v2853, 0.0
        %v2886 = vmax.f32 %v2854, 0.0
        %v2887 = vmax.f32 %v2855, 0.0
        %v2888 = vmax.f32 %v2856, 0.0
        %v2889 = vmax.f32 %v2857, 0.0
        %v2890 = vmax.f32 %v2858, 0.0
        %v2891 = vmax.f32 %v2859, 0.0
        %v2892 = vmax.f32 %v2860, 0.0
        %v2893 = vmax.f32 %v2861, 0.0
        %v2894 = vmax.f32 %v2862, 0.0
        %v2895 = vmax.f32 %v2863, 0.0
        %v2896 = vmax.f32 %v2864, 0.0
        %v2897 = vmax.f32 %v2865, 0.0
        %v2898 = vmax.f32 %v2866, 0.0
        %v2899 = vmax.f32 %v2867, 0.0
        %v2900 = vmax.f32 %v2868, 0.0
        %v2901 = vmax.f32 %v2869, 0.0
        %v2902 = vmax.f32 %v2870, 0.0
        %v2903 = vmax.f32 %v2871, 0.0
        %v2904 = vmax.f32 %v2872, 0.0
        %v2905 = vmax.f32 %v2873, 0.0
        %v2906 = vmax.f32 %v2874, 0.0
        %v2907 = vmax.f32 %v2875, 0.0
        %v2908 = vmax.f32 %v2876, 0.0
        %v2909 = vmax.f32 %v2877, 0.0
        %v2910 = vmax.f32 %v2878, 0.0
        %v2911 = vmax.f32 %v2879, 0.0
        %v2912 = vmax.f32 %v2880, 0.0
        %v2913 = vmax.f32 %v2881, 0.0
        %v2914 = vmax.f32 %v2882, 0.0
        %v2915 = vmax.f32 %v2883, 0.0
        %2916 = vst.msk [vmem:[%s286] sm:$0xff] %vm2114, %v2884
        %2917 = vst.msk [vmem:[%s286 + $0x8] sm:$0xff] %vm2114, %v2885
        %2918 = vst.msk [vmem:[%s286 + $0x10] sm:$0xff] %vm2114, %v2886
        %2919 = vst.msk [vmem:[%s286 + $0x18] sm:$0xff] %vm2114, %v2887
        %2920 = vst.msk [vmem:[%s286 + $0x20] sm:$0xff] %vm2114, %v2888
        %2921 = vst.msk [vmem:[%s286 + $0x28] sm:$0xff] %vm2114, %v2889
        %2922 = vst.msk [vmem:[%s286 + $0x30] sm:$0xff] %vm2114, %v2890
        %2923 = vst.msk [vmem:[%s286 + $0x38] sm:$0xff] %vm2114, %v2891
        %2924 = vst.msk [vmem:[%s286 + $0x40] sm:$0xff] %vm2114, %v2892
        %2925 = vst.msk [vmem:[%s286 + $0x48] sm:$0xff] %vm2114, %v2893
        %2926 = vst.msk [vmem:[%s286 + $0x50] sm:$0xff] %vm2114, %v2894
        %2927 = vst.msk [vmem:[%s286 + $0x58] sm:$0xff] %vm2114, %v2895
        %2928 = vst.msk [vmem:[%s286 + $0x60] sm:$0xff] %vm2114, %v2896
        %2929 = vst.msk [vmem:[%s286 + $0x68] sm:$0xff] %vm2114, %v2897
        %2930 = vst.msk [vmem:[%s286 + $0x70] sm:$0xff] %vm2114, %v2898
        %2931 = vst.msk [vmem:[%s286 + $0x78] sm:$0xff] %vm2114, %v2899
        %2932 = vst.msk [vmem:[%s286 + $0x80] sm:$0xff] %vm2114, %v2900
        %2933 = vst.msk [vmem:[%s286 + $0x88] sm:$0xff] %vm2114, %v2901
        %2934 = vst.msk [vmem:[%s286 + $0x90] sm:$0xff] %vm2114, %v2902
        %2935 = vst.msk [vmem:[%s286 + $0x98] sm:$0xff] %vm2114, %v2903
        %2936 = vst.msk [vmem:[%s286 + $0xa0] sm:$0xff] %vm2114, %v2904
        %2937 = vst.msk [vmem:[%s286 + $0xa8] sm:$0xff] %vm2114, %v2905
        %2938 = vst.msk [vmem:[%s286 + $0xb0] sm:$0xff] %vm2114, %v2906
        %2939 = vst.msk [vmem:[%s286 + $0xb8] sm:$0xff] %vm2114, %v2907
        %2940 = vst.msk [vmem:[%s286 + $0xc0] sm:$0xff] %vm2114, %v2908
        %2941 = vst.msk [vmem:[%s286 + $0xc8] sm:$0xff] %vm2114, %v2909
        %2942 = vst.msk [vmem:[%s286 + $0xd0] sm:$0xff] %vm2114, %v2910
        %2943 = vst.msk [vmem:[%s286 + $0xd8] sm:$0xff] %vm2114, %v2911
        %2944 = vst.msk [vmem:[%s286 + $0xe0] sm:$0xff] %vm2114, %v2912
        %2945 = vst.msk [vmem:[%s286 + $0xe8] sm:$0xff] %vm2114, %v2913
        %2946 = vst.msk [vmem:[%s286 + $0xf0] sm:$0xff] %vm2114, %v2914
        %2947 = vst.msk [vmem:[%s286 + $0xf8] sm:$0xff] %vm2114, %v2915
        %s2948 = sand.u32 %s180, 1
        %s2949 = scalar_lea.sflag [#allocation3], %s2948
        %s2950 = sand.u32 %s180, 1
        %s2951 = smul.addr %s2950, 256
        %s2952 = scalar_lea.vmem [#allocation2], %s2951
        // Predicated region
        $region45: #{_lambda_.3} parent=43 // pred_check
          %p2953 = pneg %p190
        $region46: #{_lambda_.3} parent=43 // pred_check_branch
          %2955 = sbr.rel (%p2953) target = $region48
        $region47: #{_lambda_.3} parent=43 // pred_region
          %s2956 = smul.u32 16, %s25
          %s2958 = ssub.s32 4096, 4096
          %2959 = vsyncadd %s2949, %s2958
          %s2960 = smul.addr %s2956, 2
          %s2961 = smul.addr %s24, 32
          %s2962 = sadd.s32 %s2960, %s2961
          %s2963 = smul.addr %s2962, 128
          %s2964 = scalar_lea.hbm %s6, %s2963
          %s2965 = sshll.u32 %s2952, 4
          %s2966 = int_to_ptr.vmem [resolvable:$true] %s2965
          %2971 = dma.vmem_to_hbm [thread:$0]  %s2966, 4096, %s2964, %s2949, 128, 128, 8
        $region48: #{_lambda_.3} parent=43 // pred_fallthru
          _
      $region44: #{_lambda_.3} parent=5 // pred_fallthru
        _
      %p2972 = scmp.le.s32.totalorder 2, %s15
      // Predicated region
      $region49: #{_lambda_.3} parent=5 // pred_check
        %p2973 = pneg %p2972
      $region50: #{_lambda_.3} parent=5 // pred_check_branch
        %2975 = sbr.rel (%p2973) target = $region52
      $region51: #{_lambda_.3} parent=5 // pred_region
        %s2976 = ssub.s32 %s15, 2
        // Predicated region
        $region53: #{_lambda_.3} parent=51 // pred_check
          %p2977 = pneg %p196
        $region54: #{_lambda_.3} parent=51 // pred_check_branch
          %2979 = sbr.rel (%p2977) target = $region56
        $region55: #{_lambda_.3} parent=51 // pred_region
          %s2980 = sand.u32 %s181, 1
          %s2981 = scalar_lea.sflag [#allocation3], %s2980
          %s2982 = sand.u32 %s181, 1
          %s2983 = smul.addr %s2982, 256
          %s2984 = scalar_lea.vmem [#allocation2], %s2983
          %2985 = dma.done %s2981, 4096
        $region56: #{_lambda_.3} parent=51 // pred_fallthru
          _
      $region52: #{_lambda_.3} parent=5 // pred_fallthru
        _
    $region6: #{_lambda_.3} parent=1 // loop_footer
      %s19 = sadd.s32 1, %s15
    $region7: #{_lambda_.3} parent=1 // loop_footer_branch
      %14 = sbr.rel target = $region3
    $region8: #{_lambda_.3} parent=1 // loop_exit
      _
    %2986 = vsyncpa [#allocation3], 1
    %s2987 = scalar_lea.sflag [#allocation3], 1
    %2988 = vsyncpa %s2987, 1

</llo_original>
